<compile_context>
chip_gen: v7x
topology: tpu7x:2x2x1
jax: 0.10.0
libtpu: 0.0.40
codegen_flags: <defaults>
</compile_context>

<pallas_src>
import jax
import jax.numpy as jnp
from jax.experimental import pallas as pl
from jax.experimental.pallas import tpu as pltpu

# torchvision VGG19 features configuration (cfg 'E')
VGG19_CFG = [64, 64, "M", 128, 128, "M", 256, 256, 256, 256, "M",
             512, 512, 512, 512, "M", 512, 512, 512, 512, "M"]

COMPUTE_DTYPE = jnp.bfloat16        # bf16 x bf16 -> f32 on the MXU
VMEM_LIMIT = 48 << 20               # leave headroom on v7x (64 MiB physical)


def _largest_divisor_leq(n, cap):
    """Largest divisor of n that is <= cap (>= 1)."""
    for d in range(min(n, cap), 0, -1):
        if n % d == 0:
            return d
    return 1


# ---------------------------------------------------------------------------
# Pallas kernels
# ---------------------------------------------------------------------------
def _make_conv_kernel(tr, W, Cin, Cout, fuse_k, out_dtype):
    """3x3 conv (stride 1, pad 1) on `tr` output rows.

    The (tr+2, W+2, Cin) halo window is assembled in VMEM scratch from the two
    activation blocks, then either:
      * fuse_k=True : one MXU dot of (tr*W, 9*Cin) x (9*Cin, Cout)
      * fuse_k=False: 9 per-tap dots of (tr*W, Cin) x (Cin, Cout)
    with f32 accumulation, fused bias + ReLU, cast on store.
    """

    def kernel(x0_ref, x1_ref, w_ref, b_ref, o_ref, win_ref):
        # Stitch the halo window: rows [0, tr) from the main block, rows
        # [tr, tr+2) from the first two rows of the halo block below it.
        win_ref[0:tr] = x0_ref[0]
        win_ref[tr:tr + 2] = x1_ref[0][0:2]

        if fuse_k:
            # In-VMEM im2col along lanes -> single big-K MXU dot.
            taps = [win_ref[dy:dy + tr, dx:dx + W, :]
                    for dy in range(3) for dx in range(3)]
            lhs = jnp.concatenate(taps, axis=-1).reshape(tr * W, 9 * Cin)
            acc = jnp.dot(lhs, w_ref[...],
                          preferred_element_type=jnp.float32)
        else:
            acc = None
            for t in range(9):
                dy, dx = divmod(t, 3)
                lhs = win_ref[dy:dy + tr, dx:dx + W, :].reshape(tr * W, Cin)
                part = jnp.dot(lhs, w_ref[t * Cin:(t + 1) * Cin, :],
                               preferred_element_type=jnp.float32)
                acc = part if acc is None else acc + part

        acc = acc + b_ref[...]                       # (1, Cout) f32 broadcast
        o_ref[0] = jnp.maximum(acc, 0.0).astype(out_dtype).reshape(tr, W, Cout)

    return kernel


def _make_pool_kernel(C):
    """2x2/stride-2 max pool on a (tb, 2, Wh, 2C) tile of the reshaped input."""

    def kernel(x_ref, o_ref):
        a = x_ref[:, 0]                          # (tb, Wh, 2C) — row 2h
        b = x_ref[:, 1]                          # (tb, Wh, 2C) — row 2h+1
        m = jnp.maximum(a, b)
        o_ref[...] = jnp.maximum(m[:, :, :C], m[:, :, C:])

    return kernel


# ---------------------------------------------------------------------------
# Layer wrappers
# ---------------------------------------------------------------------------
def conv3x3_relu(x_nhwc, weight, bias, *, rows_per_step=8):
    """3x3 conv, stride 1, padding 1, fused bias + ReLU (bf16 MXU, f32 acc)."""
    N, H, W, Cin = x_nhwc.shape
    Cout = weight.shape[0]

    # Rows per grid step: aim for M = tr*W ~ 256 MXU rows, tr | H, tr >= 2.
    rows_cap = max(rows_per_step, 256 // max(W, 1))
    tr = _largest_divisor_leq(H, rows_cap)
    if tr < 2:                                   # H prime > cap (not hit by VGG dims)
        tr = H
    halo = 2 if (tr % 2 == 0) else tr            # rows of the halo block
    step_b = tr // halo                          # halo-blocks per row-block

    # Only a 1-pixel spatial pad is materialized (plus tr-1 zero rows at the
    # bottom so both activation BlockSpecs tile the padded height exactly).
    xp = jnp.pad(x_nhwc, ((0, 0), (1, tr - 1), (1, 1), (0, 0))).astype(COMPUTE_DTYPE)
    # (Cout, Cin, 3, 3) -> (ky, kx, Cin, Cout) -> (9*Cin, Cout), bf16; f32 bias.
    w_k = jnp.transpose(weight, (2, 3, 1, 0)).reshape(9 * Cin, Cout)
    w_k = w_k.astype(COMPUTE_DTYPE)
    b_k = bias.reshape(1, Cout).astype(jnp.float32)

    fuse_k = (Cin % 128 == 0)                    # lane-aligned im2col only

    in_specs = [
        # main tr-row block of the padded activation
        pl.BlockSpec((1, tr, W + 2, Cin), lambda n, r: (n, r, 0, 0)),
        # halo block: the `halo` rows immediately below the main block
        pl.BlockSpec((1, halo, W + 2, Cin),
                     lambda n, r: (n, (r + 1) * step_b, 0, 0)),
        pl.BlockSpec((9 * Cin, Cout), lambda n, r: (0, 0)),   # resident weights
        pl.BlockSpec((1, Cout), lambda n, r: (0, 0)),         # resident bias
    ]
    out_spec = pl.BlockSpec((1, tr, W, Cout), lambda n, r: (n, r, 0, 0))

    out = pl.pallas_call(
        _make_conv_kernel(tr, W, Cin, Cout, fuse_k, COMPUTE_DTYPE),
        out_shape=jax.ShapeDtypeStruct((N, H, W, Cout), COMPUTE_DTYPE),
        grid=(N, H // tr),
        in_specs=in_specs,
        out_specs=out_spec,
        scratch_shapes=[pltpu.VMEM((tr + 2, W + 2, Cin), COMPUTE_DTYPE)],
        compiler_params=pltpu.CompilerParams(
            dimension_semantics=("parallel", "parallel"),
            vmem_limit_bytes=VMEM_LIMIT,
        ),
    )(xp, xp, w_k, b_k)
    return out


def maxpool2x2(x_nhwc, *, target_block_bytes=2 << 20):
    """MaxPool2d(kernel_size=2, stride=2); single-input tiled Pallas kernel."""
    N, H, W, C = x_nhwc.shape
    Hh, Wh = H // 2, W // 2
    if (H % 2) or (W % 2):                        # torch floors odd dims
        x_nhwc = x_nhwc[:, :2 * Hh, :2 * Wh, :]

    rows = N * Hh
    # Free, contiguous reshape: (N, H, W, C) -> (N*Hh, 2, Wh, 2*C).
    x_r = x_nhwc.reshape(rows, 2, Wh, 2 * C)

    row_bytes = 2 * Wh * 2 * C * x_nhwc.dtype.itemsize
    cap = max(1, target_block_bytes // row_bytes)
    tb = _largest_divisor_leq(rows, cap)

    out = pl.pallas_call(
        _make_pool_kernel(C),
        out_shape=jax.ShapeDtypeStruct((rows, Wh, C), x_nhwc.dtype),
        grid=(rows // tb,),
        in_specs=[pl.BlockSpec((tb, 2, Wh, 2 * C), lambda i: (i, 0, 0, 0))],
        out_specs=pl.BlockSpec((tb, Wh, C), lambda i: (i, 0, 0)),
        compiler_params=pltpu.CompilerParams(
            dimension_semantics=("parallel",),
            vmem_limit_bytes=VMEM_LIMIT,
        ),
    )(x_r)
    return out.reshape(N, Hh, Wh, C)


# ---------------------------------------------------------------------------
# Parameters + forward
# ---------------------------------------------------------------------------
def init_vgg19_params(key, in_channels=3, dtype=jnp.float32):
    """Deterministic He-normal init for all 16 conv layers of VGG19 features."""
    params = []
    cin = in_channels
    for v in VGG19_CFG:
        if v == "M":
            continue
        key, wk, bk = jax.random.split(key, 3)
        std = (2.0 / (cin * 9)) ** 0.5
        w = std * jax.random.normal(wk, (v, cin, 3, 3), dtype=dtype)
        b = 0.01 * jax.random.normal(bk, (v,), dtype=dtype)
        params.append((w, b))
        cin = v
    return params


def vgg19_backbone_forward(x_nchw, params):
    """Equivalent of VggNetBackbone.forward (torchvision vgg19().features)."""
    in_dtype = x_nchw.dtype
    x = jnp.transpose(x_nchw, (0, 2, 3, 1)).astype(COMPUTE_DTYPE)  # NCHW->NHWC
    li = 0
    for v in VGG19_CFG:
        if v == "M":
            x = maxpool2x2(x)
        else:
            w, b = params[li]
            x = conv3x3_relu(x, w, b)
            li += 1
    return jnp.transpose(x, (0, 3, 1, 2)).astype(in_dtype)          # NHWC->NCHW


# ---------------------------------------------------------------------------
if __name__ == "__main__":
    key = jax.random.PRNGKey(0)
    key, xk = jax.random.split(key)

    # Small input consistent with the module: NCHW RGB image batch.
    x = jax.random.normal(xk, (2, 3, 32, 32), dtype=jnp.float32)
    params = init_vgg19_params(jax.random.PRNGKey(0), in_channels=3)

    def conv_ref(x_nhwc, w, b):
        r = jax.lax.conv_general_dilated(
            x_nhwc, jnp.transpose(w, (2, 3, 1, 0)),
            window_strides=(1, 1), padding="SAME",
            dimension_numbers=("NHWC", "HWIO", "NHWC"))
        return jnp.maximum(r + b[None, None, None, :], 0.0)

    # --- single-layer correctness checks against XLA reference ---------------
    # (a) non-fused path (Cin=3).
    w0, b0 = params[0]
    x_nhwc = jnp.transpose(x, (0, 2, 3, 1))
    got = conv3x3_relu(x_nhwc.astype(COMPUTE_DTYPE), w0, b0).astype(jnp.float32)
    ref = conv_ref(x_nhwc, w0, b0)
    assert bool(jnp.allclose(got, ref, atol=1e-1, rtol=1e-1)), \
        float(jnp.max(jnp.abs(got - ref)))

    # (b) fused big-K path (Cin=128) on a small synthetic layer.
    kq, kw, kb = jax.random.split(jax.random.PRNGKey(1), 3)
    xq = jax.random.normal(kq, (2, 8, 8, 128), dtype=jnp.float32)
    wq = (2.0 / (128 * 9)) ** 0.5 * jax.random.normal(kw, (128, 128, 3, 3),
                                                      dtype=jnp.float32)
    bq = 0.01 * jax.random.normal(kb, (128,), dtype=jnp.float32)
    got_q = conv3x3_relu(xq.astype(COMPUTE_DTYPE), wq, bq).astype(jnp.float32)
    ref_q = conv_ref(xq, wq, bq)
    assert bool(jnp.allclose(got_q, ref_q, atol=1e-1, rtol=1e-1)), \
        float(jnp.max(jnp.abs(got_q - ref_q)))

    # (c) max-pool.
    pooled = maxpool2x2(got.astype(COMPUTE_DTYPE)).astype(jnp.float32)
    pool_ref = jax.lax.reduce_window(got, -jnp.inf, jax.lax.max,
                                     (1, 2, 2, 1), (1, 2, 2, 1), "VALID")
    assert bool(jnp.allclose(pooled, pool_ref, atol=1e-5)), "pool mismatch"

    # --- full backbone --------------------------------------------------------
    fwd = jax.jit(vgg19_backbone_forward)
    out = jax.block_until_ready(fwd(x, params))

    # VGG19 features: 5 max-pools -> 32 / 2**5 = 1 spatial, 512 channels.
    assert out.shape == (2, 512, 1, 1), out.shape
    assert out.dtype == jnp.float32
    assert bool(jnp.all(jnp.isfinite(out)))

    print("KERNEL_OK")
</pallas_src>

<mosaic_0001>
module attributes {stable_mosaic.version = 11 : i64} {
  func.func @kernel(%arg0: i32, %arg1: i32, %arg2: memref<1x8x34x3xbf16, #tpu.memory_space<vmem>>, %arg3: memref<1x2x34x3xbf16, #tpu.memory_space<vmem>>, %arg4: memref<27x64xbf16, #tpu.memory_space<vmem>>, %arg5: memref<1x64xf32, #tpu.memory_space<vmem>>, %arg6: memref<1x8x32x64xbf16, #tpu.memory_space<vmem>>, %arg7: memref<10x34x3xbf16, #tpu.memory_space<vmem>>) attributes {dimension_semantics = [#tpu.dimension_semantics<parallel>, #tpu.dimension_semantics<parallel>], iteration_bounds = array<i64: 2, 4>, scalar_prefetch = 0 : i64, scratch_operands = 1 : i64, tpu.core_type = #tpu.core_type<tc>, window_params = [{transform_indices = @transform_0, window_bounds = array<i64: 1, 8, 34, 3>}, {transform_indices = @transform_1, window_bounds = array<i64: 1, 2, 34, 3>}, {pipeline_mode = #tpu.pipeline_mode<synchronous>, transform_indices = @transform_2, window_bounds = array<i64: 27, 64>}, {pipeline_mode = #tpu.pipeline_mode<synchronous>, transform_indices = @transform_3, window_bounds = array<i64: 1, 64>}, {transform_indices = @transform_4, window_bounds = array<i64: 1, 8, 32, 64>}]} {
    %c0 = arith.constant 0 : index
    %c0_0 = arith.constant 0 : index
    %c0_1 = arith.constant 0 : index
    %c0_2 = arith.constant 0 : index
    %0 = vector.load %arg2[%c0, %c0_0, %c0_1, %c0_2] : memref<1x8x34x3xbf16, #tpu.memory_space<vmem>>, vector<1x8x34x3xbf16>
    %1 = vector.shape_cast %0 : vector<1x8x34x3xbf16> to vector<8x34x3xbf16>
    %c0_3 = arith.constant 0 : index
    %c0_4 = arith.constant 0 : index
    %c0_5 = arith.constant 0 : index
    %2 = vector.load %arg7[%c0_3, %c0_4, %c0_5] : memref<10x34x3xbf16, #tpu.memory_space<vmem>>, vector<8x34x3xbf16>
    tpu.vector_store %arg7[%c0_3, %c0_4, %c0_5], %1 {strides = array<i32>} : memref<10x34x3xbf16, #tpu.memory_space<vmem>>, vector<8x34x3xbf16>,
    %c0_6 = arith.constant 0 : index
    %c0_7 = arith.constant 0 : index
    %c0_8 = arith.constant 0 : index
    %c0_9 = arith.constant 0 : index
    %3 = vector.load %arg3[%c0_6, %c0_7, %c0_8, %c0_9] : memref<1x2x34x3xbf16, #tpu.memory_space<vmem>>, vector<1x2x34x3xbf16>
    %4 = vector.shape_cast %3 : vector<1x2x34x3xbf16> to vector<2x34x3xbf16>
    %c8 = arith.constant 8 : index
    %c0_10 = arith.constant 0 : index
    %c0_11 = arith.constant 0 : index
    %5 = vector.load %arg7[%c8, %c0_10, %c0_11] : memref<10x34x3xbf16, #tpu.memory_space<vmem>>, vector<2x34x3xbf16>
    tpu.vector_store %arg7[%c8, %c0_10, %c0_11], %4 {strides = array<i32>} : memref<10x34x3xbf16, #tpu.memory_space<vmem>>, vector<2x34x3xbf16>,
    %c0_12 = arith.constant 0 : index
    %c0_13 = arith.constant 0 : index
    %c0_14 = arith.constant 0 : index
    %6 = vector.load %arg7[%c0_12, %c0_13, %c0_14] : memref<10x34x3xbf16, #tpu.memory_space<vmem>>, vector<8x32x3xbf16>
    %7 = vector.shape_cast %6 : vector<8x32x3xbf16> to vector<256x3xbf16>
    %c0_15 = arith.constant 0 : index
    %c0_16 = arith.constant 0 : index
    %8 = vector.load %arg4[%c0_15, %c0_16] : memref<27x64xbf16, #tpu.memory_space<vmem>>, vector<3x64xbf16>
    %cst = arith.constant dense<0.000000e+00> : vector<256x64xf32>
    %9 = tpu.matmul %7, %8, %cst {dimension_numbers = #tpu.dot_dimension_numbers<[1], [0], [0], [1], [0, 0, 1, 1], [], []>} : vector<256x3xbf16>, vector<3x64xbf16>, vector<256x64xf32> -> vector<256x64xf32>
    %c0_17 = arith.constant 0 : index
    %c1 = arith.constant 1 : index
    %c0_18 = arith.constant 0 : index
    %10 = vector.load %arg7[%c0_17, %c1, %c0_18] : memref<10x34x3xbf16, #tpu.memory_space<vmem>>, vector<8x32x3xbf16>
    %11 = vector.shape_cast %10 : vector<8x32x3xbf16> to vector<256x3xbf16>
    %c3 = arith.constant 3 : index
    %c0_19 = arith.constant 0 : index
    %12 = vector.load %arg4[%c3, %c0_19] : memref<27x64xbf16, #tpu.memory_space<vmem>>, vector<3x64xbf16>
    %cst_20 = arith.constant dense<0.000000e+00> : vector<256x64xf32>
    %13 = tpu.matmul %11, %12, %cst_20 {dimension_numbers = #tpu.dot_dimension_numbers<[1], [0], [0], [1], [0, 0, 1, 1], [], []>} : vector<256x3xbf16>, vector<3x64xbf16>, vector<256x64xf32> -> vector<256x64xf32>
    %14 = arith.addf %9, %13 : vector<256x64xf32>
    %c0_21 = arith.constant 0 : index
    %c2 = arith.constant 2 : index
    %c0_22 = arith.constant 0 : index
    %15 = vector.load %arg7[%c0_21, %c2, %c0_22] : memref<10x34x3xbf16, #tpu.memory_space<vmem>>, vector<8x32x3xbf16>
    %16 = vector.shape_cast %15 : vector<8x32x3xbf16> to vector<256x3xbf16>
    %c6 = arith.constant 6 : index
    %c0_23 = arith.constant 0 : index
    %17 = vector.load %arg4[%c6, %c0_23] : memref<27x64xbf16, #tpu.memory_space<vmem>>, vector<3x64xbf16>
    %cst_24 = arith.constant dense<0.000000e+00> : vector<256x64xf32>
    %18 = tpu.matmul %16, %17, %cst_24 {dimension_numbers = #tpu.dot_dimension_numbers<[1], [0], [0], [1], [0, 0, 1, 1], [], []>} : vector<256x3xbf16>, vector<3x64xbf16>, vector<256x64xf32> -> vector<256x64xf32>
    %19 = arith.addf %14, %18 : vector<256x64xf32>
    %c1_25 = arith.constant 1 : index
    %c0_26 = arith.constant 0 : index
    %c0_27 = arith.constant 0 : index
    %20 = vector.load %arg7[%c1_25, %c0_26, %c0_27] : memref<10x34x3xbf16, #tpu.memory_space<vmem>>, vector<8x32x3xbf16>
    %21 = vector.shape_cast %20 : vector<8x32x3xbf16> to vector<256x3xbf16>
    %c9 = arith.constant 9 : index
    %c0_28 = arith.constant 0 : index
    %22 = vector.load %arg4[%c9, %c0_28] : memref<27x64xbf16, #tpu.memory_space<vmem>>, vector<3x64xbf16>
    %cst_29 = arith.constant dense<0.000000e+00> : vector<256x64xf32>
    %23 = tpu.matmul %21, %22, %cst_29 {dimension_numbers = #tpu.dot_dimension_numbers<[1], [0], [0], [1], [0, 0, 1, 1], [], []>} : vector<256x3xbf16>, vector<3x64xbf16>, vector<256x64xf32> -> vector<256x64xf32>
    %24 = arith.addf %19, %23 : vector<256x64xf32>
    %c1_30 = arith.constant 1 : index
    %c1_31 = arith.constant 1 : index
    %c0_32 = arith.constant 0 : index
    %25 = vector.load %arg7[%c1_30, %c1_31, %c0_32] : memref<10x34x3xbf16, #tpu.memory_space<vmem>>, vector<8x32x3xbf16>
    %26 = vector.shape_cast %25 : vector<8x32x3xbf16> to vector<256x3xbf16>
    %c12 = arith.constant 12 : index
    %c0_33 = arith.constant 0 : index
    %27 = vector.load %arg4[%c12, %c0_33] : memref<27x64xbf16, #tpu.memory_space<vmem>>, vector<3x64xbf16>
    %cst_34 = arith.constant dense<0.000000e+00> : vector<256x64xf32>
    %28 = tpu.matmul %26, %27, %cst_34 {dimension_numbers = #tpu.dot_dimension_numbers<[1], [0], [0], [1], [0, 0, 1, 1], [], []>} : vector<256x3xbf16>, vector<3x64xbf16>, vector<256x64xf32> -> vector<256x64xf32>
    %29 = arith.addf %24, %28 : vector<256x64xf32>
    %c1_35 = arith.constant 1 : index
    %c2_36 = arith.constant 2 : index
    %c0_37 = arith.constant 0 : index
    %30 = vector.load %arg7[%c1_35, %c2_36, %c0_37] : memref<10x34x3xbf16, #tpu.memory_space<vmem>>, vector<8x32x3xbf16>
    %31 = vector.shape_cast %30 : vector<8x32x3xbf16> to vector<256x3xbf16>
    %c15 = arith.constant 15 : index
    %c0_38 = arith.constant 0 : index
    %32 = vector.load %arg4[%c15, %c0_38] : memref<27x64xbf16, #tpu.memory_space<vmem>>, vector<3x64xbf16>
    %cst_39 = arith.constant dense<0.000000e+00> : vector<256x64xf32>
    %33 = tpu.matmul %31, %32, %cst_39 {dimension_numbers = #tpu.dot_dimension_numbers<[1], [0], [0], [1], [0, 0, 1, 1], [], []>} : vector<256x3xbf16>, vector<3x64xbf16>, vector<256x64xf32> -> vector<256x64xf32>
    %34 = arith.addf %29, %33 : vector<256x64xf32>
    %c2_40 = arith.constant 2 : index
    %c0_41 = arith.constant 0 : index
    %c0_42 = arith.constant 0 : index
    %35 = vector.load %arg7[%c2_40, %c0_41, %c0_42] : memref<10x34x3xbf16, #tpu.memory_space<vmem>>, vector<8x32x3xbf16>
    %36 = vector.shape_cast %35 : vector<8x32x3xbf16> to vector<256x3xbf16>
    %c18 = arith.constant 18 : index
    %c0_43 = arith.constant 0 : index
    %37 = vector.load %arg4[%c18, %c0_43] : memref<27x64xbf16, #tpu.memory_space<vmem>>, vector<3x64xbf16>
    %cst_44 = arith.constant dense<0.000000e+00> : vector<256x64xf32>
    %38 = tpu.matmul %36, %37, %cst_44 {dimension_numbers = #tpu.dot_dimension_numbers<[1], [0], [0], [1], [0, 0, 1, 1], [], []>} : vector<256x3xbf16>, vector<3x64xbf16>, vector<256x64xf32> -> vector<256x64xf32>
    %39 = arith.addf %34, %38 : vector<256x64xf32>
    %c2_45 = arith.constant 2 : index
    %c1_46 = arith.constant 1 : index
    %c0_47 = arith.constant 0 : index
    %40 = vector.load %arg7[%c2_45, %c1_46, %c0_47] : memref<10x34x3xbf16, #tpu.memory_space<vmem>>, vector<8x32x3xbf16>
    %41 = vector.shape_cast %40 : vector<8x32x3xbf16> to vector<256x3xbf16>
    %c21 = arith.constant 21 : index
    %c0_48 = arith.constant 0 : index
    %42 = vector.load %arg4[%c21, %c0_48] : memref<27x64xbf16, #tpu.memory_space<vmem>>, vector<3x64xbf16>
    %cst_49 = arith.constant dense<0.000000e+00> : vector<256x64xf32>
    %43 = tpu.matmul %41, %42, %cst_49 {dimension_numbers = #tpu.dot_dimension_numbers<[1], [0], [0], [1], [0, 0, 1, 1], [], []>} : vector<256x3xbf16>, vector<3x64xbf16>, vector<256x64xf32> -> vector<256x64xf32>
    %44 = arith.addf %39, %43 : vector<256x64xf32>
    %c2_50 = arith.constant 2 : index
    %c2_51 = arith.constant 2 : index
    %c0_52 = arith.constant 0 : index
    %45 = vector.load %arg7[%c2_50, %c2_51, %c0_52] : memref<10x34x3xbf16, #tpu.memory_space<vmem>>, vector<8x32x3xbf16>
    %46 = vector.shape_cast %45 : vector<8x32x3xbf16> to vector<256x3xbf16>
    %c24 = arith.constant 24 : index
    %c0_53 = arith.constant 0 : index
    %47 = vector.load %arg4[%c24, %c0_53] : memref<27x64xbf16, #tpu.memory_space<vmem>>, vector<3x64xbf16>
    %cst_54 = arith.constant dense<0.000000e+00> : vector<256x64xf32>
    %48 = tpu.matmul %46, %47, %cst_54 {dimension_numbers = #tpu.dot_dimension_numbers<[1], [0], [0], [1], [0, 0, 1, 1], [], []>} : vector<256x3xbf16>, vector<3x64xbf16>, vector<256x64xf32> -> vector<256x64xf32>
    %49 = arith.addf %44, %48 : vector<256x64xf32>
    %c0_55 = arith.constant 0 : index
    %c0_56 = arith.constant 0 : index
    %50 = vector.load %arg5[%c0_55, %c0_56] : memref<1x64xf32, #tpu.memory_space<vmem>>, vector<1x64xf32>
    %51 = vector.broadcast %50 : vector<1x64xf32> to vector<256x64xf32>
    %52 = arith.addf %49, %51 : vector<256x64xf32>
    %cst_57 = arith.constant 0.000000e+00 : f32
    %53 = vector.broadcast %cst_57 : f32 to vector<256x64xf32>
    %54 = arith.maximumf %52, %53 : vector<256x64xf32>
    %55 = arith.truncf %54 : vector<256x64xf32> to vector<256x64xbf16>
    %56 = vector.shape_cast %55 : vector<256x64xbf16> to vector<8x32x64xbf16>
    %c0_58 = arith.constant 0 : index
    %c0_59 = arith.constant 0 : index
    %c0_60 = arith.constant 0 : index
    %c0_61 = arith.constant 0 : index
    %57 = vector.load %arg6[%c0_58, %c0_59, %c0_60, %c0_61] : memref<1x8x32x64xbf16, #tpu.memory_space<vmem>>, vector<1x8x32x64xbf16>
    %58 = vector.shape_cast %57 : vector<1x8x32x64xbf16> to vector<8x32x64xbf16>
    %59 = vector.shape_cast %56 : vector<8x32x64xbf16> to vector<1x8x32x64xbf16>
    tpu.vector_store %arg6[%c0_58, %c0_59, %c0_60, %c0_61], %59 {strides = array<i32>} : memref<1x8x32x64xbf16, #tpu.memory_space<vmem>>, vector<1x8x32x64xbf16>,
    return
  }
  func.func @transform_0(%arg0: i32, %arg1: i32) -> (i32, i32, i32, i32) {
    %c0_i32 = arith.constant 0 : i32
    %c0_i32_0 = arith.constant 0 : i32
    %c0_i32_1 = arith.constant 0 : i32
    return %arg0, %arg1, %c0_i32, %c0_i32_0 : i32, i32, i32, i32
  }
  func.func @transform_1(%arg0: i32, %arg1: i32) -> (i32, i32, i32, i32) {
    %c1_i32 = arith.constant 1 : i32
    %0 = arith.addi %arg1, %c1_i32 : i32
    %c4_i32 = arith.constant 4 : i32
    %1 = arith.muli %0, %c4_i32 : i32
    %c0_i32 = arith.constant 0 : i32
    %c0_i32_0 = arith.constant 0 : i32
    %c0_i32_1 = arith.constant 0 : i32
    return %arg0, %1, %c0_i32, %c0_i32_0 : i32, i32, i32, i32
  }
  func.func @transform_2(%arg0: i32, %arg1: i32) -> (i32, i32) {
    %c0_i32 = arith.constant 0 : i32
    %c0_i32_0 = arith.constant 0 : i32
    %c0_i32_1 = arith.constant 0 : i32
    return %c0_i32, %c0_i32_0 : i32, i32
  }
  func.func @transform_3(%arg0: i32, %arg1: i32) -> (i32, i32) {
    %c0_i32 = arith.constant 0 : i32
    %c0_i32_0 = arith.constant 0 : i32
    %c0_i32_1 = arith.constant 0 : i32
    return %c0_i32, %c0_i32_0 : i32, i32
  }
  func.func @transform_4(%arg0: i32, %arg1: i32) -> (i32, i32, i32, i32) {
    %c0_i32 = arith.constant 0 : i32
    %c0_i32_0 = arith.constant 0 : i32
    %c0_i32_1 = arith.constant 0 : i32
    return %arg0, %arg1, %c0_i32, %c0_i32_0 : i32, i32, i32, i32
  }
}

</mosaic_0001>

<llo_original>
// kernel: tpu_custom_call.1
$region0: #{tpu_custom_call.1}
  #allocation0 [shape = 'u32[]', space=smem, size = 0x4, offset = 0x4, fixed_abs, tag = 'smem constant byte address 0x4 - core index']
  #allocation1 [shape = 'u32[144,128]{1,0:T(1,128)}', space=vmem, size = 0x12000, scoped, tag = 'internal scratch']
  #allocation2 [shape = 'bf16[10,34,3]{2,1,0:T(8,128)(2,1)}', space=vmem, size = 0x19000, scoped, tag = 'scratch operand']
  %s0 = inlined_call_operand.vmem [shape: bf16[2,40,34,3], index: 0, kind: input, shape index: {}]
  %s1 = inlined_call_operand.vmem [shape: bf16[2,40,34,3], index: 1, kind: input, shape index: {}]
  %s2 = inlined_call_operand.vmem [shape: bf16[27,64], index: 2, kind: input, shape index: {}]
  %s3 = inlined_call_operand.vmem [shape: f32[1,64], index: 3, kind: input, shape index: {}]
  %s4 = inlined_call_operand.hbm [shape: bf16[2,32,32,64], index: 4, kind: output, shape index: {}]
  %s5 = sld [smem:[#allocation0]]
  $region49: #{tpu_custom_call.1} parent=0
    _
  %s7 = ssub.s32 1, %s5
  %s8 = scalar_select 0, %s7, %s5
  $region1: #{tpu_custom_call.1} parent=0
    #allocation3 [shape = 'u8[131072]{0}', space=vmem, size = 0x20000, scoped, tag = 'output window, operand 0']
    #allocation4 [shape = 's32[2]{0}', space=sflag, size = 0x8, scoped, tag = 'scoped memory for tpu_custom_call.1']
    %9 = vsyncpa [#allocation4], 0
    %s10 = scalar_lea.sflag [#allocation4], 1
    %11 = vsyncpa %s10, 0
    loop: start=0, step=1, limit=10
    $region2: #{tpu_custom_call.1} parent=1 // loop_pre_header
      _
    $region3: #{tpu_custom_call.1} parent=1 // loop_header
      %s13 = sphi 0, %s17
      %p14 = scmp.ge.s32.totalorder %s13, 10
      %s20 = sphi 0, %s32
      %s21 = sphi 0, %s28
      %s22 = sphi 0, %s20
      %s23 = sphi 0, %s21
      %s24 = sphi 0, %s22
      %s25 = sphi 0, %s23
      %s37 = sphi 0, %s39
      %s40 = sphi 0, %s37
      %s41 = sphi 0, %s40
      %s57 = sphi 0, %s41
      %s69 = sphi 0, %s71
      %s72 = sphi 0, %s69
      %s73 = sphi 0, %s72
      %s89 = sphi 0, %s73
      %s93 = sphi 0, %s93
      %s95 = sphi 0, %s93
      %s96 = sphi 0, %s95
      %s110 = sphi 0, %s96
      %s114 = sphi 0, %s114
      %s116 = sphi 0, %s114
      %s117 = sphi 0, %s116
      %s131 = sphi 0, %s117
      %s139 = sphi 0, %s141
      %s142 = sphi 0, %s139
      %s143 = sphi 0, %s142
      %s159 = sphi 0, %s143
    $region4: #{tpu_custom_call.1} parent=1 // loop_header_branch
      %16 = sbr.rel (%p14) target = $region8
    $region5: #{tpu_custom_call.1} parent=1 // loop_body
      %s18 = ssub.s32 %s13, 1
      %s19 = ssub.s32 %s13, 2
      %s26 = sadd.s32 1, %s21
      %p27 = scmp.ge.s32.totalorder %s26, 4
      %s28 = scalar_select %p27, 0, %s26
      %s29 = sadd.s32 1, %s20
      %s30 = scalar_select %p27, %s29, %s20
      %p31 = scmp.ge.s32.totalorder %s30, 2
      %s32 = scalar_select %p31, 0, %s30
      %s33 = ssub.s32 %s20, %s32
      %s34 = ssub.s32 %s21, %s28
      %s35 = sor.u32 %s33, %s34
      %p36 = scmp.eq.s32.totalorder %s35, 0
      %s38 = sadd.s32 %s37, 1
      %s39 = scalar_select %p36, %s37, %s38
      %p42 = pneg %p36
      %p43 = scmp.eq.s32.totalorder %s13, 7
      %p44 = por %p42, %p43
      %p45 = scmp.ne.s32.totalorder %s37, %s40
      %p46 = scmp.eq.s32.totalorder %s13, 0
      %p47 = por %p45, %p46
      %p48 = scmp.ne.s32.totalorder %s37, %s40
      %p49 = scmp.eq.s32.totalorder %s18, 7
      %p50 = por %p48, %p49
      %p51 = scmp.ne.s32.totalorder %s40, %s41
      %p52 = scmp.eq.s32.totalorder %s18, 0
      %p53 = por %p51, %p52
      %p54 = scmp.ne.s32.totalorder %s40, %s41
      %p55 = scmp.eq.s32.totalorder %s19, 7
      %p56 = por %p54, %p55
      %p58 = scmp.ne.s32.totalorder %s41, %s57
      %p59 = scmp.eq.s32.totalorder %s19, 0
      %p60 = por %p58, %p59
      %s61 = sadd.s32 %s21, 1
      %s62 = smul.u32 %s61, 4
      %s63 = sadd.s32 %s28, 1
      %s64 = smul.u32 %s63, 4
      %s65 = ssub.s32 %s20, %s32
      %s66 = ssub.s32 %s62, %s64
      %s67 = sor.u32 %s65, %s66
      %p68 = scmp.eq.s32.totalorder %s67, 0
      %s70 = sadd.s32 %s69, 1
      %s71 = scalar_select %p68, %s69, %s70
      %p74 = pneg %p68
      %p75 = scmp.eq.s32.totalorder %s13, 7
      %p76 = por %p74, %p75
      %p77 = scmp.ne.s32.totalorder %s69, %s72
      %p78 = scmp.eq.s32.totalorder %s13, 0
      %p79 = por %p77, %p78
      %p80 = scmp.ne.s32.totalorder %s69, %s72
      %p81 = scmp.eq.s32.totalorder %s18, 7
      %p82 = por %p80, %p81
      %p83 = scmp.ne.s32.totalorder %s72, %s73
      %p84 = scmp.eq.s32.totalorder %s18, 0
      %p85 = por %p83, %p84
      %p86 = scmp.ne.s32.totalorder %s72, %s73
      %p87 = scmp.eq.s32.totalorder %s19, 7
      %p88 = por %p86, %p87
      %p90 = scmp.ne.s32.totalorder %s73, %s89
      %p91 = scmp.eq.s32.totalorder %s19, 0
      %p92 = por %p90, %p91
      %s94 = sadd.s32 %s93, 1
      %p97 = scmp.eq.s32.totalorder %s13, 7
      %p98 = scmp.ne.s32.totalorder %s93, %s95
      %p99 = scmp.eq.s32.totalorder %s13, 0
      %p100 = por %p98, %p99
      %p101 = scmp.ne.s32.totalorder %s93, %s95
      %p102 = scmp.eq.s32.totalorder %s18, 7
      %p103 = por %p101, %p102
      %p104 = scmp.ne.s32.totalorder %s95, %s96
      %p105 = scmp.eq.s32.totalorder %s18, 0
      %p106 = por %p104, %p105
      %p107 = scmp.ne.s32.totalorder %s95, %s96
      %p108 = scmp.eq.s32.totalorder %s19, 7
      %p109 = por %p107, %p108
      %p111 = scmp.ne.s32.totalorder %s96, %s110
      %p112 = scmp.eq.s32.totalorder %s19, 0
      %p113 = por %p111, %p112
      %s115 = sadd.s32 %s114, 1
      %p118 = scmp.eq.s32.totalorder %s13, 7
      %p119 = scmp.ne.s32.totalorder %s114, %s116
      %p120 = scmp.eq.s32.totalorder %s13, 0
      %p121 = por %p119, %p120
      %p122 = scmp.ne.s32.totalorder %s114, %s116
      %p123 = scmp.eq.s32.totalorder %s18, 7
      %p124 = por %p122, %p123
      %p125 = scmp.ne.s32.totalorder %s116, %s117
      %p126 = scmp.eq.s32.totalorder %s18, 0
      %p127 = por %p125, %p126
      %p128 = scmp.ne.s32.totalorder %s116, %s117
      %p129 = scmp.eq.s32.totalorder %s19, 7
      %p130 = por %p128, %p129
      %p132 = scmp.ne.s32.totalorder %s117, %s131
      %p133 = scmp.eq.s32.totalorder %s19, 0
      %p134 = por %p132, %p133
      %s135 = ssub.s32 %s20, %s32
      %s136 = ssub.s32 %s21, %s28
      %s137 = sor.u32 %s135, %s136
      %p138 = scmp.eq.s32.totalorder %s137, 0
      %s140 = sadd.s32 %s139, 1
      %s141 = scalar_select %p138, %s139, %s140
      %p144 = pneg %p138
      %p145 = scmp.eq.s32.totalorder %s13, 7
      %p146 = por %p144, %p145
      %p147 = scmp.ne.s32.totalorder %s139, %s142
      %p148 = scmp.eq.s32.totalorder %s13, 0
      %p149 = por %p147, %p148
      %p150 = scmp.ne.s32.totalorder %s139, %s142
      %p151 = scmp.eq.s32.totalorder %s18, 7
      %p152 = por %p150, %p151
      %p153 = scmp.ne.s32.totalorder %s142, %s143
      %p154 = scmp.eq.s32.totalorder %s18, 0
      %p155 = por %p153, %p154
      %p156 = scmp.ne.s32.totalorder %s142, %s143
      %p157 = scmp.eq.s32.totalorder %s19, 7
      %p158 = por %p156, %p157
      %p160 = scmp.ne.s32.totalorder %s143, %s159
      %p161 = scmp.eq.s32.totalorder %s19, 0
      %p162 = por %p160, %p161
      %p163 = scmp.le.s32.totalorder 1, %s13
      %p164 = scmp.lt.s32.totalorder %s13, 9
      %p165 = pnand %p163, %p164
      %p166 = pneg %p165
      // Predicated region
      $region9: #{tpu_custom_call.1} parent=5 // pred_check
        _
      $region10: #{tpu_custom_call.1} parent=5 // pred_check_branch
        %168 = sbr.rel (%p165) target = $region12
      $region11: #{tpu_custom_call.1} parent=5 // pred_region
        %s169 = ssub.s32 %s13, 1
        // Predicated region
        $region13: #{tpu_custom_call.1} parent=11 // pred_check
          %p170 = pneg %p106
        $region14: #{tpu_custom_call.1} parent=11 // pred_check_branch
          %172 = sbr.rel (%p170) target = $region16
        $region15: #{tpu_custom_call.1} parent=11 // pred_region
          _
        $region16: #{tpu_custom_call.1} parent=11 // pred_fallthru
          _
        // Predicated region
        $region17: #{tpu_custom_call.1} parent=11 // pred_check
          %p173 = pneg %p127
        $region18: #{tpu_custom_call.1} parent=11 // pred_check_branch
          %175 = sbr.rel (%p173) target = $region20
        $region19: #{tpu_custom_call.1} parent=11 // pred_region
          _
        $region20: #{tpu_custom_call.1} parent=11 // pred_fallthru
          _
      $region12: #{tpu_custom_call.1} parent=5 // pred_fallthru
        _
      %p176 = scmp.lt.s32.totalorder %s13, 8
      // Predicated region
      $region21: #{tpu_custom_call.1} parent=5 // pred_check
        %p177 = pneg %p176
      $region22: #{tpu_custom_call.1} parent=5 // pred_check_branch
        %179 = sbr.rel (%p177) target = $region24
      $region23: #{tpu_custom_call.1} parent=5 // pred_region
        // Predicated region
        $region25: #{tpu_custom_call.1} parent=23 // pred_check
          %p180 = pneg %p47
        $region26: #{tpu_custom_call.1} parent=23 // pred_check_branch
          %182 = sbr.rel (%p180) target = $region28
        $region27: #{tpu_custom_call.1} parent=23 // pred_region
          %s183 = smul.u32 8, %s21
          %p184 = scmp.lt.s32.totalorder %s20, 1
          %s185 = scalar_select %p184, %s20, 1
          %p186 = scmp.lt.s32.totalorder %s183, 39
          %s187 = scalar_select %p186, %s183, 39
          %s188 = smul.addr %s187, 5
          %s189 = smul.addr %s185, 200
          %s190 = sadd.s32 %s188, %s189
          %s191 = smul.addr %s190, 4
          %s192 = scalar_lea.vmem %s0, %s191
          %s193 = smul.u32 8, %s21
        $region28: #{tpu_custom_call.1} parent=23 // pred_fallthru
          _
        // Predicated region
        $region29: #{tpu_custom_call.1} parent=23 // pred_check
          %p194 = pneg %p79
        $region30: #{tpu_custom_call.1} parent=23 // pred_check_branch
          %196 = sbr.rel (%p194) target = $region32
        $region31: #{tpu_custom_call.1} parent=23 // pred_region
          %s197 = sadd.s32 %s21, 1
          %s198 = smul.u32 %s197, 4
          %s199 = smul.u32 2, %s198
          %p200 = scmp.lt.s32.totalorder %s20, 1
          %s201 = scalar_select %p200, %s20, 1
          %p202 = scmp.lt.s32.totalorder %s199, 39
          %s203 = scalar_select %p202, %s199, 39
          %s204 = smul.addr %s203, 5
          %s205 = smul.addr %s201, 200
          %s206 = sadd.s32 %s204, %s205
          %s207 = smul.addr %s206, 4
          %s208 = scalar_lea.vmem %s1, %s207
          %s209 = sadd.s32 %s21, 1
          %s210 = smul.u32 %s209, 4
          %s211 = smul.u32 2, %s210
        $region32: #{tpu_custom_call.1} parent=23 // pred_fallthru
          _
      $region24: #{tpu_custom_call.1} parent=5 // pred_fallthru
        _
      %p212 = scmp.le.s32.totalorder 1, %s13
      %p213 = scmp.lt.s32.totalorder %s13, 9
      %p214 = pnand %p212, %p213
      %p215 = pneg %p214
      // Predicated region
      $region33: #{tpu_custom_call.1} parent=5 // pred_check
        _
      $region34: #{tpu_custom_call.1} parent=5 // pred_check_branch
        %217 = sbr.rel (%p214) target = $region36
      $region35: #{tpu_custom_call.1} parent=5 // pred_region
        %s218 = ssub.s32 %s13, 1
        %s219 = smul.u32 8, %s23
        %p220 = scmp.lt.s32.totalorder %s22, 1
        %s221 = scalar_select %p220, %s22, 1
        %p222 = scmp.lt.s32.totalorder %s219, 39
        %s223 = scalar_select %p222, %s219, 39
        %s224 = smul.addr %s223, 5
        %s225 = smul.addr %s221, 200
        %s226 = sadd.s32 %s224, %s225
        %s227 = smul.addr %s226, 4
        %s228 = scalar_lea.vmem %s0, %s227
        %p229 = pneg %p53
        %p230 = pneg %p50
        %s231 = sadd.s32 %s23, 1
        %s232 = smul.u32 %s231, 4
        %s233 = smul.u32 2, %s232
        %p234 = scmp.lt.s32.totalorder %s22, 1
        %s235 = scalar_select %p234, %s22, 1
        %p236 = scmp.lt.s32.totalorder %s233, 39
        %s237 = scalar_select %p236, %s233, 39
        %s238 = smul.addr %s237, 5
        %s239 = smul.addr %s235, 200
        %s240 = sadd.s32 %s238, %s239
        %s241 = smul.addr %s240, 4
        %s242 = scalar_lea.vmem %s1, %s241
        %p243 = pneg %p85
        %p244 = pneg %p82
        %p245 = pneg %p106
        %p246 = pneg %p103
        %p247 = pneg %p127
        %p248 = pneg %p124
        %p249 = pneg %p155
        %p250 = pneg %p152
        %s251 = sand.u32 %s142, 1
        %s252 = scalar_lea.sflag [#allocation4], %s251
        %s253 = sand.u32 %s142, 1
        %s254 = smul.addr %s253, 128
        %s255 = scalar_lea.vmem [#allocation3], %s254
        %s256 = smul.u32 8, %s23
        %p257 = scmp.lt.s32.totalorder %s22, 1
        %s258 = scalar_select %p257, %s22, 1
        %p259 = scmp.lt.s32.totalorder %s256, 39
        %s260 = scalar_select %p259, %s256, 39
        %s261 = smul.addr %s260, 5
        %s262 = smul.addr %s258, 200
        %s263 = sadd.s32 %s261, %s262
        %s264 = smul.addr %s263, 4
        %s265 = scalar_lea.vmem %s0, %s264
        %s266 = smul.u32 8, %s23
        %s267 = sadd.s32 %s23, 1
        %s268 = smul.u32 %s267, 4
        %s269 = smul.u32 2, %s268
        %p270 = scmp.lt.s32.totalorder %s22, 1
        %s271 = scalar_select %p270, %s22, 1
        %p272 = scmp.lt.s32.totalorder %s269, 39
        %s273 = scalar_select %p272, %s269, 39
        %s274 = smul.addr %s273, 5
        %s275 = smul.addr %s271, 200
        %s276 = sadd.s32 %s274, %s275
        %s277 = smul.addr %s276, 4
        %s278 = scalar_lea.vmem %s1, %s277
        %s279 = sadd.s32 %s23, 1
        %s280 = smul.u32 %s279, 4
        %s281 = smul.u32 2, %s280
        %s282 = smul.u32 8, %s23
        %v284 = vld [vmem:[%s265] sm:$0xf]
        %v285 = vld [vmem:[%s265 + $0x4] sm:$0xf]
        %v286 = vld [vmem:[%s265 + $0x8] sm:$0xf]
        %v287 = vld [vmem:[%s265 + $0xc] sm:$0xf]
        %v288 = vld [vmem:[%s265 + $0x10] sm:$0x1]
        %v289 = vld [vmem:[%s265 + $0x14] sm:$0xf]
        %v290 = vld [vmem:[%s265 + $0x18] sm:$0xf]
        %v291 = vld [vmem:[%s265 + $0x1c] sm:$0xf]
        %v292 = vld [vmem:[%s265 + $0x20] sm:$0xf]
        %v293 = vld [vmem:[%s265 + $0x24] sm:$0x1]
        %v294 = vld [vmem:[%s265 + $0x28] sm:$0xf]
        %v295 = vld [vmem:[%s265 + $0x2c] sm:$0xf]
        %v296 = vld [vmem:[%s265 + $0x30] sm:$0xf]
        %v297 = vld [vmem:[%s265 + $0x34] sm:$0xf]
        %v298 = vld [vmem:[%s265 + $0x38] sm:$0x1]
        %v299 = vld [vmem:[%s265 + $0x3c] sm:$0xf]
        %v300 = vld [vmem:[%s265 + $0x40] sm:$0xf]
        %v301 = vld [vmem:[%s265 + $0x44] sm:$0xf]
        %v302 = vld [vmem:[%s265 + $0x48] sm:$0xf]
        %v303 = vld [vmem:[%s265 + $0x4c] sm:$0x1]
        %v304 = vld [vmem:[%s265 + $0x50] sm:$0xf]
        %v305 = vld [vmem:[%s265 + $0x54] sm:$0xf]
        %v306 = vld [vmem:[%s265 + $0x58] sm:$0xf]
        %v307 = vld [vmem:[%s265 + $0x5c] sm:$0xf]
        %v308 = vld [vmem:[%s265 + $0x60] sm:$0x1]
        %v309 = vld [vmem:[%s265 + $0x64] sm:$0xf]
        %v310 = vld [vmem:[%s265 + $0x68] sm:$0xf]
        %v311 = vld [vmem:[%s265 + $0x6c] sm:$0xf]
        %v312 = vld [vmem:[%s265 + $0x70] sm:$0xf]
        %v313 = vld [vmem:[%s265 + $0x74] sm:$0x1]
        %v314 = vld [vmem:[%s265 + $0x78] sm:$0xf]
        %v315 = vld [vmem:[%s265 + $0x7c] sm:$0xf]
        %v316 = vld [vmem:[%s265 + $0x80] sm:$0xf]
        %v317 = vld [vmem:[%s265 + $0x84] sm:$0xf]
        %v318 = vld [vmem:[%s265 + $0x88] sm:$0x1]
        %v319 = vld [vmem:[%s265 + $0x8c] sm:$0xf]
        %v320 = vld [vmem:[%s265 + $0x90] sm:$0xf]
        %v321 = vld [vmem:[%s265 + $0x94] sm:$0xf]
        %v322 = vld [vmem:[%s265 + $0x98] sm:$0xf]
        %v323 = vld [vmem:[%s265 + $0x9c] sm:$0x1]
        %vm324 = vcmask 19456
        %325 = vst.msk [vmem:[#allocation2] sm:$0xf] %vm324, %v284
        %326 = vst.msk [vmem:[#allocation2 + $0x4] sm:$0xf] %vm324, %v285
        %327 = vst.msk [vmem:[#allocation2 + $0x8] sm:$0xf] %vm324, %v286
        %328 = vst.msk [vmem:[#allocation2 + $0xc] sm:$0xf] %vm324, %v287
        %vm329 = vcmask 16384
        %330 = vst.msk [vmem:[#allocation2 + $0x10] sm:$0x1] %vm329, %v288
        %331 = vst.msk [vmem:[#allocation2 + $0x14] sm:$0xf] %vm324, %v289
        %332 = vst.msk [vmem:[#allocation2 + $0x18] sm:$0xf] %vm324, %v290
        %333 = vst.msk [vmem:[#allocation2 + $0x1c] sm:$0xf] %vm324, %v291
        %334 = vst.msk [vmem:[#allocation2 + $0x20] sm:$0xf] %vm324, %v292
        %335 = vst.msk [vmem:[#allocation2 + $0x24] sm:$0x1] %vm329, %v293
        %336 = vst.msk [vmem:[#allocation2 + $0x28] sm:$0xf] %vm324, %v294
        %337 = vst.msk [vmem:[#allocation2 + $0x2c] sm:$0xf] %vm324, %v295
        %338 = vst.msk [vmem:[#allocation2 + $0x30] sm:$0xf] %vm324, %v296
        %339 = vst.msk [vmem:[#allocation2 + $0x34] sm:$0xf] %vm324, %v297
        %340 = vst.msk [vmem:[#allocation2 + $0x38] sm:$0x1] %vm329, %v298
        %341 = vst.msk [vmem:[#allocation2 + $0x3c] sm:$0xf] %vm324, %v299
        %342 = vst.msk [vmem:[#allocation2 + $0x40] sm:$0xf] %vm324, %v300
        %343 = vst.msk [vmem:[#allocation2 + $0x44] sm:$0xf] %vm324, %v301
        %344 = vst.msk [vmem:[#allocation2 + $0x48] sm:$0xf] %vm324, %v302
        %345 = vst.msk [vmem:[#allocation2 + $0x4c] sm:$0x1] %vm329, %v303
        %346 = vst.msk [vmem:[#allocation2 + $0x50] sm:$0xf] %vm324, %v304
        %347 = vst.msk [vmem:[#allocation2 + $0x54] sm:$0xf] %vm324, %v305
        %348 = vst.msk [vmem:[#allocation2 + $0x58] sm:$0xf] %vm324, %v306
        %349 = vst.msk [vmem:[#allocation2 + $0x5c] sm:$0xf] %vm324, %v307
        %350 = vst.msk [vmem:[#allocation2 + $0x60] sm:$0x1] %vm329, %v308
        %351 = vst.msk [vmem:[#allocation2 + $0x64] sm:$0xf] %vm324, %v309
        %352 = vst.msk [vmem:[#allocation2 + $0x68] sm:$0xf] %vm324, %v310
        %353 = vst.msk [vmem:[#allocation2 + $0x6c] sm:$0xf] %vm324, %v311
        %354 = vst.msk [vmem:[#allocation2 + $0x70] sm:$0xf] %vm324, %v312
        %355 = vst.msk [vmem:[#allocation2 + $0x74] sm:$0x1] %vm329, %v313
        %356 = vst.msk [vmem:[#allocation2 + $0x78] sm:$0xf] %vm324, %v314
        %357 = vst.msk [vmem:[#allocation2 + $0x7c] sm:$0xf] %vm324, %v315
        %358 = vst.msk [vmem:[#allocation2 + $0x80] sm:$0xf] %vm324, %v316
        %359 = vst.msk [vmem:[#allocation2 + $0x84] sm:$0xf] %vm324, %v317
        %360 = vst.msk [vmem:[#allocation2 + $0x88] sm:$0x1] %vm329, %v318
        %361 = vst.msk [vmem:[#allocation2 + $0x8c] sm:$0xf] %vm324, %v319
        %362 = vst.msk [vmem:[#allocation2 + $0x90] sm:$0xf] %vm324, %v320
        %363 = vst.msk [vmem:[#allocation2 + $0x94] sm:$0xf] %vm324, %v321
        %364 = vst.msk [vmem:[#allocation2 + $0x98] sm:$0xf] %vm324, %v322
        %365 = vst.msk [vmem:[#allocation2 + $0x9c] sm:$0x1] %vm329, %v323
        %v366 = vld [vmem:[%s278] sm:$0xf]
        %v367 = vld [vmem:[%s278 + $0x4] sm:$0xf]
        %v368 = vld [vmem:[%s278 + $0x8] sm:$0xf]
        %v369 = vld [vmem:[%s278 + $0xc] sm:$0xf]
        %v370 = vld [vmem:[%s278 + $0x10] sm:$0x1]
        %v371 = vld [vmem:[%s278 + $0x14] sm:$0xf]
        %v372 = vld [vmem:[%s278 + $0x18] sm:$0xf]
        %v373 = vld [vmem:[%s278 + $0x1c] sm:$0xf]
        %v374 = vld [vmem:[%s278 + $0x20] sm:$0xf]
        %v375 = vld [vmem:[%s278 + $0x24] sm:$0x1]
        %s376 = scalar_lea.vmem [#allocation2], 160
        %377 = vst.msk [vmem:[%s376] sm:$0xf] %vm324, %v366
        %378 = vst.msk [vmem:[%s376 + $0x4] sm:$0xf] %vm324, %v367
        %379 = vst.msk [vmem:[%s376 + $0x8] sm:$0xf] %vm324, %v368
        %380 = vst.msk [vmem:[%s376 + $0xc] sm:$0xf] %vm324, %v369
        %381 = vst.msk [vmem:[%s376 + $0x10] sm:$0x1] %vm329, %v370
        %382 = vst.msk [vmem:[%s376 + $0x14] sm:$0xf] %vm324, %v371
        %383 = vst.msk [vmem:[%s376 + $0x18] sm:$0xf] %vm324, %v372
        %384 = vst.msk [vmem:[%s376 + $0x1c] sm:$0xf] %vm324, %v373
        %385 = vst.msk [vmem:[%s376 + $0x20] sm:$0xf] %vm324, %v374
        %386 = vst.msk [vmem:[%s376 + $0x24] sm:$0x1] %vm329, %v375
        %v387 = vld [vmem:[#allocation2] sm:$0xf]
        %v388 = vld [vmem:[#allocation2 + $0x4] sm:$0xf]
        %v389 = vld [vmem:[#allocation2 + $0x8] sm:$0xf]
        %v390 = vld [vmem:[#allocation2 + $0xc] sm:$0xf]
        %v391 = vld [vmem:[#allocation2 + $0x14] sm:$0xf]
        %v392 = vld [vmem:[#allocation2 + $0x18] sm:$0xf]
        %v393 = vld [vmem:[#allocation2 + $0x1c] sm:$0xf]
        %v394 = vld [vmem:[#allocation2 + $0x20] sm:$0xf]
        %v395 = vld [vmem:[#allocation2 + $0x28] sm:$0xf]
        %v396 = vld [vmem:[#allocation2 + $0x2c] sm:$0xf]
        %v397 = vld [vmem:[#allocation2 + $0x30] sm:$0xf]
        %v398 = vld [vmem:[#allocation2 + $0x34] sm:$0xf]
        %v399 = vld [vmem:[#allocation2 + $0x3c] sm:$0xf]
        %v400 = vld [vmem:[#allocation2 + $0x40] sm:$0xf]
        %v401 = vld [vmem:[#allocation2 + $0x44] sm:$0xf]
        %v402 = vld [vmem:[#allocation2 + $0x48] sm:$0xf]
        %v403 = vld [vmem:[#allocation2 + $0x50] sm:$0xf]
        %v404 = vld [vmem:[#allocation2 + $0x54] sm:$0xf]
        %v405 = vld [vmem:[#allocation2 + $0x58] sm:$0xf]
        %v406 = vld [vmem:[#allocation2 + $0x5c] sm:$0xf]
        %v407 = vld [vmem:[#allocation2 + $0x64] sm:$0xf]
        %v408 = vld [vmem:[#allocation2 + $0x68] sm:$0xf]
        %v409 = vld [vmem:[#allocation2 + $0x6c] sm:$0xf]
        %v410 = vld [vmem:[#allocation2 + $0x70] sm:$0xf]
        %v411 = vld [vmem:[#allocation2 + $0x78] sm:$0xf]
        %v412 = vld [vmem:[#allocation2 + $0x7c] sm:$0xf]
        %v413 = vld [vmem:[#allocation2 + $0x80] sm:$0xf]
        %v414 = vld [vmem:[#allocation2 + $0x84] sm:$0xf]
        %v415 = vld [vmem:[#allocation2 + $0x8c] sm:$0xf]
        %v416 = vld [vmem:[#allocation2 + $0x90] sm:$0xf]
        %v417 = vld [vmem:[#allocation2 + $0x94] sm:$0xf]
        %v418 = vld [vmem:[#allocation2 + $0x98] sm:$0xf]
        %v419 = vld [vmem:[%s2] sm:$0x3]
        %v420 = vld [vmem:[#allocation2 + $0x10] sm:$0x1]
        %v421 = vld [vmem:[#allocation2 + $0x24] sm:$0x1]
        %v422 = vld [vmem:[#allocation2 + $0x38] sm:$0x1]
        %v423 = vld [vmem:[#allocation2 + $0x4c] sm:$0x1]
        %v424 = vld [vmem:[#allocation2 + $0x60] sm:$0x1]
        %v425 = vld [vmem:[#allocation2 + $0x74] sm:$0x1]
        %v426 = vld [vmem:[#allocation2 + $0x88] sm:$0x1]
        %v427 = vld [vmem:[#allocation2 + $0x9c] sm:$0x1]
        %vm428 = vsmask.f32 3328
        %vm429 = vsmask.f32 7440
        %vm430 = vmor %vm428, %vm429
        %v432 = vshrl.u32 %v387, 16
        %v434 = vrot.slane %v432, 4
        %v435 = vshll.u32 %v387, 16
        %v437 = vrot.slane %v435, 5
        %v438 = vor.u32 %v434, %v437
        %v439 = vrot.slane %v438, 4
        %v441 = vshll.u32 %v388, 16
        %v443 = vrot.slane %v441, 5
        %v444 = vsel %vm430, %v439, %v443
        %v445 = vshrl.u32 %v388, 16
        %v447 = vrot.slane %v445, 4
        %v448 = vor.u32 %v447, %v443
        %v449 = vrot.slane %v448, 4
        %v451 = vshll.u32 %v389, 16
        %v453 = vrot.slane %v451, 5
        %v454 = vsel %vm430, %v449, %v453
        %v455 = vshrl.u32 %v389, 16
        %v457 = vrot.slane %v455, 4
        %v458 = vor.u32 %v457, %v453
        %v459 = vrot.slane %v458, 4
        %v461 = vshll.u32 %v390, 16
        %v463 = vrot.slane %v461, 5
        %v464 = vsel %vm430, %v459, %v463
        %v465 = vshrl.u32 %v390, 16
        %v467 = vrot.slane %v465, 4
        %v468 = vor.u32 %v467, %v463
        %v469 = vrot.slane %v468, 4
        %v471 = vshll.u32 %v420, 16
        %v473 = vrot.slane %v471, 5
        %v474 = vsel %vm430, %v469, %v473
        %v476 = vshrl.u32 %v391, 16
        %v478 = vrot.slane %v476, 4
        %v479 = vshll.u32 %v391, 16
        %v481 = vrot.slane %v479, 5
        %v482 = vor.u32 %v478, %v481
        %v483 = vrot.slane %v482, 4
        %v485 = vshll.u32 %v392, 16
        %v487 = vrot.slane %v485, 5
        %v488 = vsel %vm430, %v483, %v487
        %v489 = vshrl.u32 %v392, 16
        %v491 = vrot.slane %v489, 4
        %v492 = vor.u32 %v491, %v487
        %v493 = vrot.slane %v492, 4
        %v495 = vshll.u32 %v393, 16
        %v497 = vrot.slane %v495, 5
        %v498 = vsel %vm430, %v493, %v497
        %v499 = vshrl.u32 %v393, 16
        %v501 = vrot.slane %v499, 4
        %v502 = vor.u32 %v501, %v497
        %v503 = vrot.slane %v502, 4
        %v505 = vshll.u32 %v394, 16
        %v507 = vrot.slane %v505, 5
        %v508 = vsel %vm430, %v503, %v507
        %v509 = vshrl.u32 %v394, 16
        %v511 = vrot.slane %v509, 4
        %v512 = vor.u32 %v511, %v507
        %v513 = vrot.slane %v512, 4
        %v515 = vshll.u32 %v421, 16
        %v517 = vrot.slane %v515, 5
        %v518 = vsel %vm430, %v513, %v517
        %v520 = vshrl.u32 %v395, 16
        %v522 = vrot.slane %v520, 4
        %v523 = vshll.u32 %v395, 16
        %v525 = vrot.slane %v523, 5
        %v526 = vor.u32 %v522, %v525
        %v527 = vrot.slane %v526, 4
        %v529 = vshll.u32 %v396, 16
        %v531 = vrot.slane %v529, 5
        %v532 = vsel %vm430, %v527, %v531
        %v533 = vshrl.u32 %v396, 16
        %v535 = vrot.slane %v533, 4
        %v536 = vor.u32 %v535, %v531
        %v537 = vrot.slane %v536, 4
        %v539 = vshll.u32 %v397, 16
        %v541 = vrot.slane %v539, 5
        %v542 = vsel %vm430, %v537, %v541
        %v543 = vshrl.u32 %v397, 16
        %v545 = vrot.slane %v543, 4
        %v546 = vor.u32 %v545, %v541
        %v547 = vrot.slane %v546, 4
        %v549 = vshll.u32 %v398, 16
        %v551 = vrot.slane %v549, 5
        %v552 = vsel %vm430, %v547, %v551
        %v553 = vshrl.u32 %v398, 16
        %v555 = vrot.slane %v553, 4
        %v556 = vor.u32 %v555, %v551
        %v557 = vrot.slane %v556, 4
        %v559 = vshll.u32 %v422, 16
        %v561 = vrot.slane %v559, 5
        %v562 = vsel %vm430, %v557, %v561
        %v564 = vshrl.u32 %v399, 16
        %v566 = vrot.slane %v564, 4
        %v567 = vshll.u32 %v399, 16
        %v569 = vrot.slane %v567, 5
        %v570 = vor.u32 %v566, %v569
        %v571 = vrot.slane %v570, 4
        %v573 = vshll.u32 %v400, 16
        %v575 = vrot.slane %v573, 5
        %v576 = vsel %vm430, %v571, %v575
        %v577 = vshrl.u32 %v400, 16
        %v579 = vrot.slane %v577, 4
        %v580 = vor.u32 %v579, %v575
        %v581 = vrot.slane %v580, 4
        %v583 = vshll.u32 %v401, 16
        %v585 = vrot.slane %v583, 5
        %v586 = vsel %vm430, %v581, %v585
        %v587 = vshrl.u32 %v401, 16
        %v589 = vrot.slane %v587, 4
        %v590 = vor.u32 %v589, %v585
        %v591 = vrot.slane %v590, 4
        %v593 = vshll.u32 %v402, 16
        %v595 = vrot.slane %v593, 5
        %v596 = vsel %vm430, %v591, %v595
        %v597 = vshrl.u32 %v402, 16
        %v599 = vrot.slane %v597, 4
        %v600 = vor.u32 %v599, %v595
        %v601 = vrot.slane %v600, 4
        %v603 = vshll.u32 %v423, 16
        %v605 = vrot.slane %v603, 5
        %v606 = vsel %vm430, %v601, %v605
        %v608 = vshrl.u32 %v403, 16
        %v610 = vrot.slane %v608, 4
        %v611 = vshll.u32 %v403, 16
        %v613 = vrot.slane %v611, 5
        %v614 = vor.u32 %v610, %v613
        %v615 = vrot.slane %v614, 4
        %v617 = vshll.u32 %v404, 16
        %v619 = vrot.slane %v617, 5
        %v620 = vsel %vm430, %v615, %v619
        %v621 = vshrl.u32 %v404, 16
        %v623 = vrot.slane %v621, 4
        %v624 = vor.u32 %v623, %v619
        %v625 = vrot.slane %v624, 4
        %v627 = vshll.u32 %v405, 16
        %v629 = vrot.slane %v627, 5
        %v630 = vsel %vm430, %v625, %v629
        %v631 = vshrl.u32 %v405, 16
        %v633 = vrot.slane %v631, 4
        %v634 = vor.u32 %v633, %v629
        %v635 = vrot.slane %v634, 4
        %v637 = vshll.u32 %v406, 16
        %v639 = vrot.slane %v637, 5
        %v640 = vsel %vm430, %v635, %v639
        %v641 = vshrl.u32 %v406, 16
        %v643 = vrot.slane %v641, 4
        %v644 = vor.u32 %v643, %v639
        %v645 = vrot.slane %v644, 4
        %v647 = vshll.u32 %v424, 16
        %v649 = vrot.slane %v647, 5
        %v650 = vsel %vm430, %v645, %v649
        %v652 = vshrl.u32 %v407, 16
        %v654 = vrot.slane %v652, 4
        %v655 = vshll.u32 %v407, 16
        %v657 = vrot.slane %v655, 5
        %v658 = vor.u32 %v654, %v657
        %v659 = vrot.slane %v658, 4
        %v661 = vshll.u32 %v408, 16
        %v663 = vrot.slane %v661, 5
        %v664 = vsel %vm430, %v659, %v663
        %v665 = vshrl.u32 %v408, 16
        %v667 = vrot.slane %v665, 4
        %v668 = vor.u32 %v667, %v663
        %v669 = vrot.slane %v668, 4
        %v671 = vshll.u32 %v409, 16
        %v673 = vrot.slane %v671, 5
        %v674 = vsel %vm430, %v669, %v673
        %v675 = vshrl.u32 %v409, 16
        %v677 = vrot.slane %v675, 4
        %v678 = vor.u32 %v677, %v673
        %v679 = vrot.slane %v678, 4
        %v681 = vshll.u32 %v410, 16
        %v683 = vrot.slane %v681, 5
        %v684 = vsel %vm430, %v679, %v683
        %v685 = vshrl.u32 %v410, 16
        %v687 = vrot.slane %v685, 4
        %v688 = vor.u32 %v687, %v683
        %v689 = vrot.slane %v688, 4
        %v691 = vshll.u32 %v425, 16
        %v693 = vrot.slane %v691, 5
        %v694 = vsel %vm430, %v689, %v693
        %v696 = vshrl.u32 %v411, 16
        %v698 = vrot.slane %v696, 4
        %v699 = vshll.u32 %v411, 16
        %v701 = vrot.slane %v699, 5
        %v702 = vor.u32 %v698, %v701
        %v703 = vrot.slane %v702, 4
        %v705 = vshll.u32 %v412, 16
        %v707 = vrot.slane %v705, 5
        %v708 = vsel %vm430, %v703, %v707
        %v709 = vshrl.u32 %v412, 16
        %v711 = vrot.slane %v709, 4
        %v712 = vor.u32 %v711, %v707
        %v713 = vrot.slane %v712, 4
        %v715 = vshll.u32 %v413, 16
        %v717 = vrot.slane %v715, 5
        %v718 = vsel %vm430, %v713, %v717
        %v719 = vshrl.u32 %v413, 16
        %v721 = vrot.slane %v719, 4
        %v722 = vor.u32 %v721, %v717
        %v723 = vrot.slane %v722, 4
        %v725 = vshll.u32 %v414, 16
        %v727 = vrot.slane %v725, 5
        %v728 = vsel %vm430, %v723, %v727
        %v729 = vshrl.u32 %v414, 16
        %v731 = vrot.slane %v729, 4
        %v732 = vor.u32 %v731, %v727
        %v733 = vrot.slane %v732, 4
        %v735 = vshll.u32 %v426, 16
        %v737 = vrot.slane %v735, 5
        %v738 = vsel %vm430, %v733, %v737
        %v740 = vshrl.u32 %v415, 16
        %v742 = vrot.slane %v740, 4
        %v743 = vshll.u32 %v415, 16
        %v745 = vrot.slane %v743, 5
        %v746 = vor.u32 %v742, %v745
        %v747 = vrot.slane %v746, 4
        %v749 = vshll.u32 %v416, 16
        %v751 = vrot.slane %v749, 5
        %v752 = vsel %vm430, %v747, %v751
        %v753 = vshrl.u32 %v416, 16
        %v755 = vrot.slane %v753, 4
        %v756 = vor.u32 %v755, %v751
        %v757 = vrot.slane %v756, 4
        %v759 = vshll.u32 %v417, 16
        %v761 = vrot.slane %v759, 5
        %v762 = vsel %vm430, %v757, %v761
        %v763 = vshrl.u32 %v417, 16
        %v765 = vrot.slane %v763, 4
        %v766 = vor.u32 %v765, %v761
        %v767 = vrot.slane %v766, 4
        %v769 = vshll.u32 %v418, 16
        %v771 = vrot.slane %v769, 5
        %v772 = vsel %vm430, %v767, %v771
        %v773 = vshrl.u32 %v418, 16
        %v775 = vrot.slane %v773, 4
        %v776 = vor.u32 %v775, %v771
        %v777 = vrot.slane %v776, 4
        %v779 = vshll.u32 %v427, 16
        %v781 = vrot.slane %v779, 5
        %v782 = vsel %vm430, %v777, %v781
        %v783 = vld [vmem:[%s2] sm:$0x6]
        %v784 = vunpack.c.l.b16 %v444
        %v785 = vunpack.c.l.b16 %v454
        %v786 = vunpack.c.l.b16 %v464
        %v787 = vunpack.c.l.b16 %v474
        %v788 = vunpack.c.l.b16 %v488
        %v789 = vunpack.c.l.b16 %v498
        %v790 = vunpack.c.l.b16 %v508
        %v791 = vunpack.c.l.b16 %v518
        %v792 = vunpack.c.l.b16 %v532
        %v793 = vunpack.c.l.b16 %v542
        %v794 = vunpack.c.l.b16 %v552
        %v795 = vunpack.c.l.b16 %v562
        %v796 = vunpack.c.l.b16 %v576
        %v797 = vunpack.c.l.b16 %v586
        %v798 = vunpack.c.l.b16 %v596
        %v799 = vunpack.c.l.b16 %v606
        %v800 = vunpack.c.l.b16 %v620
        %v801 = vunpack.c.l.b16 %v630
        %v802 = vunpack.c.l.b16 %v640
        %v803 = vunpack.c.l.b16 %v650
        %v804 = vunpack.c.l.b16 %v664
        %v805 = vunpack.c.l.b16 %v674
        %v806 = vunpack.c.l.b16 %v684
        %v807 = vunpack.c.l.b16 %v694
        %v808 = vunpack.c.l.b16 %v708
        %v809 = vunpack.c.l.b16 %v718
        %v810 = vunpack.c.l.b16 %v728
        %v811 = vunpack.c.l.b16 %v738
        %v812 = vunpack.c.l.b16 %v752
        %v813 = vunpack.c.l.b16 %v762
        %v814 = vunpack.c.l.b16 %v772
        %v815 = vunpack.c.l.b16 %v782
        %v816 = vpack.c.b16 %v785, %v784
        %v817 = vpack.c.b16 %v787, %v786
        %v818 = vpack.c.b16 %v789, %v788
        %v819 = vpack.c.b16 %v791, %v790
        %v820 = vpack.c.b16 %v793, %v792
        %v821 = vpack.c.b16 %v795, %v794
        %v822 = vpack.c.b16 %v797, %v796
        %v823 = vpack.c.b16 %v799, %v798
        %v824 = vpack.c.b16 %v801, %v800
        %v825 = vpack.c.b16 %v803, %v802
        %v826 = vpack.c.b16 %v805, %v804
        %v827 = vpack.c.b16 %v807, %v806
        %v828 = vpack.c.b16 %v809, %v808
        %v829 = vpack.c.b16 %v811, %v810
        %v830 = vpack.c.b16 %v813, %v812
        %v831 = vpack.c.b16 %v815, %v814
        %v833 = vunpack.c.l.b16 %v783
        %v834 = vpack.c.b16 %v833, %v833
        %v836 = vshrl.u32 %v834, 16
        %v838 = vrot.slane %v836, 1
        %v839 = vshll.u32 %v834, 16
        %v841 = vrot.slane %v839, 2
        %v842 = vor.u32 %v838, %v841
        %vm843 = vcmask 23552
        %v845 = vsel %vm843, %v816, 0
        %v848 = vsel %vm843, %v817, 0
        %v851 = vsel %vm843, %v818, 0
        %v854 = vsel %vm843, %v819, 0
        %v857 = vsel %vm843, %v820, 0
        %v860 = vsel %vm843, %v821, 0
        %v863 = vsel %vm843, %v822, 0
        %v866 = vsel %vm843, %v823, 0
        %v869 = vsel %vm843, %v824, 0
        %v872 = vsel %vm843, %v825, 0
        %v875 = vsel %vm843, %v826, 0
        %v878 = vsel %vm843, %v827, 0
        %v881 = vsel %vm843, %v828, 0
        %v884 = vsel %vm843, %v829, 0
        %v887 = vsel %vm843, %v830, 0
        %v890 = vsel %vm843, %v831, 0
        %vm892 = vcmask 1040384
        %vm893 = vcmask 1041408
        %v894 = vsel %vm892, 4294967295, 65535
        %v895 = vsel %vm893, %v894, 0
        %v897 = vand.u32 %v842, %v895
        %899 = vmatprep.subr.bf16.mxu0 0
        %900 = vmatpush1.bf16.msra.mxu0 %v897
        %901 = vmatprep.subr.bf16.mxu0 0
        %902 = vmatpush1.bf16.msra.mxu0 0
        %903 = vmatprep.subr.bf16.mxu0 0
        %904 = vmatpush1.bf16.msra.mxu0 0
        %905 = vmatprep.subr.bf16.mxu0 0
        %906 = vmatpush1.bf16.msra.mxu0 0
        %907 = vmatprep.subr.bf16.mxu0 0
        %908 = vmatpush1.bf16.msra.mxu0 0
        %909 = vmatprep.subr.bf16.mxu0 0
        %910 = vmatpush1.bf16.msra.mxu0 0
        %911 = vmatprep.subr.bf16.mxu0 0
        %912 = vmatpush1.bf16.msra.mxu0 0
        %913 = vmatprep.subr.bf16.mxu0 0
        %914 = vmatpush1.bf16.msra.mxu0 0
        %915 = vmatprep.subr.bf16.mxu0 0
        %916 = vmatpush1.bf16.msra.mxu0 0
        %917 = vmatprep.subr.bf16.mxu0 0
        %918 = vmatpush1.bf16.msra.mxu0 0
        %919 = vmatprep.subr.bf16.mxu0 0
        %920 = vmatpush1.bf16.msra.mxu0 0
        %921 = vmatprep.subr.bf16.mxu0 0
        %922 = vmatpush1.bf16.msra.mxu0 0
        %923 = vmatprep.subr.bf16.mxu0 0
        %924 = vmatpush1.bf16.msra.mxu0 0
        %925 = vmatprep.subr.bf16.mxu0 0
        %926 = vmatpush1.bf16.msra.mxu0 0
        %927 = vmatprep.subr.bf16.mxu0 0
        %928 = vmatpush1.bf16.msra.mxu0 0
        %929 = vmatprep.subr.bf16.mxu0 0
        %930 = vmatpush1.bf16.msra.mxu0 0
        %931 = vmatprep.mubr.bf16.mxu0 0
        %932 = vmatmul.mubr.bf16.gmra.mrb[0].mxu0 %v845
        %v933 = vpop.f32.mrb[0].mxu0
        %v934 = vadd.f32 0.0, %v933
        %v935 = vpop.f32.mrb[0].mxu0
        %v936 = vpop.f32.mrb[0].mxu0
        %v937 = vadd.f32 0.0, %v936
        %v938 = vpop.f32.mrb[0].mxu0
        %939 = vmatprep.mubr.bf16.mxu0 0
        %940 = vmatmul.mubr.bf16.gmra.mrb[0].mxu0 %v848
        %v941 = vpop.f32.mrb[0].mxu0
        %v942 = vadd.f32 0.0, %v941
        %v943 = vpop.f32.mrb[0].mxu0
        %v944 = vpop.f32.mrb[0].mxu0
        %v945 = vadd.f32 0.0, %v944
        %v946 = vpop.f32.mrb[0].mxu0
        %947 = vmatprep.mubr.bf16.mxu0 0
        %948 = vmatmul.mubr.bf16.gmra.mrb[0].mxu0 %v851
        %v949 = vpop.f32.mrb[0].mxu0
        %v950 = vadd.f32 0.0, %v949
        %v951 = vpop.f32.mrb[0].mxu0
        %v952 = vpop.f32.mrb[0].mxu0
        %v953 = vadd.f32 0.0, %v952
        %v954 = vpop.f32.mrb[0].mxu0
        %955 = vmatprep.mubr.bf16.mxu0 0
        %956 = vmatmul.mubr.bf16.gmra.mrb[0].mxu0 %v854
        %v957 = vpop.f32.mrb[0].mxu0
        %v958 = vadd.f32 0.0, %v957
        %v959 = vpop.f32.mrb[0].mxu0
        %v960 = vpop.f32.mrb[0].mxu0
        %v961 = vadd.f32 0.0, %v960
        %v962 = vpop.f32.mrb[0].mxu0
        %963 = vmatprep.mubr.bf16.mxu0 0
        %964 = vmatmul.mubr.bf16.gmra.mrb[0].mxu0 %v857
        %v965 = vpop.f32.mrb[0].mxu0
        %v966 = vadd.f32 0.0, %v965
        %v967 = vpop.f32.mrb[0].mxu0
        %v968 = vpop.f32.mrb[0].mxu0
        %v969 = vadd.f32 0.0, %v968
        %v970 = vpop.f32.mrb[0].mxu0
        %971 = vmatprep.mubr.bf16.mxu0 0
        %972 = vmatmul.mubr.bf16.gmra.mrb[0].mxu0 %v860
        %v973 = vpop.f32.mrb[0].mxu0
        %v974 = vadd.f32 0.0, %v973
        %v975 = vpop.f32.mrb[0].mxu0
        %v976 = vpop.f32.mrb[0].mxu0
        %v977 = vadd.f32 0.0, %v976
        %v978 = vpop.f32.mrb[0].mxu0
        %979 = vmatprep.mubr.bf16.mxu0 0
        %980 = vmatmul.mubr.bf16.gmra.mrb[0].mxu0 %v863
        %v981 = vpop.f32.mrb[0].mxu0
        %v982 = vadd.f32 0.0, %v981
        %v983 = vpop.f32.mrb[0].mxu0
        %v984 = vpop.f32.mrb[0].mxu0
        %v985 = vadd.f32 0.0, %v984
        %v986 = vpop.f32.mrb[0].mxu0
        %987 = vmatprep.mubr.bf16.mxu0 0
        %988 = vmatmul.mubr.bf16.gmra.mrb[0].mxu0 %v866
        %v989 = vpop.f32.mrb[0].mxu0
        %v990 = vadd.f32 0.0, %v989
        %v991 = vpop.f32.mrb[0].mxu0
        %v992 = vpop.f32.mrb[0].mxu0
        %v993 = vadd.f32 0.0, %v992
        %v994 = vpop.f32.mrb[0].mxu0
        %995 = vmatprep.mubr.bf16.mxu0 0
        %996 = vmatmul.mubr.bf16.gmra.mrb[0].mxu0 %v869
        %v997 = vpop.f32.mrb[0].mxu0
        %v998 = vadd.f32 0.0, %v997
        %v999 = vpop.f32.mrb[0].mxu0
        %v1000 = vpop.f32.mrb[0].mxu0
        %v1001 = vadd.f32 0.0, %v1000
        %v1002 = vpop.f32.mrb[0].mxu0
        %1003 = vmatprep.mubr.bf16.mxu0 0
        %1004 = vmatmul.mubr.bf16.gmra.mrb[0].mxu0 %v872
        %v1005 = vpop.f32.mrb[0].mxu0
        %v1006 = vadd.f32 0.0, %v1005
        %v1007 = vpop.f32.mrb[0].mxu0
        %v1008 = vpop.f32.mrb[0].mxu0
        %v1009 = vadd.f32 0.0, %v1008
        %v1010 = vpop.f32.mrb[0].mxu0
        %1011 = vmatprep.mubr.bf16.mxu0 0
        %1012 = vmatmul.mubr.bf16.gmra.mrb[0].mxu0 %v875
        %v1013 = vpop.f32.mrb[0].mxu0
        %v1014 = vadd.f32 0.0, %v1013
        %v1015 = vpop.f32.mrb[0].mxu0
        %v1016 = vpop.f32.mrb[0].mxu0
        %v1017 = vadd.f32 0.0, %v1016
        %v1018 = vpop.f32.mrb[0].mxu0
        %1019 = vmatprep.mubr.bf16.mxu0 0
        %1020 = vmatmul.mubr.bf16.gmra.mrb[0].mxu0 %v878
        %v1021 = vpop.f32.mrb[0].mxu0
        %v1022 = vadd.f32 0.0, %v1021
        %v1023 = vpop.f32.mrb[0].mxu0
        %v1024 = vpop.f32.mrb[0].mxu0
        %v1025 = vadd.f32 0.0, %v1024
        %v1026 = vpop.f32.mrb[0].mxu0
        %1027 = vmatprep.mubr.bf16.mxu0 0
        %1028 = vmatmul.mubr.bf16.gmra.mrb[0].mxu0 %v881
        %v1029 = vpop.f32.mrb[0].mxu0
        %v1030 = vadd.f32 0.0, %v1029
        %v1031 = vpop.f32.mrb[0].mxu0
        %v1032 = vpop.f32.mrb[0].mxu0
        %v1033 = vadd.f32 0.0, %v1032
        %v1034 = vpop.f32.mrb[0].mxu0
        %1035 = vmatprep.mubr.bf16.mxu0 0
        %1036 = vmatmul.mubr.bf16.gmra.mrb[0].mxu0 %v884
        %v1037 = vpop.f32.mrb[0].mxu0
        %v1038 = vadd.f32 0.0, %v1037
        %v1039 = vpop.f32.mrb[0].mxu0
        %v1040 = vpop.f32.mrb[0].mxu0
        %v1041 = vadd.f32 0.0, %v1040
        %v1042 = vpop.f32.mrb[0].mxu0
        %1043 = vmatprep.mubr.bf16.mxu0 0
        %1044 = vmatmul.mubr.bf16.gmra.mrb[0].mxu0 %v887
        %v1045 = vpop.f32.mrb[0].mxu0
        %v1046 = vadd.f32 0.0, %v1045
        %v1047 = vpop.f32.mrb[0].mxu0
        %v1048 = vpop.f32.mrb[0].mxu0
        %v1049 = vadd.f32 0.0, %v1048
        %v1050 = vpop.f32.mrb[0].mxu0
        %1051 = vmatprep.mubr.bf16.mxu0 0
        %1052 = vmatmul.mubr.bf16.gmra.mrb[0].mxu0 %v890
        %v1053 = vpop.f32.mrb[0].mxu0
        %v1054 = vadd.f32 0.0, %v1053
        %v1055 = vpop.f32.mrb[0].mxu0
        %v1056 = vpop.f32.mrb[0].mxu0
        %v1057 = vadd.f32 0.0, %v1056
        %v1058 = vpop.f32.mrb[0].mxu0
        %1059 = vdwg.mxu0
        %v1092 = vunpack.c.l.b16 %v387
        %v1093 = vunpack.c.l.b16 %v388
        %v1094 = vunpack.c.l.b16 %v389
        %v1095 = vunpack.c.l.b16 %v390
        %v1096 = vunpack.c.l.b16 %v391
        %v1097 = vunpack.c.l.b16 %v392
        %v1098 = vunpack.c.l.b16 %v393
        %v1099 = vunpack.c.l.b16 %v394
        %v1100 = vunpack.c.l.b16 %v395
        %v1101 = vunpack.c.l.b16 %v396
        %v1102 = vunpack.c.l.b16 %v397
        %v1103 = vunpack.c.l.b16 %v398
        %v1104 = vunpack.c.l.b16 %v399
        %v1105 = vunpack.c.l.b16 %v400
        %v1106 = vunpack.c.l.b16 %v401
        %v1107 = vunpack.c.l.b16 %v402
        %v1108 = vunpack.c.l.b16 %v403
        %v1109 = vunpack.c.l.b16 %v404
        %v1110 = vunpack.c.l.b16 %v405
        %v1111 = vunpack.c.l.b16 %v406
        %v1112 = vunpack.c.l.b16 %v407
        %v1113 = vunpack.c.l.b16 %v408
        %v1114 = vunpack.c.l.b16 %v409
        %v1115 = vunpack.c.l.b16 %v410
        %v1116 = vunpack.c.l.b16 %v411
        %v1117 = vunpack.c.l.b16 %v412
        %v1118 = vunpack.c.l.b16 %v413
        %v1119 = vunpack.c.l.b16 %v414
        %v1120 = vunpack.c.l.b16 %v415
        %v1121 = vunpack.c.l.b16 %v416
        %v1122 = vunpack.c.l.b16 %v417
        %v1123 = vunpack.c.l.b16 %v418
        %v1124 = vpack.c.b16 %v1093, %v1092
        %v1125 = vpack.c.b16 %v1095, %v1094
        %v1126 = vpack.c.b16 %v1097, %v1096
        %v1127 = vpack.c.b16 %v1099, %v1098
        %v1128 = vpack.c.b16 %v1101, %v1100
        %v1129 = vpack.c.b16 %v1103, %v1102
        %v1130 = vpack.c.b16 %v1105, %v1104
        %v1131 = vpack.c.b16 %v1107, %v1106
        %v1132 = vpack.c.b16 %v1109, %v1108
        %v1133 = vpack.c.b16 %v1111, %v1110
        %v1134 = vpack.c.b16 %v1113, %v1112
        %v1135 = vpack.c.b16 %v1115, %v1114
        %v1136 = vpack.c.b16 %v1117, %v1116
        %v1137 = vpack.c.b16 %v1119, %v1118
        %v1138 = vpack.c.b16 %v1121, %v1120
        %v1139 = vpack.c.b16 %v1123, %v1122
        %v1141 = vsel %vm843, %v1124, 0
        %v1144 = vsel %vm843, %v1125, 0
        %v1147 = vsel %vm843, %v1126, 0
        %v1150 = vsel %vm843, %v1127, 0
        %v1153 = vsel %vm843, %v1128, 0
        %v1156 = vsel %vm843, %v1129, 0
        %v1159 = vsel %vm843, %v1130, 0
        %v1162 = vsel %vm843, %v1131, 0
        %v1165 = vsel %vm843, %v1132, 0
        %v1168 = vsel %vm843, %v1133, 0
        %v1171 = vsel %vm843, %v1134, 0
        %v1174 = vsel %vm843, %v1135, 0
        %v1177 = vsel %vm843, %v1136, 0
        %v1180 = vsel %vm843, %v1137, 0
        %v1183 = vsel %vm843, %v1138, 0
        %v1186 = vsel %vm843, %v1139, 0
        %v1189 = vand.u32 %v419, %v895
        %1191 = vmatprep.subr.bf16.mxu0 0
        %1192 = vmatpush1.bf16.msra.mxu0 %v1189
        %1193 = vmatprep.subr.bf16.mxu0 0
        %1194 = vmatpush1.bf16.msra.mxu0 0
        %1195 = vmatprep.subr.bf16.mxu0 0
        %1196 = vmatpush1.bf16.msra.mxu0 0
        %1197 = vmatprep.subr.bf16.mxu0 0
        %1198 = vmatpush1.bf16.msra.mxu0 0
        %1199 = vmatprep.subr.bf16.mxu0 0
        %1200 = vmatpush1.bf16.msra.mxu0 0
        %1201 = vmatprep.subr.bf16.mxu0 0
        %1202 = vmatpush1.bf16.msra.mxu0 0
        %1203 = vmatprep.subr.bf16.mxu0 0
        %1204 = vmatpush1.bf16.msra.mxu0 0
        %1205 = vmatprep.subr.bf16.mxu0 0
        %1206 = vmatpush1.bf16.msra.mxu0 0
        %1207 = vmatprep.subr.bf16.mxu0 0
        %1208 = vmatpush1.bf16.msra.mxu0 0
        %1209 = vmatprep.subr.bf16.mxu0 0
        %1210 = vmatpush1.bf16.msra.mxu0 0
        %1211 = vmatprep.subr.bf16.mxu0 0
        %1212 = vmatpush1.bf16.msra.mxu0 0
        %1213 = vmatprep.subr.bf16.mxu0 0
        %1214 = vmatpush1.bf16.msra.mxu0 0
        %1215 = vmatprep.subr.bf16.mxu0 0
        %1216 = vmatpush1.bf16.msra.mxu0 0
        %1217 = vmatprep.subr.bf16.mxu0 0
        %1218 = vmatpush1.bf16.msra.mxu0 0
        %1219 = vmatprep.subr.bf16.mxu0 0
        %1220 = vmatpush1.bf16.msra.mxu0 0
        %1221 = vmatprep.subr.bf16.mxu0 0
        %1222 = vmatpush1.bf16.msra.mxu0 0
        %1223 = vmatprep.mubr.bf16.mxu0 0
        %1224 = vmatmul.mubr.bf16.gmra.mrb[0].mxu0 %v1141
        %v1225 = vpop.f32.mrb[0].mxu0
        %v1226 = vadd.f32 %v934, %v1225
        %v1227 = vpop.f32.mrb[0].mxu0
        %v1228 = vpop.f32.mrb[0].mxu0
        %v1229 = vadd.f32 %v937, %v1228
        %v1230 = vpop.f32.mrb[0].mxu0
        %1231 = vmatprep.mubr.bf16.mxu0 0
        %1232 = vmatmul.mubr.bf16.gmra.mrb[0].mxu0 %v1144
        %v1233 = vpop.f32.mrb[0].mxu0
        %v1234 = vadd.f32 %v942, %v1233
        %v1235 = vpop.f32.mrb[0].mxu0
        %v1236 = vpop.f32.mrb[0].mxu0
        %v1237 = vadd.f32 %v945, %v1236
        %v1238 = vpop.f32.mrb[0].mxu0
        %1239 = vmatprep.mubr.bf16.mxu0 0
        %1240 = vmatmul.mubr.bf16.gmra.mrb[0].mxu0 %v1147
        %v1241 = vpop.f32.mrb[0].mxu0
        %v1242 = vadd.f32 %v950, %v1241
        %v1243 = vpop.f32.mrb[0].mxu0
        %v1244 = vpop.f32.mrb[0].mxu0
        %v1245 = vadd.f32 %v953, %v1244
        %v1246 = vpop.f32.mrb[0].mxu0
        %1247 = vmatprep.mubr.bf16.mxu0 0
        %1248 = vmatmul.mubr.bf16.gmra.mrb[0].mxu0 %v1150
        %v1249 = vpop.f32.mrb[0].mxu0
        %v1250 = vadd.f32 %v958, %v1249
        %v1251 = vpop.f32.mrb[0].mxu0
        %v1252 = vpop.f32.mrb[0].mxu0
        %v1253 = vadd.f32 %v961, %v1252
        %v1254 = vpop.f32.mrb[0].mxu0
        %1255 = vmatprep.mubr.bf16.mxu0 0
        %1256 = vmatmul.mubr.bf16.gmra.mrb[0].mxu0 %v1153
        %v1257 = vpop.f32.mrb[0].mxu0
        %v1258 = vadd.f32 %v966, %v1257
        %v1259 = vpop.f32.mrb[0].mxu0
        %v1260 = vpop.f32.mrb[0].mxu0
        %v1261 = vadd.f32 %v969, %v1260
        %v1262 = vpop.f32.mrb[0].mxu0
        %1263 = vmatprep.mubr.bf16.mxu0 0
        %1264 = vmatmul.mubr.bf16.gmra.mrb[0].mxu0 %v1156
        %v1265 = vpop.f32.mrb[0].mxu0
        %v1266 = vadd.f32 %v974, %v1265
        %v1267 = vpop.f32.mrb[0].mxu0
        %v1268 = vpop.f32.mrb[0].mxu0
        %v1269 = vadd.f32 %v977, %v1268
        %v1270 = vpop.f32.mrb[0].mxu0
        %1271 = vmatprep.mubr.bf16.mxu0 0
        %1272 = vmatmul.mubr.bf16.gmra.mrb[0].mxu0 %v1159
        %v1273 = vpop.f32.mrb[0].mxu0
        %v1274 = vadd.f32 %v982, %v1273
        %v1275 = vpop.f32.mrb[0].mxu0
        %v1276 = vpop.f32.mrb[0].mxu0
        %v1277 = vadd.f32 %v985, %v1276
        %v1278 = vpop.f32.mrb[0].mxu0
        %1279 = vmatprep.mubr.bf16.mxu0 0
        %1280 = vmatmul.mubr.bf16.gmra.mrb[0].mxu0 %v1162
        %v1281 = vpop.f32.mrb[0].mxu0
        %v1282 = vadd.f32 %v990, %v1281
        %v1283 = vpop.f32.mrb[0].mxu0
        %v1284 = vpop.f32.mrb[0].mxu0
        %v1285 = vadd.f32 %v993, %v1284
        %v1286 = vpop.f32.mrb[0].mxu0
        %1287 = vmatprep.mubr.bf16.mxu0 0
        %1288 = vmatmul.mubr.bf16.gmra.mrb[0].mxu0 %v1165
        %v1289 = vpop.f32.mrb[0].mxu0
        %v1290 = vadd.f32 %v998, %v1289
        %v1291 = vpop.f32.mrb[0].mxu0
        %v1292 = vpop.f32.mrb[0].mxu0
        %v1293 = vadd.f32 %v1001, %v1292
        %v1294 = vpop.f32.mrb[0].mxu0
        %1295 = vmatprep.mubr.bf16.mxu0 0
        %1296 = vmatmul.mubr.bf16.gmra.mrb[0].mxu0 %v1168
        %v1297 = vpop.f32.mrb[0].mxu0
        %v1298 = vadd.f32 %v1006, %v1297
        %v1299 = vpop.f32.mrb[0].mxu0
        %v1300 = vpop.f32.mrb[0].mxu0
        %v1301 = vadd.f32 %v1009, %v1300
        %v1302 = vpop.f32.mrb[0].mxu0
        %1303 = vmatprep.mubr.bf16.mxu0 0
        %1304 = vmatmul.mubr.bf16.gmra.mrb[0].mxu0 %v1171
        %v1305 = vpop.f32.mrb[0].mxu0
        %v1306 = vadd.f32 %v1014, %v1305
        %v1307 = vpop.f32.mrb[0].mxu0
        %v1308 = vpop.f32.mrb[0].mxu0
        %v1309 = vadd.f32 %v1017, %v1308
        %v1310 = vpop.f32.mrb[0].mxu0
        %1311 = vmatprep.mubr.bf16.mxu0 0
        %1312 = vmatmul.mubr.bf16.gmra.mrb[0].mxu0 %v1174
        %v1313 = vpop.f32.mrb[0].mxu0
        %v1314 = vadd.f32 %v1022, %v1313
        %v1315 = vpop.f32.mrb[0].mxu0
        %v1316 = vpop.f32.mrb[0].mxu0
        %v1317 = vadd.f32 %v1025, %v1316
        %v1318 = vpop.f32.mrb[0].mxu0
        %1319 = vmatprep.mubr.bf16.mxu0 0
        %1320 = vmatmul.mubr.bf16.gmra.mrb[0].mxu0 %v1177
        %v1321 = vpop.f32.mrb[0].mxu0
        %v1322 = vadd.f32 %v1030, %v1321
        %v1323 = vpop.f32.mrb[0].mxu0
        %v1324 = vpop.f32.mrb[0].mxu0
        %v1325 = vadd.f32 %v1033, %v1324
        %v1326 = vpop.f32.mrb[0].mxu0
        %1327 = vmatprep.mubr.bf16.mxu0 0
        %1328 = vmatmul.mubr.bf16.gmra.mrb[0].mxu0 %v1180
        %v1329 = vpop.f32.mrb[0].mxu0
        %v1330 = vadd.f32 %v1038, %v1329
        %v1331 = vpop.f32.mrb[0].mxu0
        %v1332 = vpop.f32.mrb[0].mxu0
        %v1333 = vadd.f32 %v1041, %v1332
        %v1334 = vpop.f32.mrb[0].mxu0
        %1335 = vmatprep.mubr.bf16.mxu0 0
        %1336 = vmatmul.mubr.bf16.gmra.mrb[0].mxu0 %v1183
        %v1337 = vpop.f32.mrb[0].mxu0
        %v1338 = vadd.f32 %v1046, %v1337
        %v1339 = vpop.f32.mrb[0].mxu0
        %v1340 = vpop.f32.mrb[0].mxu0
        %v1341 = vadd.f32 %v1049, %v1340
        %v1342 = vpop.f32.mrb[0].mxu0
        %1343 = vmatprep.mubr.bf16.mxu0 0
        %1344 = vmatmul.mubr.bf16.gmra.mrb[0].mxu0 %v1186
        %v1345 = vpop.f32.mrb[0].mxu0
        %v1346 = vadd.f32 %v1054, %v1345
        %v1347 = vpop.f32.mrb[0].mxu0
        %v1348 = vpop.f32.mrb[0].mxu0
        %v1349 = vadd.f32 %v1057, %v1348
        %v1350 = vpop.f32.mrb[0].mxu0
        %1351 = vdwg.mxu0
        %v1352 = vld [vmem:[#allocation2] sm:$0xe]
        %v1353 = vld [vmem:[#allocation2 + $0x14] sm:$0xe]
        %v1354 = vld [vmem:[#allocation2 + $0x28] sm:$0xe]
        %v1355 = vld [vmem:[#allocation2 + $0x3c] sm:$0xe]
        %v1356 = vld [vmem:[#allocation2 + $0x50] sm:$0xe]
        %v1357 = vld [vmem:[#allocation2 + $0x64] sm:$0xe]
        %v1358 = vld [vmem:[#allocation2 + $0x78] sm:$0xe]
        %v1359 = vld [vmem:[#allocation2 + $0x8c] sm:$0xe]
        %vm1376 = vcmask 1042432
        %vm1377 = vcmask 1046532
        %vm1378 = vmor %vm1376, %vm1377
        %v1379 = vrot.slane %v1352, 5
        %v1380 = vrot.slane %v1379, 4
        %v1381 = vrot.slane %v388, 5
        %v1382 = vsel %vm1378, %v1380, %v1381
        %v1383 = vrot.slane %v1381, 4
        %v1384 = vrot.slane %v389, 5
        %v1385 = vsel %vm1378, %v1383, %v1384
        %v1386 = vrot.slane %v1384, 4
        %v1387 = vrot.slane %v390, 5
        %v1388 = vsel %vm1378, %v1386, %v1387
        %v1389 = vrot.slane %v1387, 4
        %v1390 = vrot.slane %v420, 5
        %v1391 = vsel %vm1378, %v1389, %v1390
        %v1392 = vrot.slane %v1353, 5
        %v1393 = vrot.slane %v1392, 4
        %v1394 = vrot.slane %v392, 5
        %v1395 = vsel %vm1378, %v1393, %v1394
        %v1396 = vrot.slane %v1394, 4
        %v1397 = vrot.slane %v393, 5
        %v1398 = vsel %vm1378, %v1396, %v1397
        %v1399 = vrot.slane %v1397, 4
        %v1400 = vrot.slane %v394, 5
        %v1401 = vsel %vm1378, %v1399, %v1400
        %v1402 = vrot.slane %v1400, 4
        %v1403 = vrot.slane %v421, 5
        %v1404 = vsel %vm1378, %v1402, %v1403
        %v1405 = vrot.slane %v1354, 5
        %v1406 = vrot.slane %v1405, 4
        %v1407 = vrot.slane %v396, 5
        %v1408 = vsel %vm1378, %v1406, %v1407
        %v1409 = vrot.slane %v1407, 4
        %v1410 = vrot.slane %v397, 5
        %v1411 = vsel %vm1378, %v1409, %v1410
        %v1412 = vrot.slane %v1410, 4
        %v1413 = vrot.slane %v398, 5
        %v1414 = vsel %vm1378, %v1412, %v1413
        %v1415 = vrot.slane %v1413, 4
        %v1416 = vrot.slane %v422, 5
        %v1417 = vsel %vm1378, %v1415, %v1416
        %v1418 = vrot.slane %v1355, 5
        %v1419 = vrot.slane %v1418, 4
        %v1420 = vrot.slane %v400, 5
        %v1421 = vsel %vm1378, %v1419, %v1420
        %v1422 = vrot.slane %v1420, 4
        %v1423 = vrot.slane %v401, 5
        %v1424 = vsel %vm1378, %v1422, %v1423
        %v1425 = vrot.slane %v1423, 4
        %v1426 = vrot.slane %v402, 5
        %v1427 = vsel %vm1378, %v1425, %v1426
        %v1428 = vrot.slane %v1426, 4
        %v1429 = vrot.slane %v423, 5
        %v1430 = vsel %vm1378, %v1428, %v1429
        %v1431 = vrot.slane %v1356, 5
        %v1432 = vrot.slane %v1431, 4
        %v1433 = vrot.slane %v404, 5
        %v1434 = vsel %vm1378, %v1432, %v1433
        %v1435 = vrot.slane %v1433, 4
        %v1436 = vrot.slane %v405, 5
        %v1437 = vsel %vm1378, %v1435, %v1436
        %v1438 = vrot.slane %v1436, 4
        %v1439 = vrot.slane %v406, 5
        %v1440 = vsel %vm1378, %v1438, %v1439
        %v1441 = vrot.slane %v1439, 4
        %v1442 = vrot.slane %v424, 5
        %v1443 = vsel %vm1378, %v1441, %v1442
        %v1444 = vrot.slane %v1357, 5
        %v1445 = vrot.slane %v1444, 4
        %v1446 = vrot.slane %v408, 5
        %v1447 = vsel %vm1378, %v1445, %v1446
        %v1448 = vrot.slane %v1446, 4
        %v1449 = vrot.slane %v409, 5
        %v1450 = vsel %vm1378, %v1448, %v1449
        %v1451 = vrot.slane %v1449, 4
        %v1452 = vrot.slane %v410, 5
        %v1453 = vsel %vm1378, %v1451, %v1452
        %v1454 = vrot.slane %v1452, 4
        %v1455 = vrot.slane %v425, 5
        %v1456 = vsel %vm1378, %v1454, %v1455
        %v1457 = vrot.slane %v1358, 5
        %v1458 = vrot.slane %v1457, 4
        %v1459 = vrot.slane %v412, 5
        %v1460 = vsel %vm1378, %v1458, %v1459
        %v1461 = vrot.slane %v1459, 4
        %v1462 = vrot.slane %v413, 5
        %v1463 = vsel %vm1378, %v1461, %v1462
        %v1464 = vrot.slane %v1462, 4
        %v1465 = vrot.slane %v414, 5
        %v1466 = vsel %vm1378, %v1464, %v1465
        %v1467 = vrot.slane %v1465, 4
        %v1468 = vrot.slane %v426, 5
        %v1469 = vsel %vm1378, %v1467, %v1468
        %v1470 = vrot.slane %v1359, 5
        %v1471 = vrot.slane %v1470, 4
        %v1472 = vrot.slane %v416, 5
        %v1473 = vsel %vm1378, %v1471, %v1472
        %v1474 = vrot.slane %v1472, 4
        %v1475 = vrot.slane %v417, 5
        %v1476 = vsel %vm1378, %v1474, %v1475
        %v1477 = vrot.slane %v1475, 4
        %v1478 = vrot.slane %v418, 5
        %v1479 = vsel %vm1378, %v1477, %v1478
        %v1480 = vrot.slane %v1478, 4
        %v1481 = vrot.slane %v427, 5
        %v1482 = vsel %vm1378, %v1480, %v1481
        %v1483 = vld [vmem:[%s2] sm:$0x8]
        %v1484 = vld [vmem:[%s2 + $0x4] sm:$0x1]
        %v1485 = vunpack.c.l.b16 %v1382
        %v1486 = vunpack.c.l.b16 %v1385
        %v1487 = vunpack.c.l.b16 %v1388
        %v1488 = vunpack.c.l.b16 %v1391
        %v1489 = vunpack.c.l.b16 %v1395
        %v1490 = vunpack.c.l.b16 %v1398
        %v1491 = vunpack.c.l.b16 %v1401
        %v1492 = vunpack.c.l.b16 %v1404
        %v1493 = vunpack.c.l.b16 %v1408
        %v1494 = vunpack.c.l.b16 %v1411
        %v1495 = vunpack.c.l.b16 %v1414
        %v1496 = vunpack.c.l.b16 %v1417
        %v1497 = vunpack.c.l.b16 %v1421
        %v1498 = vunpack.c.l.b16 %v1424
        %v1499 = vunpack.c.l.b16 %v1427
        %v1500 = vunpack.c.l.b16 %v1430
        %v1501 = vunpack.c.l.b16 %v1434
        %v1502 = vunpack.c.l.b16 %v1437
        %v1503 = vunpack.c.l.b16 %v1440
        %v1504 = vunpack.c.l.b16 %v1443
        %v1505 = vunpack.c.l.b16 %v1447
        %v1506 = vunpack.c.l.b16 %v1450
        %v1507 = vunpack.c.l.b16 %v1453
        %v1508 = vunpack.c.l.b16 %v1456
        %v1509 = vunpack.c.l.b16 %v1460
        %v1510 = vunpack.c.l.b16 %v1463
        %v1511 = vunpack.c.l.b16 %v1466
        %v1512 = vunpack.c.l.b16 %v1469
        %v1513 = vunpack.c.l.b16 %v1473
        %v1514 = vunpack.c.l.b16 %v1476
        %v1515 = vunpack.c.l.b16 %v1479
        %v1516 = vunpack.c.l.b16 %v1482
        %v1517 = vpack.c.b16 %v1486, %v1485
        %v1518 = vpack.c.b16 %v1488, %v1487
        %v1519 = vpack.c.b16 %v1490, %v1489
        %v1520 = vpack.c.b16 %v1492, %v1491
        %v1521 = vpack.c.b16 %v1494, %v1493
        %v1522 = vpack.c.b16 %v1496, %v1495
        %v1523 = vpack.c.b16 %v1498, %v1497
        %v1524 = vpack.c.b16 %v1500, %v1499
        %v1525 = vpack.c.b16 %v1502, %v1501
        %v1526 = vpack.c.b16 %v1504, %v1503
        %v1527 = vpack.c.b16 %v1506, %v1505
        %v1528 = vpack.c.b16 %v1508, %v1507
        %v1529 = vpack.c.b16 %v1510, %v1509
        %v1530 = vpack.c.b16 %v1512, %v1511
        %v1531 = vpack.c.b16 %v1514, %v1513
        %v1532 = vpack.c.b16 %v1516, %v1515
        %v1535 = vunpack.c.l.b16 %v1483
        %v1536 = vunpack.c.l.b16 %v1484
        %v1537 = vpack.c.b16 %v1536, %v1535
        %v1538 = vrot.slane %v1537, 3
        %v1540 = vsel %vm843, %v1517, 0
        %v1543 = vsel %vm843, %v1518, 0
        %v1546 = vsel %vm843, %v1519, 0
        %v1549 = vsel %vm843, %v1520, 0
        %v1552 = vsel %vm843, %v1521, 0
        %v1555 = vsel %vm843, %v1522, 0
        %v1558 = vsel %vm843, %v1523, 0
        %v1561 = vsel %vm843, %v1524, 0
        %v1564 = vsel %vm843, %v1525, 0
        %v1567 = vsel %vm843, %v1526, 0
        %v1570 = vsel %vm843, %v1527, 0
        %v1573 = vsel %vm843, %v1528, 0
        %v1576 = vsel %vm843, %v1529, 0
        %v1579 = vsel %vm843, %v1530, 0
        %v1582 = vsel %vm843, %v1531, 0
        %v1585 = vsel %vm843, %v1532, 0
        %v1588 = vand.u32 %v1538, %v895
        %1590 = vmatprep.subr.bf16.mxu0 0
        %1591 = vmatpush1.bf16.msra.mxu0 %v1588
        %1592 = vmatprep.subr.bf16.mxu0 0
        %1593 = vmatpush1.bf16.msra.mxu0 0
        %1594 = vmatprep.subr.bf16.mxu0 0
        %1595 = vmatpush1.bf16.msra.mxu0 0
        %1596 = vmatprep.subr.bf16.mxu0 0
        %1597 = vmatpush1.bf16.msra.mxu0 0
        %1598 = vmatprep.subr.bf16.mxu0 0
        %1599 = vmatpush1.bf16.msra.mxu0 0
        %1600 = vmatprep.subr.bf16.mxu0 0
        %1601 = vmatpush1.bf16.msra.mxu0 0
        %1602 = vmatprep.subr.bf16.mxu0 0
        %1603 = vmatpush1.bf16.msra.mxu0 0
        %1604 = vmatprep.subr.bf16.mxu0 0
        %1605 = vmatpush1.bf16.msra.mxu0 0
        %1606 = vmatprep.subr.bf16.mxu0 0
        %1607 = vmatpush1.bf16.msra.mxu0 0
        %1608 = vmatprep.subr.bf16.mxu0 0
        %1609 = vmatpush1.bf16.msra.mxu0 0
        %1610 = vmatprep.subr.bf16.mxu0 0
        %1611 = vmatpush1.bf16.msra.mxu0 0
        %1612 = vmatprep.subr.bf16.mxu0 0
        %1613 = vmatpush1.bf16.msra.mxu0 0
        %1614 = vmatprep.subr.bf16.mxu0 0
        %1615 = vmatpush1.bf16.msra.mxu0 0
        %1616 = vmatprep.subr.bf16.mxu0 0
        %1617 = vmatpush1.bf16.msra.mxu0 0
        %1618 = vmatprep.subr.bf16.mxu0 0
        %1619 = vmatpush1.bf16.msra.mxu0 0
        %1620 = vmatprep.subr.bf16.mxu0 0
        %1621 = vmatpush1.bf16.msra.mxu0 0
        %1622 = vmatprep.mubr.bf16.mxu0 0
        %1623 = vmatmul.mubr.bf16.gmra.mrb[0].mxu0 %v1540
        %v1624 = vpop.f32.mrb[0].mxu0
        %v1625 = vadd.f32 0.0, %v1624
        %v1626 = vpop.f32.mrb[0].mxu0
        %v1627 = vpop.f32.mrb[0].mxu0
        %v1628 = vadd.f32 0.0, %v1627
        %v1629 = vpop.f32.mrb[0].mxu0
        %1630 = vmatprep.mubr.bf16.mxu0 0
        %1631 = vmatmul.mubr.bf16.gmra.mrb[0].mxu0 %v1543
        %v1632 = vpop.f32.mrb[0].mxu0
        %v1633 = vadd.f32 0.0, %v1632
        %v1634 = vpop.f32.mrb[0].mxu0
        %v1635 = vpop.f32.mrb[0].mxu0
        %v1636 = vadd.f32 0.0, %v1635
        %v1637 = vpop.f32.mrb[0].mxu0
        %1638 = vmatprep.mubr.bf16.mxu0 0
        %1639 = vmatmul.mubr.bf16.gmra.mrb[0].mxu0 %v1546
        %v1640 = vpop.f32.mrb[0].mxu0
        %v1641 = vadd.f32 0.0, %v1640
        %v1642 = vpop.f32.mrb[0].mxu0
        %v1643 = vpop.f32.mrb[0].mxu0
        %v1644 = vadd.f32 0.0, %v1643
        %v1645 = vpop.f32.mrb[0].mxu0
        %1646 = vmatprep.mubr.bf16.mxu0 0
        %1647 = vmatmul.mubr.bf16.gmra.mrb[0].mxu0 %v1549
        %v1648 = vpop.f32.mrb[0].mxu0
        %v1649 = vadd.f32 0.0, %v1648
        %v1650 = vpop.f32.mrb[0].mxu0
        %v1651 = vpop.f32.mrb[0].mxu0
        %v1652 = vadd.f32 0.0, %v1651
        %v1653 = vpop.f32.mrb[0].mxu0
        %1654 = vmatprep.mubr.bf16.mxu0 0
        %1655 = vmatmul.mubr.bf16.gmra.mrb[0].mxu0 %v1552
        %v1656 = vpop.f32.mrb[0].mxu0
        %v1657 = vadd.f32 0.0, %v1656
        %v1658 = vpop.f32.mrb[0].mxu0
        %v1659 = vpop.f32.mrb[0].mxu0
        %v1660 = vadd.f32 0.0, %v1659
        %v1661 = vpop.f32.mrb[0].mxu0
        %1662 = vmatprep.mubr.bf16.mxu0 0
        %1663 = vmatmul.mubr.bf16.gmra.mrb[0].mxu0 %v1555
        %v1664 = vpop.f32.mrb[0].mxu0
        %v1665 = vadd.f32 0.0, %v1664
        %v1666 = vpop.f32.mrb[0].mxu0
        %v1667 = vpop.f32.mrb[0].mxu0
        %v1668 = vadd.f32 0.0, %v1667
        %v1669 = vpop.f32.mrb[0].mxu0
        %1670 = vmatprep.mubr.bf16.mxu0 0
        %1671 = vmatmul.mubr.bf16.gmra.mrb[0].mxu0 %v1558
        %v1672 = vpop.f32.mrb[0].mxu0
        %v1673 = vadd.f32 0.0, %v1672
        %v1674 = vpop.f32.mrb[0].mxu0
        %v1675 = vpop.f32.mrb[0].mxu0
        %v1676 = vadd.f32 0.0, %v1675
        %v1677 = vpop.f32.mrb[0].mxu0
        %1678 = vmatprep.mubr.bf16.mxu0 0
        %1679 = vmatmul.mubr.bf16.gmra.mrb[0].mxu0 %v1561
        %v1680 = vpop.f32.mrb[0].mxu0
        %v1681 = vadd.f32 0.0, %v1680
        %v1682 = vpop.f32.mrb[0].mxu0
        %v1683 = vpop.f32.mrb[0].mxu0
        %v1684 = vadd.f32 0.0, %v1683
        %v1685 = vpop.f32.mrb[0].mxu0
        %1686 = vmatprep.mubr.bf16.mxu0 0
        %1687 = vmatmul.mubr.bf16.gmra.mrb[0].mxu0 %v1564
        %v1688 = vpop.f32.mrb[0].mxu0
        %v1689 = vadd.f32 0.0, %v1688
        %v1690 = vpop.f32.mrb[0].mxu0
        %v1691 = vpop.f32.mrb[0].mxu0
        %v1692 = vadd.f32 0.0, %v1691
        %v1693 = vpop.f32.mrb[0].mxu0
        %1694 = vmatprep.mubr.bf16.mxu0 0
        %1695 = vmatmul.mubr.bf16.gmra.mrb[0].mxu0 %v1567
        %v1696 = vpop.f32.mrb[0].mxu0
        %v1697 = vadd.f32 0.0, %v1696
        %v1698 = vpop.f32.mrb[0].mxu0
        %v1699 = vpop.f32.mrb[0].mxu0
        %v1700 = vadd.f32 0.0, %v1699
        %v1701 = vpop.f32.mrb[0].mxu0
        %1702 = vmatprep.mubr.bf16.mxu0 0
        %1703 = vmatmul.mubr.bf16.gmra.mrb[0].mxu0 %v1570
        %v1704 = vpop.f32.mrb[0].mxu0
        %v1705 = vadd.f32 0.0, %v1704
        %v1706 = vpop.f32.mrb[0].mxu0
        %v1707 = vpop.f32.mrb[0].mxu0
        %v1708 = vadd.f32 0.0, %v1707
        %v1709 = vpop.f32.mrb[0].mxu0
        %1710 = vmatprep.mubr.bf16.mxu0 0
        %1711 = vmatmul.mubr.bf16.gmra.mrb[0].mxu0 %v1573
        %v1712 = vpop.f32.mrb[0].mxu0
        %v1713 = vadd.f32 0.0, %v1712
        %v1714 = vpop.f32.mrb[0].mxu0
        %v1715 = vpop.f32.mrb[0].mxu0
        %v1716 = vadd.f32 0.0, %v1715
        %v1717 = vpop.f32.mrb[0].mxu0
        %1718 = vmatprep.mubr.bf16.mxu0 0
        %1719 = vmatmul.mubr.bf16.gmra.mrb[0].mxu0 %v1576
        %v1720 = vpop.f32.mrb[0].mxu0
        %v1721 = vadd.f32 0.0, %v1720
        %v1722 = vpop.f32.mrb[0].mxu0
        %v1723 = vpop.f32.mrb[0].mxu0
        %v1724 = vadd.f32 0.0, %v1723
        %v1725 = vpop.f32.mrb[0].mxu0
        %1726 = vmatprep.mubr.bf16.mxu0 0
        %1727 = vmatmul.mubr.bf16.gmra.mrb[0].mxu0 %v1579
        %v1728 = vpop.f32.mrb[0].mxu0
        %v1729 = vadd.f32 0.0, %v1728
        %v1730 = vpop.f32.mrb[0].mxu0
        %v1731 = vpop.f32.mrb[0].mxu0
        %v1732 = vadd.f32 0.0, %v1731
        %v1733 = vpop.f32.mrb[0].mxu0
        %1734 = vmatprep.mubr.bf16.mxu0 0
        %1735 = vmatmul.mubr.bf16.gmra.mrb[0].mxu0 %v1582
        %v1736 = vpop.f32.mrb[0].mxu0
        %v1737 = vadd.f32 0.0, %v1736
        %v1738 = vpop.f32.mrb[0].mxu0
        %v1739 = vpop.f32.mrb[0].mxu0
        %v1740 = vadd.f32 0.0, %v1739
        %v1741 = vpop.f32.mrb[0].mxu0
        %1742 = vmatprep.mubr.bf16.mxu0 0
        %1743 = vmatmul.mubr.bf16.gmra.mrb[0].mxu0 %v1585
        %v1744 = vpop.f32.mrb[0].mxu0
        %v1745 = vadd.f32 0.0, %v1744
        %v1746 = vpop.f32.mrb[0].mxu0
        %v1747 = vpop.f32.mrb[0].mxu0
        %v1748 = vadd.f32 0.0, %v1747
        %v1749 = vpop.f32.mrb[0].mxu0
        %1750 = vdwg.mxu0
        %v1751 = vadd.f32 %v1226, %v1625
        %v1752 = vadd.f32 %v1229, %v1628
        %v1753 = vadd.f32 %v1234, %v1633
        %v1754 = vadd.f32 %v1237, %v1636
        %v1755 = vadd.f32 %v1242, %v1641
        %v1756 = vadd.f32 %v1245, %v1644
        %v1757 = vadd.f32 %v1250, %v1649
        %v1758 = vadd.f32 %v1253, %v1652
        %v1759 = vadd.f32 %v1258, %v1657
        %v1760 = vadd.f32 %v1261, %v1660
        %v1761 = vadd.f32 %v1266, %v1665
        %v1762 = vadd.f32 %v1269, %v1668
        %v1763 = vadd.f32 %v1274, %v1673
        %v1764 = vadd.f32 %v1277, %v1676
        %v1765 = vadd.f32 %v1282, %v1681
        %v1766 = vadd.f32 %v1285, %v1684
        %v1767 = vadd.f32 %v1290, %v1689
        %v1768 = vadd.f32 %v1293, %v1692
        %v1769 = vadd.f32 %v1298, %v1697
        %v1770 = vadd.f32 %v1301, %v1700
        %v1771 = vadd.f32 %v1306, %v1705
        %v1772 = vadd.f32 %v1309, %v1708
        %v1773 = vadd.f32 %v1314, %v1713
        %v1774 = vadd.f32 %v1317, %v1716
        %v1775 = vadd.f32 %v1322, %v1721
        %v1776 = vadd.f32 %v1325, %v1724
        %v1777 = vadd.f32 %v1330, %v1729
        %v1778 = vadd.f32 %v1333, %v1732
        %v1779 = vadd.f32 %v1338, %v1737
        %v1780 = vadd.f32 %v1341, %v1740
        %v1781 = vadd.f32 %v1346, %v1745
        %v1782 = vadd.f32 %v1349, %v1748
        %s1783 = scalar_lea.vmem [#allocation2], 20
        %v1784 = vld [vmem:[%s1783] sm:$0xf]
        %v1785 = vld [vmem:[%s1783 + $0x4] sm:$0xf]
        %v1786 = vld [vmem:[%s1783 + $0x8] sm:$0xf]
        %v1787 = vld [vmem:[%s1783 + $0xc] sm:$0xf]
        %v1788 = vld [vmem:[%s1783 + $0x14] sm:$0xf]
        %v1789 = vld [vmem:[%s1783 + $0x18] sm:$0xf]
        %v1790 = vld [vmem:[%s1783 + $0x1c] sm:$0xf]
        %v1791 = vld [vmem:[%s1783 + $0x20] sm:$0xf]
        %v1792 = vld [vmem:[%s1783 + $0x28] sm:$0xf]
        %v1793 = vld [vmem:[%s1783 + $0x2c] sm:$0xf]
        %v1794 = vld [vmem:[%s1783 + $0x30] sm:$0xf]
        %v1795 = vld [vmem:[%s1783 + $0x34] sm:$0xf]
        %v1796 = vld [vmem:[%s1783 + $0x3c] sm:$0xf]
        %v1797 = vld [vmem:[%s1783 + $0x40] sm:$0xf]
        %v1798 = vld [vmem:[%s1783 + $0x44] sm:$0xf]
        %v1799 = vld [vmem:[%s1783 + $0x48] sm:$0xf]
        %v1800 = vld [vmem:[%s1783 + $0x50] sm:$0xf]
        %v1801 = vld [vmem:[%s1783 + $0x54] sm:$0xf]
        %v1802 = vld [vmem:[%s1783 + $0x58] sm:$0xf]
        %v1803 = vld [vmem:[%s1783 + $0x5c] sm:$0xf]
        %v1804 = vld [vmem:[%s1783 + $0x64] sm:$0xf]
        %v1805 = vld [vmem:[%s1783 + $0x68] sm:$0xf]
        %v1806 = vld [vmem:[%s1783 + $0x6c] sm:$0xf]
        %v1807 = vld [vmem:[%s1783 + $0x70] sm:$0xf]
        %v1808 = vld [vmem:[%s1783 + $0x78] sm:$0xf]
        %v1809 = vld [vmem:[%s1783 + $0x7c] sm:$0xf]
        %v1810 = vld [vmem:[%s1783 + $0x80] sm:$0xf]
        %v1811 = vld [vmem:[%s1783 + $0x84] sm:$0xf]
        %v1812 = vld [vmem:[%s1783 + $0x8c] sm:$0xf]
        %v1813 = vld [vmem:[%s1783 + $0x90] sm:$0xf]
        %v1814 = vld [vmem:[%s1783 + $0x94] sm:$0xf]
        %v1815 = vld [vmem:[%s1783 + $0x98] sm:$0xf]
        %v1816 = vld [vmem:[%s2 + $0x4] sm:$0x3]
        %v1849 = vunpack.c.l.b16 %v1784
        %v1850 = vunpack.c.l.b16 %v1785
        %v1851 = vunpack.c.l.b16 %v1786
        %v1852 = vunpack.c.l.b16 %v1787
        %v1853 = vunpack.c.l.b16 %v1788
        %v1854 = vunpack.c.l.b16 %v1789
        %v1855 = vunpack.c.l.b16 %v1790
        %v1856 = vunpack.c.l.b16 %v1791
        %v1857 = vunpack.c.l.b16 %v1792
        %v1858 = vunpack.c.l.b16 %v1793
        %v1859 = vunpack.c.l.b16 %v1794
        %v1860 = vunpack.c.l.b16 %v1795
        %v1861 = vunpack.c.l.b16 %v1796
        %v1862 = vunpack.c.l.b16 %v1797
        %v1863 = vunpack.c.l.b16 %v1798
        %v1864 = vunpack.c.l.b16 %v1799
        %v1865 = vunpack.c.l.b16 %v1800
        %v1866 = vunpack.c.l.b16 %v1801
        %v1867 = vunpack.c.l.b16 %v1802
        %v1868 = vunpack.c.l.b16 %v1803
        %v1869 = vunpack.c.l.b16 %v1804
        %v1870 = vunpack.c.l.b16 %v1805
        %v1871 = vunpack.c.l.b16 %v1806
        %v1872 = vunpack.c.l.b16 %v1807
        %v1873 = vunpack.c.l.b16 %v1808
        %v1874 = vunpack.c.l.b16 %v1809
        %v1875 = vunpack.c.l.b16 %v1810
        %v1876 = vunpack.c.l.b16 %v1811
        %v1877 = vunpack.c.l.b16 %v1812
        %v1878 = vunpack.c.l.b16 %v1813
        %v1879 = vunpack.c.l.b16 %v1814
        %v1880 = vunpack.c.l.b16 %v1815
        %v1881 = vpack.c.b16 %v1850, %v1849
        %v1882 = vpack.c.b16 %v1852, %v1851
        %v1883 = vpack.c.b16 %v1854, %v1853
        %v1884 = vpack.c.b16 %v1856, %v1855
        %v1885 = vpack.c.b16 %v1858, %v1857
        %v1886 = vpack.c.b16 %v1860, %v1859
        %v1887 = vpack.c.b16 %v1862, %v1861
        %v1888 = vpack.c.b16 %v1864, %v1863
        %v1889 = vpack.c.b16 %v1866, %v1865
        %v1890 = vpack.c.b16 %v1868, %v1867
        %v1891 = vpack.c.b16 %v1870, %v1869
        %v1892 = vpack.c.b16 %v1872, %v1871
        %v1893 = vpack.c.b16 %v1874, %v1873
        %v1894 = vpack.c.b16 %v1876, %v1875
        %v1895 = vpack.c.b16 %v1878, %v1877
        %v1896 = vpack.c.b16 %v1880, %v1879
        %v1898 = vunpack.c.l.b16 %v1816
        %v1899 = vpack.c.b16 %v1898, %v1898
        %v1901 = vshrl.u32 %v1899, 16
        %v1903 = vshll.u32 %v1899, 16
        %v1905 = vrot.slane %v1903, 1
        %v1906 = vor.u32 %v1901, %v1905
        %v1908 = vsel %vm843, %v1881, 0
        %v1911 = vsel %vm843, %v1882, 0
        %v1914 = vsel %vm843, %v1883, 0
        %v1917 = vsel %vm843, %v1884, 0
        %v1920 = vsel %vm843, %v1885, 0
        %v1923 = vsel %vm843, %v1886, 0
        %v1926 = vsel %vm843, %v1887, 0
        %v1929 = vsel %vm843, %v1888, 0
        %v1932 = vsel %vm843, %v1889, 0
        %v1935 = vsel %vm843, %v1890, 0
        %v1938 = vsel %vm843, %v1891, 0
        %v1941 = vsel %vm843, %v1892, 0
        %v1944 = vsel %vm843, %v1893, 0
        %v1947 = vsel %vm843, %v1894, 0
        %v1950 = vsel %vm843, %v1895, 0
        %v1953 = vsel %vm843, %v1896, 0
        %v1956 = vand.u32 %v1906, %v895
        %1958 = vmatprep.subr.bf16.mxu0 0
        %1959 = vmatpush1.bf16.msra.mxu0 %v1956
        %1960 = vmatprep.subr.bf16.mxu0 0
        %1961 = vmatpush1.bf16.msra.mxu0 0
        %1962 = vmatprep.subr.bf16.mxu0 0
        %1963 = vmatpush1.bf16.msra.mxu0 0
        %1964 = vmatprep.subr.bf16.mxu0 0
        %1965 = vmatpush1.bf16.msra.mxu0 0
        %1966 = vmatprep.subr.bf16.mxu0 0
        %1967 = vmatpush1.bf16.msra.mxu0 0
        %1968 = vmatprep.subr.bf16.mxu0 0
        %1969 = vmatpush1.bf16.msra.mxu0 0
        %1970 = vmatprep.subr.bf16.mxu0 0
        %1971 = vmatpush1.bf16.msra.mxu0 0
        %1972 = vmatprep.subr.bf16.mxu0 0
        %1973 = vmatpush1.bf16.msra.mxu0 0
        %1974 = vmatprep.subr.bf16.mxu0 0
        %1975 = vmatpush1.bf16.msra.mxu0 0
        %1976 = vmatprep.subr.bf16.mxu0 0
        %1977 = vmatpush1.bf16.msra.mxu0 0
        %1978 = vmatprep.subr.bf16.mxu0 0
        %1979 = vmatpush1.bf16.msra.mxu0 0
        %1980 = vmatprep.subr.bf16.mxu0 0
        %1981 = vmatpush1.bf16.msra.mxu0 0
        %1982 = vmatprep.subr.bf16.mxu0 0
        %1983 = vmatpush1.bf16.msra.mxu0 0
        %1984 = vmatprep.subr.bf16.mxu0 0
        %1985 = vmatpush1.bf16.msra.mxu0 0
        %1986 = vmatprep.subr.bf16.mxu0 0
        %1987 = vmatpush1.bf16.msra.mxu0 0
        %1988 = vmatprep.subr.bf16.mxu0 0
        %1989 = vmatpush1.bf16.msra.mxu0 0
        %1990 = vmatprep.mubr.bf16.mxu0 0
        %1991 = vmatmul.mubr.bf16.gmra.mrb[0].mxu0 %v1908
        %v1992 = vpop.f32.mrb[0].mxu0
        %v1993 = vadd.f32 0.0, %v1992
        %v1994 = vpop.f32.mrb[0].mxu0
        %v1995 = vpop.f32.mrb[0].mxu0
        %v1996 = vadd.f32 0.0, %v1995
        %v1997 = vpop.f32.mrb[0].mxu0
        %1998 = vmatprep.mubr.bf16.mxu0 0
        %1999 = vmatmul.mubr.bf16.gmra.mrb[0].mxu0 %v1911
        %v2000 = vpop.f32.mrb[0].mxu0
        %v2001 = vadd.f32 0.0, %v2000
        %v2002 = vpop.f32.mrb[0].mxu0
        %v2003 = vpop.f32.mrb[0].mxu0
        %v2004 = vadd.f32 0.0, %v2003
        %v2005 = vpop.f32.mrb[0].mxu0
        %2006 = vmatprep.mubr.bf16.mxu0 0
        %2007 = vmatmul.mubr.bf16.gmra.mrb[0].mxu0 %v1914
        %v2008 = vpop.f32.mrb[0].mxu0
        %v2009 = vadd.f32 0.0, %v2008
        %v2010 = vpop.f32.mrb[0].mxu0
        %v2011 = vpop.f32.mrb[0].mxu0
        %v2012 = vadd.f32 0.0, %v2011
        %v2013 = vpop.f32.mrb[0].mxu0
        %2014 = vmatprep.mubr.bf16.mxu0 0
        %2015 = vmatmul.mubr.bf16.gmra.mrb[0].mxu0 %v1917
        %v2016 = vpop.f32.mrb[0].mxu0
        %v2017 = vadd.f32 0.0, %v2016
        %v2018 = vpop.f32.mrb[0].mxu0
        %v2019 = vpop.f32.mrb[0].mxu0
        %v2020 = vadd.f32 0.0, %v2019
        %v2021 = vpop.f32.mrb[0].mxu0
        %2022 = vmatprep.mubr.bf16.mxu0 0
        %2023 = vmatmul.mubr.bf16.gmra.mrb[0].mxu0 %v1920
        %v2024 = vpop.f32.mrb[0].mxu0
        %v2025 = vadd.f32 0.0, %v2024
        %v2026 = vpop.f32.mrb[0].mxu0
        %v2027 = vpop.f32.mrb[0].mxu0
        %v2028 = vadd.f32 0.0, %v2027
        %v2029 = vpop.f32.mrb[0].mxu0
        %2030 = vmatprep.mubr.bf16.mxu0 0
        %2031 = vmatmul.mubr.bf16.gmra.mrb[0].mxu0 %v1923
        %v2032 = vpop.f32.mrb[0].mxu0
        %v2033 = vadd.f32 0.0, %v2032
        %v2034 = vpop.f32.mrb[0].mxu0
        %v2035 = vpop.f32.mrb[0].mxu0
        %v2036 = vadd.f32 0.0, %v2035
        %v2037 = vpop.f32.mrb[0].mxu0
        %2038 = vmatprep.mubr.bf16.mxu0 0
        %2039 = vmatmul.mubr.bf16.gmra.mrb[0].mxu0 %v1926
        %v2040 = vpop.f32.mrb[0].mxu0
        %v2041 = vadd.f32 0.0, %v2040
        %v2042 = vpop.f32.mrb[0].mxu0
        %v2043 = vpop.f32.mrb[0].mxu0
        %v2044 = vadd.f32 0.0, %v2043
        %v2045 = vpop.f32.mrb[0].mxu0
        %2046 = vmatprep.mubr.bf16.mxu0 0
        %2047 = vmatmul.mubr.bf16.gmra.mrb[0].mxu0 %v1929
        %v2048 = vpop.f32.mrb[0].mxu0
        %v2049 = vadd.f32 0.0, %v2048
        %v2050 = vpop.f32.mrb[0].mxu0
        %v2051 = vpop.f32.mrb[0].mxu0
        %v2052 = vadd.f32 0.0, %v2051
        %v2053 = vpop.f32.mrb[0].mxu0
        %2054 = vmatprep.mubr.bf16.mxu0 0
        %2055 = vmatmul.mubr.bf16.gmra.mrb[0].mxu0 %v1932
        %v2056 = vpop.f32.mrb[0].mxu0
        %v2057 = vadd.f32 0.0, %v2056
        %v2058 = vpop.f32.mrb[0].mxu0
        %v2059 = vpop.f32.mrb[0].mxu0
        %v2060 = vadd.f32 0.0, %v2059
        %v2061 = vpop.f32.mrb[0].mxu0
        %2062 = vmatprep.mubr.bf16.mxu0 0
        %2063 = vmatmul.mubr.bf16.gmra.mrb[0].mxu0 %v1935
        %v2064 = vpop.f32.mrb[0].mxu0
        %v2065 = vadd.f32 0.0, %v2064
        %v2066 = vpop.f32.mrb[0].mxu0
        %v2067 = vpop.f32.mrb[0].mxu0
        %v2068 = vadd.f32 0.0, %v2067
        %v2069 = vpop.f32.mrb[0].mxu0
        %2070 = vmatprep.mubr.bf16.mxu0 0
        %2071 = vmatmul.mubr.bf16.gmra.mrb[0].mxu0 %v1938
        %v2072 = vpop.f32.mrb[0].mxu0
        %v2073 = vadd.f32 0.0, %v2072
        %v2074 = vpop.f32.mrb[0].mxu0
        %v2075 = vpop.f32.mrb[0].mxu0
        %v2076 = vadd.f32 0.0, %v2075
        %v2077 = vpop.f32.mrb[0].mxu0
        %2078 = vmatprep.mubr.bf16.mxu0 0
        %2079 = vmatmul.mubr.bf16.gmra.mrb[0].mxu0 %v1941
        %v2080 = vpop.f32.mrb[0].mxu0
        %v2081 = vadd.f32 0.0, %v2080
        %v2082 = vpop.f32.mrb[0].mxu0
        %v2083 = vpop.f32.mrb[0].mxu0
        %v2084 = vadd.f32 0.0, %v2083
        %v2085 = vpop.f32.mrb[0].mxu0
        %2086 = vmatprep.mubr.bf16.mxu0 0
        %2087 = vmatmul.mubr.bf16.gmra.mrb[0].mxu0 %v1944
        %v2088 = vpop.f32.mrb[0].mxu0
        %v2089 = vadd.f32 0.0, %v2088
        %v2090 = vpop.f32.mrb[0].mxu0
        %v2091 = vpop.f32.mrb[0].mxu0
        %v2092 = vadd.f32 0.0, %v2091
        %v2093 = vpop.f32.mrb[0].mxu0
        %2094 = vmatprep.mubr.bf16.mxu0 0
        %2095 = vmatmul.mubr.bf16.gmra.mrb[0].mxu0 %v1947
        %v2096 = vpop.f32.mrb[0].mxu0
        %v2097 = vadd.f32 0.0, %v2096
        %v2098 = vpop.f32.mrb[0].mxu0
        %v2099 = vpop.f32.mrb[0].mxu0
        %v2100 = vadd.f32 0.0, %v2099
        %v2101 = vpop.f32.mrb[0].mxu0
        %2102 = vmatprep.mubr.bf16.mxu0 0
        %2103 = vmatmul.mubr.bf16.gmra.mrb[0].mxu0 %v1950
        %v2104 = vpop.f32.mrb[0].mxu0
        %v2105 = vadd.f32 0.0, %v2104
        %v2106 = vpop.f32.mrb[0].mxu0
        %v2107 = vpop.f32.mrb[0].mxu0
        %v2108 = vadd.f32 0.0, %v2107
        %v2109 = vpop.f32.mrb[0].mxu0
        %2110 = vmatprep.mubr.bf16.mxu0 0
        %2111 = vmatmul.mubr.bf16.gmra.mrb[0].mxu0 %v1953
        %v2112 = vpop.f32.mrb[0].mxu0
        %v2113 = vadd.f32 0.0, %v2112
        %v2114 = vpop.f32.mrb[0].mxu0
        %v2115 = vpop.f32.mrb[0].mxu0
        %v2116 = vadd.f32 0.0, %v2115
        %v2117 = vpop.f32.mrb[0].mxu0
        %2118 = vdwg.mxu0
        %v2119 = vadd.f32 %v1751, %v1993
        %v2120 = vadd.f32 %v1752, %v1996
        %v2121 = vadd.f32 %v1753, %v2001
        %v2122 = vadd.f32 %v1754, %v2004
        %v2123 = vadd.f32 %v1755, %v2009
        %v2124 = vadd.f32 %v1756, %v2012
        %v2125 = vadd.f32 %v1757, %v2017
        %v2126 = vadd.f32 %v1758, %v2020
        %v2127 = vadd.f32 %v1759, %v2025
        %v2128 = vadd.f32 %v1760, %v2028
        %v2129 = vadd.f32 %v1761, %v2033
        %v2130 = vadd.f32 %v1762, %v2036
        %v2131 = vadd.f32 %v1763, %v2041
        %v2132 = vadd.f32 %v1764, %v2044
        %v2133 = vadd.f32 %v1765, %v2049
        %v2134 = vadd.f32 %v1766, %v2052
        %v2135 = vadd.f32 %v1767, %v2057
        %v2136 = vadd.f32 %v1768, %v2060
        %v2137 = vadd.f32 %v1769, %v2065
        %v2138 = vadd.f32 %v1770, %v2068
        %v2139 = vadd.f32 %v1771, %v2073
        %v2140 = vadd.f32 %v1772, %v2076
        %v2141 = vadd.f32 %v1773, %v2081
        %v2142 = vadd.f32 %v1774, %v2084
        %v2143 = vadd.f32 %v1775, %v2089
        %v2144 = vadd.f32 %v1776, %v2092
        %v2145 = vadd.f32 %v1777, %v2097
        %v2146 = vadd.f32 %v1778, %v2100
        %v2147 = vadd.f32 %v1779, %v2105
        %v2148 = vadd.f32 %v1780, %v2108
        %v2149 = vadd.f32 %v1781, %v2113
        %v2150 = vadd.f32 %v1782, %v2116
        %v2151 = vld [vmem:[%s1783] sm:$0xf]
        %v2152 = vld [vmem:[%s1783 + $0x4] sm:$0xf]
        %v2153 = vld [vmem:[%s1783 + $0x8] sm:$0xf]
        %v2154 = vld [vmem:[%s1783 + $0xc] sm:$0xf]
        %v2155 = vld [vmem:[%s1783 + $0x10] sm:$0x1]
        %v2156 = vld [vmem:[%s1783 + $0x14] sm:$0xf]
        %v2157 = vld [vmem:[%s1783 + $0x18] sm:$0xf]
        %v2158 = vld [vmem:[%s1783 + $0x1c] sm:$0xf]
        %v2159 = vld [vmem:[%s1783 + $0x20] sm:$0xf]
        %v2160 = vld [vmem:[%s1783 + $0x24] sm:$0x1]
        %v2161 = vld [vmem:[%s1783 + $0x28] sm:$0xf]
        %v2162 = vld [vmem:[%s1783 + $0x2c] sm:$0xf]
        %v2163 = vld [vmem:[%s1783 + $0x30] sm:$0xf]
        %v2164 = vld [vmem:[%s1783 + $0x34] sm:$0xf]
        %v2165 = vld [vmem:[%s1783 + $0x38] sm:$0x1]
        %v2166 = vld [vmem:[%s1783 + $0x3c] sm:$0xf]
        %v2167 = vld [vmem:[%s1783 + $0x40] sm:$0xf]
        %v2168 = vld [vmem:[%s1783 + $0x44] sm:$0xf]
        %v2169 = vld [vmem:[%s1783 + $0x48] sm:$0xf]
        %v2170 = vld [vmem:[%s1783 + $0x4c] sm:$0x1]
        %v2171 = vld [vmem:[%s1783 + $0x50] sm:$0xf]
        %v2172 = vld [vmem:[%s1783 + $0x54] sm:$0xf]
        %v2173 = vld [vmem:[%s1783 + $0x58] sm:$0xf]
        %v2174 = vld [vmem:[%s1783 + $0x5c] sm:$0xf]
        %v2175 = vld [vmem:[%s1783 + $0x60] sm:$0x1]
        %v2176 = vld [vmem:[%s1783 + $0x64] sm:$0xf]
        %v2177 = vld [vmem:[%s1783 + $0x68] sm:$0xf]
        %v2178 = vld [vmem:[%s1783 + $0x6c] sm:$0xf]
        %v2179 = vld [vmem:[%s1783 + $0x70] sm:$0xf]
        %v2180 = vld [vmem:[%s1783 + $0x74] sm:$0x1]
        %v2181 = vld [vmem:[%s1783 + $0x78] sm:$0xf]
        %v2182 = vld [vmem:[%s1783 + $0x7c] sm:$0xf]
        %v2183 = vld [vmem:[%s1783 + $0x80] sm:$0xf]
        %v2184 = vld [vmem:[%s1783 + $0x84] sm:$0xf]
        %v2185 = vld [vmem:[%s1783 + $0x88] sm:$0x1]
        %v2186 = vld [vmem:[%s1783 + $0x8c] sm:$0xf]
        %v2187 = vld [vmem:[%s1783 + $0x90] sm:$0xf]
        %v2188 = vld [vmem:[%s1783 + $0x94] sm:$0xf]
        %v2189 = vld [vmem:[%s1783 + $0x98] sm:$0xf]
        %v2190 = vld [vmem:[%s1783 + $0x9c] sm:$0x1]
        %v2192 = vshrl.u32 %v2151, 16
        %v2194 = vrot.slane %v2192, 4
        %v2195 = vshll.u32 %v2151, 16
        %v2197 = vrot.slane %v2195, 5
        %v2198 = vor.u32 %v2194, %v2197
        %v2199 = vrot.slane %v2198, 4
        %v2201 = vshll.u32 %v2152, 16
        %v2203 = vrot.slane %v2201, 5
        %v2204 = vsel %vm430, %v2199, %v2203
        %v2205 = vshrl.u32 %v2152, 16
        %v2207 = vrot.slane %v2205, 4
        %v2208 = vor.u32 %v2207, %v2203
        %v2209 = vrot.slane %v2208, 4
        %v2211 = vshll.u32 %v2153, 16
        %v2213 = vrot.slane %v2211, 5
        %v2214 = vsel %vm430, %v2209, %v2213
        %v2215 = vshrl.u32 %v2153, 16
        %v2217 = vrot.slane %v2215, 4
        %v2218 = vor.u32 %v2217, %v2213
        %v2219 = vrot.slane %v2218, 4
        %v2221 = vshll.u32 %v2154, 16
        %v2223 = vrot.slane %v2221, 5
        %v2224 = vsel %vm430, %v2219, %v2223
        %v2225 = vshrl.u32 %v2154, 16
        %v2227 = vrot.slane %v2225, 4
        %v2228 = vor.u32 %v2227, %v2223
        %v2229 = vrot.slane %v2228, 4
        %v2231 = vshll.u32 %v2155, 16
        %v2233 = vrot.slane %v2231, 5
        %v2234 = vsel %vm430, %v2229, %v2233
        %v2236 = vshrl.u32 %v2156, 16
        %v2238 = vrot.slane %v2236, 4
        %v2239 = vshll.u32 %v2156, 16
        %v2241 = vrot.slane %v2239, 5
        %v2242 = vor.u32 %v2238, %v2241
        %v2243 = vrot.slane %v2242, 4
        %v2245 = vshll.u32 %v2157, 16
        %v2247 = vrot.slane %v2245, 5
        %v2248 = vsel %vm430, %v2243, %v2247
        %v2249 = vshrl.u32 %v2157, 16
        %v2251 = vrot.slane %v2249, 4
        %v2252 = vor.u32 %v2251, %v2247
        %v2253 = vrot.slane %v2252, 4
        %v2255 = vshll.u32 %v2158, 16
        %v2257 = vrot.slane %v2255, 5
        %v2258 = vsel %vm430, %v2253, %v2257
        %v2259 = vshrl.u32 %v2158, 16
        %v2261 = vrot.slane %v2259, 4
        %v2262 = vor.u32 %v2261, %v2257
        %v2263 = vrot.slane %v2262, 4
        %v2265 = vshll.u32 %v2159, 16
        %v2267 = vrot.slane %v2265, 5
        %v2268 = vsel %vm430, %v2263, %v2267
        %v2269 = vshrl.u32 %v2159, 16
        %v2271 = vrot.slane %v2269, 4
        %v2272 = vor.u32 %v2271, %v2267
        %v2273 = vrot.slane %v2272, 4
        %v2275 = vshll.u32 %v2160, 16
        %v2277 = vrot.slane %v2275, 5
        %v2278 = vsel %vm430, %v2273, %v2277
        %v2280 = vshrl.u32 %v2161, 16
        %v2282 = vrot.slane %v2280, 4
        %v2283 = vshll.u32 %v2161, 16
        %v2285 = vrot.slane %v2283, 5
        %v2286 = vor.u32 %v2282, %v2285
        %v2287 = vrot.slane %v2286, 4
        %v2289 = vshll.u32 %v2162, 16
        %v2291 = vrot.slane %v2289, 5
        %v2292 = vsel %vm430, %v2287, %v2291
        %v2293 = vshrl.u32 %v2162, 16
        %v2295 = vrot.slane %v2293, 4
        %v2296 = vor.u32 %v2295, %v2291
        %v2297 = vrot.slane %v2296, 4
        %v2299 = vshll.u32 %v2163, 16
        %v2301 = vrot.slane %v2299, 5
        %v2302 = vsel %vm430, %v2297, %v2301
        %v2303 = vshrl.u32 %v2163, 16
        %v2305 = vrot.slane %v2303, 4
        %v2306 = vor.u32 %v2305, %v2301
        %v2307 = vrot.slane %v2306, 4
        %v2309 = vshll.u32 %v2164, 16
        %v2311 = vrot.slane %v2309, 5
        %v2312 = vsel %vm430, %v2307, %v2311
        %v2313 = vshrl.u32 %v2164, 16
        %v2315 = vrot.slane %v2313, 4
        %v2316 = vor.u32 %v2315, %v2311
        %v2317 = vrot.slane %v2316, 4
        %v2319 = vshll.u32 %v2165, 16
        %v2321 = vrot.slane %v2319, 5
        %v2322 = vsel %vm430, %v2317, %v2321
        %v2324 = vshrl.u32 %v2166, 16
        %v2326 = vrot.slane %v2324, 4
        %v2327 = vshll.u32 %v2166, 16
        %v2329 = vrot.slane %v2327, 5
        %v2330 = vor.u32 %v2326, %v2329
        %v2331 = vrot.slane %v2330, 4
        %v2333 = vshll.u32 %v2167, 16
        %v2335 = vrot.slane %v2333, 5
        %v2336 = vsel %vm430, %v2331, %v2335
        %v2337 = vshrl.u32 %v2167, 16
        %v2339 = vrot.slane %v2337, 4
        %v2340 = vor.u32 %v2339, %v2335
        %v2341 = vrot.slane %v2340, 4
        %v2343 = vshll.u32 %v2168, 16
        %v2345 = vrot.slane %v2343, 5
        %v2346 = vsel %vm430, %v2341, %v2345
        %v2347 = vshrl.u32 %v2168, 16
        %v2349 = vrot.slane %v2347, 4
        %v2350 = vor.u32 %v2349, %v2345
        %v2351 = vrot.slane %v2350, 4
        %v2353 = vshll.u32 %v2169, 16
        %v2355 = vrot.slane %v2353, 5
        %v2356 = vsel %vm430, %v2351, %v2355
        %v2357 = vshrl.u32 %v2169, 16
        %v2359 = vrot.slane %v2357, 4
        %v2360 = vor.u32 %v2359, %v2355
        %v2361 = vrot.slane %v2360, 4
        %v2363 = vshll.u32 %v2170, 16
        %v2365 = vrot.slane %v2363, 5
        %v2366 = vsel %vm430, %v2361, %v2365
        %v2368 = vshrl.u32 %v2171, 16
        %v2370 = vrot.slane %v2368, 4
        %v2371 = vshll.u32 %v2171, 16
        %v2373 = vrot.slane %v2371, 5
        %v2374 = vor.u32 %v2370, %v2373
        %v2375 = vrot.slane %v2374, 4
        %v2377 = vshll.u32 %v2172, 16
        %v2379 = vrot.slane %v2377, 5
        %v2380 = vsel %vm430, %v2375, %v2379
        %v2381 = vshrl.u32 %v2172, 16
        %v2383 = vrot.slane %v2381, 4
        %v2384 = vor.u32 %v2383, %v2379
        %v2385 = vrot.slane %v2384, 4
        %v2387 = vshll.u32 %v2173, 16
        %v2389 = vrot.slane %v2387, 5
        %v2390 = vsel %vm430, %v2385, %v2389
        %v2391 = vshrl.u32 %v2173, 16
        %v2393 = vrot.slane %v2391, 4
        %v2394 = vor.u32 %v2393, %v2389
        %v2395 = vrot.slane %v2394, 4
        %v2397 = vshll.u32 %v2174, 16
        %v2399 = vrot.slane %v2397, 5
        %v2400 = vsel %vm430, %v2395, %v2399
        %v2401 = vshrl.u32 %v2174, 16
        %v2403 = vrot.slane %v2401, 4
        %v2404 = vor.u32 %v2403, %v2399
        %v2405 = vrot.slane %v2404, 4
        %v2407 = vshll.u32 %v2175, 16
        %v2409 = vrot.slane %v2407, 5
        %v2410 = vsel %vm430, %v2405, %v2409
        %v2412 = vshrl.u32 %v2176, 16
        %v2414 = vrot.slane %v2412, 4
        %v2415 = vshll.u32 %v2176, 16
        %v2417 = vrot.slane %v2415, 5
        %v2418 = vor.u32 %v2414, %v2417
        %v2419 = vrot.slane %v2418, 4
        %v2421 = vshll.u32 %v2177, 16
        %v2423 = vrot.slane %v2421, 5
        %v2424 = vsel %vm430, %v2419, %v2423
        %v2425 = vshrl.u32 %v2177, 16
        %v2427 = vrot.slane %v2425, 4
        %v2428 = vor.u32 %v2427, %v2423
        %v2429 = vrot.slane %v2428, 4
        %v2431 = vshll.u32 %v2178, 16
        %v2433 = vrot.slane %v2431, 5
        %v2434 = vsel %vm430, %v2429, %v2433
        %v2435 = vshrl.u32 %v2178, 16
        %v2437 = vrot.slane %v2435, 4
        %v2438 = vor.u32 %v2437, %v2433
        %v2439 = vrot.slane %v2438, 4
        %v2441 = vshll.u32 %v2179, 16
        %v2443 = vrot.slane %v2441, 5
        %v2444 = vsel %vm430, %v2439, %v2443
        %v2445 = vshrl.u32 %v2179, 16
        %v2447 = vrot.slane %v2445, 4
        %v2448 = vor.u32 %v2447, %v2443
        %v2449 = vrot.slane %v2448, 4
        %v2451 = vshll.u32 %v2180, 16
        %v2453 = vrot.slane %v2451, 5
        %v2454 = vsel %vm430, %v2449, %v2453
        %v2456 = vshrl.u32 %v2181, 16
        %v2458 = vrot.slane %v2456, 4
        %v2459 = vshll.u32 %v2181, 16
        %v2461 = vrot.slane %v2459, 5
        %v2462 = vor.u32 %v2458, %v2461
        %v2463 = vrot.slane %v2462, 4
        %v2465 = vshll.u32 %v2182, 16
        %v2467 = vrot.slane %v2465, 5
        %v2468 = vsel %vm430, %v2463, %v2467
        %v2469 = vshrl.u32 %v2182, 16
        %v2471 = vrot.slane %v2469, 4
        %v2472 = vor.u32 %v2471, %v2467
        %v2473 = vrot.slane %v2472, 4
        %v2475 = vshll.u32 %v2183, 16
        %v2477 = vrot.slane %v2475, 5
        %v2478 = vsel %vm430, %v2473, %v2477
        %v2479 = vshrl.u32 %v2183, 16
        %v2481 = vrot.slane %v2479, 4
        %v2482 = vor.u32 %v2481, %v2477
        %v2483 = vrot.slane %v2482, 4
        %v2485 = vshll.u32 %v2184, 16
        %v2487 = vrot.slane %v2485, 5
        %v2488 = vsel %vm430, %v2483, %v2487
        %v2489 = vshrl.u32 %v2184, 16
        %v2491 = vrot.slane %v2489, 4
        %v2492 = vor.u32 %v2491, %v2487
        %v2493 = vrot.slane %v2492, 4
        %v2495 = vshll.u32 %v2185, 16
        %v2497 = vrot.slane %v2495, 5
        %v2498 = vsel %vm430, %v2493, %v2497
        %v2500 = vshrl.u32 %v2186, 16
        %v2502 = vrot.slane %v2500, 4
        %v2503 = vshll.u32 %v2186, 16
        %v2505 = vrot.slane %v2503, 5
        %v2506 = vor.u32 %v2502, %v2505
        %v2507 = vrot.slane %v2506, 4
        %v2509 = vshll.u32 %v2187, 16
        %v2511 = vrot.slane %v2509, 5
        %v2512 = vsel %vm430, %v2507, %v2511
        %v2513 = vshrl.u32 %v2187, 16
        %v2515 = vrot.slane %v2513, 4
        %v2516 = vor.u32 %v2515, %v2511
        %v2517 = vrot.slane %v2516, 4
        %v2519 = vshll.u32 %v2188, 16
        %v2521 = vrot.slane %v2519, 5
        %v2522 = vsel %vm430, %v2517, %v2521
        %v2523 = vshrl.u32 %v2188, 16
        %v2525 = vrot.slane %v2523, 4
        %v2526 = vor.u32 %v2525, %v2521
        %v2527 = vrot.slane %v2526, 4
        %v2529 = vshll.u32 %v2189, 16
        %v2531 = vrot.slane %v2529, 5
        %v2532 = vsel %vm430, %v2527, %v2531
        %v2533 = vshrl.u32 %v2189, 16
        %v2535 = vrot.slane %v2533, 4
        %v2536 = vor.u32 %v2535, %v2531
        %v2537 = vrot.slane %v2536, 4
        %v2539 = vshll.u32 %v2190, 16
        %v2541 = vrot.slane %v2539, 5
        %v2542 = vsel %vm430, %v2537, %v2541
        %v2543 = vld [vmem:[%s2 + $0x4] sm:$0xc]
        %v2544 = vunpack.c.l.b16 %v2204
        %v2545 = vunpack.c.l.b16 %v2214
        %v2546 = vunpack.c.l.b16 %v2224
        %v2547 = vunpack.c.l.b16 %v2234
        %v2548 = vunpack.c.l.b16 %v2248
        %v2549 = vunpack.c.l.b16 %v2258
        %v2550 = vunpack.c.l.b16 %v2268
        %v2551 = vunpack.c.l.b16 %v2278
        %v2552 = vunpack.c.l.b16 %v2292
        %v2553 = vunpack.c.l.b16 %v2302
        %v2554 = vunpack.c.l.b16 %v2312
        %v2555 = vunpack.c.l.b16 %v2322
        %v2556 = vunpack.c.l.b16 %v2336
        %v2557 = vunpack.c.l.b16 %v2346
        %v2558 = vunpack.c.l.b16 %v2356
        %v2559 = vunpack.c.l.b16 %v2366
        %v2560 = vunpack.c.l.b16 %v2380
        %v2561 = vunpack.c.l.b16 %v2390
        %v2562 = vunpack.c.l.b16 %v2400
        %v2563 = vunpack.c.l.b16 %v2410
        %v2564 = vunpack.c.l.b16 %v2424
        %v2565 = vunpack.c.l.b16 %v2434
        %v2566 = vunpack.c.l.b16 %v2444
        %v2567 = vunpack.c.l.b16 %v2454
        %v2568 = vunpack.c.l.b16 %v2468
        %v2569 = vunpack.c.l.b16 %v2478
        %v2570 = vunpack.c.l.b16 %v2488
        %v2571 = vunpack.c.l.b16 %v2498
        %v2572 = vunpack.c.l.b16 %v2512
        %v2573 = vunpack.c.l.b16 %v2522
        %v2574 = vunpack.c.l.b16 %v2532
        %v2575 = vunpack.c.l.b16 %v2542
        %v2576 = vpack.c.b16 %v2545, %v2544
        %v2577 = vpack.c.b16 %v2547, %v2546
        %v2578 = vpack.c.b16 %v2549, %v2548
        %v2579 = vpack.c.b16 %v2551, %v2550
        %v2580 = vpack.c.b16 %v2553, %v2552
        %v2581 = vpack.c.b16 %v2555, %v2554
        %v2582 = vpack.c.b16 %v2557, %v2556
        %v2583 = vpack.c.b16 %v2559, %v2558
        %v2584 = vpack.c.b16 %v2561, %v2560
        %v2585 = vpack.c.b16 %v2563, %v2562
        %v2586 = vpack.c.b16 %v2565, %v2564
        %v2587 = vpack.c.b16 %v2567, %v2566
        %v2588 = vpack.c.b16 %v2569, %v2568
        %v2589 = vpack.c.b16 %v2571, %v2570
        %v2590 = vpack.c.b16 %v2573, %v2572
        %v2591 = vpack.c.b16 %v2575, %v2574
        %v2593 = vunpack.c.l.b16 %v2543
        %v2594 = vpack.c.b16 %v2593, %v2593
        %v2595 = vrot.slane %v2594, 2
        %v2597 = vsel %vm843, %v2576, 0
        %v2600 = vsel %vm843, %v2577, 0
        %v2603 = vsel %vm843, %v2578, 0
        %v2606 = vsel %vm843, %v2579, 0
        %v2609 = vsel %vm843, %v2580, 0
        %v2612 = vsel %vm843, %v2581, 0
        %v2615 = vsel %vm843, %v2582, 0
        %v2618 = vsel %vm843, %v2583, 0
        %v2621 = vsel %vm843, %v2584, 0
        %v2624 = vsel %vm843, %v2585, 0
        %v2627 = vsel %vm843, %v2586, 0
        %v2630 = vsel %vm843, %v2587, 0
        %v2633 = vsel %vm843, %v2588, 0
        %v2636 = vsel %vm843, %v2589, 0
        %v2639 = vsel %vm843, %v2590, 0
        %v2642 = vsel %vm843, %v2591, 0
        %v2645 = vand.u32 %v2595, %v895
        %2647 = vmatprep.subr.bf16.mxu0 0
        %2648 = vmatpush1.bf16.msra.mxu0 %v2645
        %2649 = vmatprep.subr.bf16.mxu0 0
        %2650 = vmatpush1.bf16.msra.mxu0 0
        %2651 = vmatprep.subr.bf16.mxu0 0
        %2652 = vmatpush1.bf16.msra.mxu0 0
        %2653 = vmatprep.subr.bf16.mxu0 0
        %2654 = vmatpush1.bf16.msra.mxu0 0
        %2655 = vmatprep.subr.bf16.mxu0 0
        %2656 = vmatpush1.bf16.msra.mxu0 0
        %2657 = vmatprep.subr.bf16.mxu0 0
        %2658 = vmatpush1.bf16.msra.mxu0 0
        %2659 = vmatprep.subr.bf16.mxu0 0
        %2660 = vmatpush1.bf16.msra.mxu0 0
        %2661 = vmatprep.subr.bf16.mxu0 0
        %2662 = vmatpush1.bf16.msra.mxu0 0
        %2663 = vmatprep.subr.bf16.mxu0 0
        %2664 = vmatpush1.bf16.msra.mxu0 0
        %2665 = vmatprep.subr.bf16.mxu0 0
        %2666 = vmatpush1.bf16.msra.mxu0 0
        %2667 = vmatprep.subr.bf16.mxu0 0
        %2668 = vmatpush1.bf16.msra.mxu0 0
        %2669 = vmatprep.subr.bf16.mxu0 0
        %2670 = vmatpush1.bf16.msra.mxu0 0
        %2671 = vmatprep.subr.bf16.mxu0 0
        %2672 = vmatpush1.bf16.msra.mxu0 0
        %2673 = vmatprep.subr.bf16.mxu0 0
        %2674 = vmatpush1.bf16.msra.mxu0 0
        %2675 = vmatprep.subr.bf16.mxu0 0
        %2676 = vmatpush1.bf16.msra.mxu0 0
        %2677 = vmatprep.subr.bf16.mxu0 0
        %2678 = vmatpush1.bf16.msra.mxu0 0
        %2679 = vmatprep.mubr.bf16.mxu0 0
        %2680 = vmatmul.mubr.bf16.gmra.mrb[0].mxu0 %v2597
        %v2681 = vpop.f32.mrb[0].mxu0
        %v2682 = vadd.f32 0.0, %v2681
        %v2683 = vpop.f32.mrb[0].mxu0
        %v2684 = vpop.f32.mrb[0].mxu0
        %v2685 = vadd.f32 0.0, %v2684
        %v2686 = vpop.f32.mrb[0].mxu0
        %2687 = vmatprep.mubr.bf16.mxu0 0
        %2688 = vmatmul.mubr.bf16.gmra.mrb[0].mxu0 %v2600
        %v2689 = vpop.f32.mrb[0].mxu0
        %v2690 = vadd.f32 0.0, %v2689
        %v2691 = vpop.f32.mrb[0].mxu0
        %v2692 = vpop.f32.mrb[0].mxu0
        %v2693 = vadd.f32 0.0, %v2692
        %v2694 = vpop.f32.mrb[0].mxu0
        %2695 = vmatprep.mubr.bf16.mxu0 0
        %2696 = vmatmul.mubr.bf16.gmra.mrb[0].mxu0 %v2603
        %v2697 = vpop.f32.mrb[0].mxu0
        %v2698 = vadd.f32 0.0, %v2697
        %v2699 = vpop.f32.mrb[0].mxu0
        %v2700 = vpop.f32.mrb[0].mxu0
        %v2701 = vadd.f32 0.0, %v2700
        %v2702 = vpop.f32.mrb[0].mxu0
        %2703 = vmatprep.mubr.bf16.mxu0 0
        %2704 = vmatmul.mubr.bf16.gmra.mrb[0].mxu0 %v2606
        %v2705 = vpop.f32.mrb[0].mxu0
        %v2706 = vadd.f32 0.0, %v2705
        %v2707 = vpop.f32.mrb[0].mxu0
        %v2708 = vpop.f32.mrb[0].mxu0
        %v2709 = vadd.f32 0.0, %v2708
        %v2710 = vpop.f32.mrb[0].mxu0
        %2711 = vmatprep.mubr.bf16.mxu0 0
        %2712 = vmatmul.mubr.bf16.gmra.mrb[0].mxu0 %v2609
        %v2713 = vpop.f32.mrb[0].mxu0
        %v2714 = vadd.f32 0.0, %v2713
        %v2715 = vpop.f32.mrb[0].mxu0
        %v2716 = vpop.f32.mrb[0].mxu0
        %v2717 = vadd.f32 0.0, %v2716
        %v2718 = vpop.f32.mrb[0].mxu0
        %2719 = vmatprep.mubr.bf16.mxu0 0
        %2720 = vmatmul.mubr.bf16.gmra.mrb[0].mxu0 %v2612
        %v2721 = vpop.f32.mrb[0].mxu0
        %v2722 = vadd.f32 0.0, %v2721
        %v2723 = vpop.f32.mrb[0].mxu0
        %v2724 = vpop.f32.mrb[0].mxu0
        %v2725 = vadd.f32 0.0, %v2724
        %v2726 = vpop.f32.mrb[0].mxu0
        %2727 = vmatprep.mubr.bf16.mxu0 0
        %2728 = vmatmul.mubr.bf16.gmra.mrb[0].mxu0 %v2615
        %v2729 = vpop.f32.mrb[0].mxu0
        %v2730 = vadd.f32 0.0, %v2729
        %v2731 = vpop.f32.mrb[0].mxu0
        %v2732 = vpop.f32.mrb[0].mxu0
        %v2733 = vadd.f32 0.0, %v2732
        %v2734 = vpop.f32.mrb[0].mxu0
        %2735 = vmatprep.mubr.bf16.mxu0 0
        %2736 = vmatmul.mubr.bf16.gmra.mrb[0].mxu0 %v2618
        %v2737 = vpop.f32.mrb[0].mxu0
        %v2738 = vadd.f32 0.0, %v2737
        %v2739 = vpop.f32.mrb[0].mxu0
        %v2740 = vpop.f32.mrb[0].mxu0
        %v2741 = vadd.f32 0.0, %v2740
        %v2742 = vpop.f32.mrb[0].mxu0
        %2743 = vmatprep.mubr.bf16.mxu0 0
        %2744 = vmatmul.mubr.bf16.gmra.mrb[0].mxu0 %v2621
        %v2745 = vpop.f32.mrb[0].mxu0
        %v2746 = vadd.f32 0.0, %v2745
        %v2747 = vpop.f32.mrb[0].mxu0
        %v2748 = vpop.f32.mrb[0].mxu0
        %v2749 = vadd.f32 0.0, %v2748
        %v2750 = vpop.f32.mrb[0].mxu0
        %2751 = vmatprep.mubr.bf16.mxu0 0
        %2752 = vmatmul.mubr.bf16.gmra.mrb[0].mxu0 %v2624
        %v2753 = vpop.f32.mrb[0].mxu0
        %v2754 = vadd.f32 0.0, %v2753
        %v2755 = vpop.f32.mrb[0].mxu0
        %v2756 = vpop.f32.mrb[0].mxu0
        %v2757 = vadd.f32 0.0, %v2756
        %v2758 = vpop.f32.mrb[0].mxu0
        %2759 = vmatprep.mubr.bf16.mxu0 0
        %2760 = vmatmul.mubr.bf16.gmra.mrb[0].mxu0 %v2627
        %v2761 = vpop.f32.mrb[0].mxu0
        %v2762 = vadd.f32 0.0, %v2761
        %v2763 = vpop.f32.mrb[0].mxu0
        %v2764 = vpop.f32.mrb[0].mxu0
        %v2765 = vadd.f32 0.0, %v2764
        %v2766 = vpop.f32.mrb[0].mxu0
        %2767 = vmatprep.mubr.bf16.mxu0 0
        %2768 = vmatmul.mubr.bf16.gmra.mrb[0].mxu0 %v2630
        %v2769 = vpop.f32.mrb[0].mxu0
        %v2770 = vadd.f32 0.0, %v2769
        %v2771 = vpop.f32.mrb[0].mxu0
        %v2772 = vpop.f32.mrb[0].mxu0
        %v2773 = vadd.f32 0.0, %v2772
        %v2774 = vpop.f32.mrb[0].mxu0
        %2775 = vmatprep.mubr.bf16.mxu0 0
        %2776 = vmatmul.mubr.bf16.gmra.mrb[0].mxu0 %v2633
        %v2777 = vpop.f32.mrb[0].mxu0
        %v2778 = vadd.f32 0.0, %v2777
        %v2779 = vpop.f32.mrb[0].mxu0
        %v2780 = vpop.f32.mrb[0].mxu0
        %v2781 = vadd.f32 0.0, %v2780
        %v2782 = vpop.f32.mrb[0].mxu0
        %2783 = vmatprep.mubr.bf16.mxu0 0
        %2784 = vmatmul.mubr.bf16.gmra.mrb[0].mxu0 %v2636
        %v2785 = vpop.f32.mrb[0].mxu0
        %v2786 = vadd.f32 0.0, %v2785
        %v2787 = vpop.f32.mrb[0].mxu0
        %v2788 = vpop.f32.mrb[0].mxu0
        %v2789 = vadd.f32 0.0, %v2788
        %v2790 = vpop.f32.mrb[0].mxu0
        %2791 = vmatprep.mubr.bf16.mxu0 0
        %2792 = vmatmul.mubr.bf16.gmra.mrb[0].mxu0 %v2639
        %v2793 = vpop.f32.mrb[0].mxu0
        %v2794 = vadd.f32 0.0, %v2793
        %v2795 = vpop.f32.mrb[0].mxu0
        %v2796 = vpop.f32.mrb[0].mxu0
        %v2797 = vadd.f32 0.0, %v2796
        %v2798 = vpop.f32.mrb[0].mxu0
        %2799 = vmatprep.mubr.bf16.mxu0 0
        %2800 = vmatmul.mubr.bf16.gmra.mrb[0].mxu0 %v2642
        %v2801 = vpop.f32.mrb[0].mxu0
        %v2802 = vadd.f32 0.0, %v2801
        %v2803 = vpop.f32.mrb[0].mxu0
        %v2804 = vpop.f32.mrb[0].mxu0
        %v2805 = vadd.f32 0.0, %v2804
        %v2806 = vpop.f32.mrb[0].mxu0
        %2807 = vdwg.mxu0
        %v2808 = vadd.f32 %v2119, %v2682
        %v2809 = vadd.f32 %v2120, %v2685
        %v2810 = vadd.f32 %v2121, %v2690
        %v2811 = vadd.f32 %v2122, %v2693
        %v2812 = vadd.f32 %v2123, %v2698
        %v2813 = vadd.f32 %v2124, %v2701
        %v2814 = vadd.f32 %v2125, %v2706
        %v2815 = vadd.f32 %v2126, %v2709
        %v2816 = vadd.f32 %v2127, %v2714
        %v2817 = vadd.f32 %v2128, %v2717
        %v2818 = vadd.f32 %v2129, %v2722
        %v2819 = vadd.f32 %v2130, %v2725
        %v2820 = vadd.f32 %v2131, %v2730
        %v2821 = vadd.f32 %v2132, %v2733
        %v2822 = vadd.f32 %v2133, %v2738
        %v2823 = vadd.f32 %v2134, %v2741
        %v2824 = vadd.f32 %v2135, %v2746
        %v2825 = vadd.f32 %v2136, %v2749
        %v2826 = vadd.f32 %v2137, %v2754
        %v2827 = vadd.f32 %v2138, %v2757
        %v2828 = vadd.f32 %v2139, %v2762
        %v2829 = vadd.f32 %v2140, %v2765
        %v2830 = vadd.f32 %v2141, %v2770
        %v2831 = vadd.f32 %v2142, %v2773
        %v2832 = vadd.f32 %v2143, %v2778
        %v2833 = vadd.f32 %v2144, %v2781
        %v2834 = vadd.f32 %v2145, %v2786
        %v2835 = vadd.f32 %v2146, %v2789
        %v2836 = vadd.f32 %v2147, %v2794
        %v2837 = vadd.f32 %v2148, %v2797
        %v2838 = vadd.f32 %v2149, %v2802
        %v2839 = vadd.f32 %v2150, %v2805
        %v2840 = vld [vmem:[%s1783] sm:$0xe]
        %v2841 = vld [vmem:[%s1783 + $0x14] sm:$0xe]
        %v2842 = vld [vmem:[%s1783 + $0x28] sm:$0xe]
        %v2843 = vld [vmem:[%s1783 + $0x3c] sm:$0xe]
        %v2844 = vld [vmem:[%s1783 + $0x50] sm:$0xe]
        %v2845 = vld [vmem:[%s1783 + $0x64] sm:$0xe]
        %v2846 = vld [vmem:[%s1783 + $0x78] sm:$0xe]
        %v2847 = vld [vmem:[%s1783 + $0x8c] sm:$0xe]
        %v2888 = vrot.slane %v2840, 5
        %v2889 = vrot.slane %v2888, 4
        %v2890 = vrot.slane %v2152, 5
        %v2891 = vsel %vm1378, %v2889, %v2890
        %v2892 = vrot.slane %v2890, 4
        %v2893 = vrot.slane %v2153, 5
        %v2894 = vsel %vm1378, %v2892, %v2893
        %v2895 = vrot.slane %v2893, 4
        %v2896 = vrot.slane %v2154, 5
        %v2897 = vsel %vm1378, %v2895, %v2896
        %v2898 = vrot.slane %v2896, 4
        %v2899 = vrot.slane %v2155, 5
        %v2900 = vsel %vm1378, %v2898, %v2899
        %v2901 = vrot.slane %v2841, 5
        %v2902 = vrot.slane %v2901, 4
        %v2903 = vrot.slane %v2157, 5
        %v2904 = vsel %vm1378, %v2902, %v2903
        %v2905 = vrot.slane %v2903, 4
        %v2906 = vrot.slane %v2158, 5
        %v2907 = vsel %vm1378, %v2905, %v2906
        %v2908 = vrot.slane %v2906, 4
        %v2909 = vrot.slane %v2159, 5
        %v2910 = vsel %vm1378, %v2908, %v2909
        %v2911 = vrot.slane %v2909, 4
        %v2912 = vrot.slane %v2160, 5
        %v2913 = vsel %vm1378, %v2911, %v2912
        %v2914 = vrot.slane %v2842, 5
        %v2915 = vrot.slane %v2914, 4
        %v2916 = vrot.slane %v2162, 5
        %v2917 = vsel %vm1378, %v2915, %v2916
        %v2918 = vrot.slane %v2916, 4
        %v2919 = vrot.slane %v2163, 5
        %v2920 = vsel %vm1378, %v2918, %v2919
        %v2921 = vrot.slane %v2919, 4
        %v2922 = vrot.slane %v2164, 5
        %v2923 = vsel %vm1378, %v2921, %v2922
        %v2924 = vrot.slane %v2922, 4
        %v2925 = vrot.slane %v2165, 5
        %v2926 = vsel %vm1378, %v2924, %v2925
        %v2927 = vrot.slane %v2843, 5
        %v2928 = vrot.slane %v2927, 4
        %v2929 = vrot.slane %v2167, 5
        %v2930 = vsel %vm1378, %v2928, %v2929
        %v2931 = vrot.slane %v2929, 4
        %v2932 = vrot.slane %v2168, 5
        %v2933 = vsel %vm1378, %v2931, %v2932
        %v2934 = vrot.slane %v2932, 4
        %v2935 = vrot.slane %v2169, 5
        %v2936 = vsel %vm1378, %v2934, %v2935
        %v2937 = vrot.slane %v2935, 4
        %v2938 = vrot.slane %v2170, 5
        %v2939 = vsel %vm1378, %v2937, %v2938
        %v2940 = vrot.slane %v2844, 5
        %v2941 = vrot.slane %v2940, 4
        %v2942 = vrot.slane %v2172, 5
        %v2943 = vsel %vm1378, %v2941, %v2942
        %v2944 = vrot.slane %v2942, 4
        %v2945 = vrot.slane %v2173, 5
        %v2946 = vsel %vm1378, %v2944, %v2945
        %v2947 = vrot.slane %v2945, 4
        %v2948 = vrot.slane %v2174, 5
        %v2949 = vsel %vm1378, %v2947, %v2948
        %v2950 = vrot.slane %v2948, 4
        %v2951 = vrot.slane %v2175, 5
        %v2952 = vsel %vm1378, %v2950, %v2951
        %v2953 = vrot.slane %v2845, 5
        %v2954 = vrot.slane %v2953, 4
        %v2955 = vrot.slane %v2177, 5
        %v2956 = vsel %vm1378, %v2954, %v2955
        %v2957 = vrot.slane %v2955, 4
        %v2958 = vrot.slane %v2178, 5
        %v2959 = vsel %vm1378, %v2957, %v2958
        %v2960 = vrot.slane %v2958, 4
        %v2961 = vrot.slane %v2179, 5
        %v2962 = vsel %vm1378, %v2960, %v2961
        %v2963 = vrot.slane %v2961, 4
        %v2964 = vrot.slane %v2180, 5
        %v2965 = vsel %vm1378, %v2963, %v2964
        %v2966 = vrot.slane %v2846, 5
        %v2967 = vrot.slane %v2966, 4
        %v2968 = vrot.slane %v2182, 5
        %v2969 = vsel %vm1378, %v2967, %v2968
        %v2970 = vrot.slane %v2968, 4
        %v2971 = vrot.slane %v2183, 5
        %v2972 = vsel %vm1378, %v2970, %v2971
        %v2973 = vrot.slane %v2971, 4
        %v2974 = vrot.slane %v2184, 5
        %v2975 = vsel %vm1378, %v2973, %v2974
        %v2976 = vrot.slane %v2974, 4
        %v2977 = vrot.slane %v2185, 5
        %v2978 = vsel %vm1378, %v2976, %v2977
        %v2979 = vrot.slane %v2847, 5
        %v2980 = vrot.slane %v2979, 4
        %v2981 = vrot.slane %v2187, 5
        %v2982 = vsel %vm1378, %v2980, %v2981
        %v2983 = vrot.slane %v2981, 4
        %v2984 = vrot.slane %v2188, 5
        %v2985 = vsel %vm1378, %v2983, %v2984
        %v2986 = vrot.slane %v2984, 4
        %v2987 = vrot.slane %v2189, 5
        %v2988 = vsel %vm1378, %v2986, %v2987
        %v2989 = vrot.slane %v2987, 4
        %v2990 = vrot.slane %v2190, 5
        %v2991 = vsel %vm1378, %v2989, %v2990
        %v2992 = vld [vmem:[%s2 + $0x4] sm:$0x8]
        %v2993 = vld [vmem:[%s2 + $0x8] sm:$0x1]
        %v2994 = vunpack.c.l.b16 %v2891
        %v2995 = vunpack.c.l.b16 %v2894
        %v2996 = vunpack.c.l.b16 %v2897
        %v2997 = vunpack.c.l.b16 %v2900
        %v2998 = vunpack.c.l.b16 %v2904
        %v2999 = vunpack.c.l.b16 %v2907
        %v3000 = vunpack.c.l.b16 %v2910
        %v3001 = vunpack.c.l.b16 %v2913
        %v3002 = vunpack.c.l.b16 %v2917
        %v3003 = vunpack.c.l.b16 %v2920
        %v3004 = vunpack.c.l.b16 %v2923
        %v3005 = vunpack.c.l.b16 %v2926
        %v3006 = vunpack.c.l.b16 %v2930
        %v3007 = vunpack.c.l.b16 %v2933
        %v3008 = vunpack.c.l.b16 %v2936
        %v3009 = vunpack.c.l.b16 %v2939
        %v3010 = vunpack.c.l.b16 %v2943
        %v3011 = vunpack.c.l.b16 %v2946
        %v3012 = vunpack.c.l.b16 %v2949
        %v3013 = vunpack.c.l.b16 %v2952
        %v3014 = vunpack.c.l.b16 %v2956
        %v3015 = vunpack.c.l.b16 %v2959
        %v3016 = vunpack.c.l.b16 %v2962
        %v3017 = vunpack.c.l.b16 %v2965
        %v3018 = vunpack.c.l.b16 %v2969
        %v3019 = vunpack.c.l.b16 %v2972
        %v3020 = vunpack.c.l.b16 %v2975
        %v3021 = vunpack.c.l.b16 %v2978
        %v3022 = vunpack.c.l.b16 %v2982
        %v3023 = vunpack.c.l.b16 %v2985
        %v3024 = vunpack.c.l.b16 %v2988
        %v3025 = vunpack.c.l.b16 %v2991
        %v3026 = vpack.c.b16 %v2995, %v2994
        %v3027 = vpack.c.b16 %v2997, %v2996
        %v3028 = vpack.c.b16 %v2999, %v2998
        %v3029 = vpack.c.b16 %v3001, %v3000
        %v3030 = vpack.c.b16 %v3003, %v3002
        %v3031 = vpack.c.b16 %v3005, %v3004
        %v3032 = vpack.c.b16 %v3007, %v3006
        %v3033 = vpack.c.b16 %v3009, %v3008
        %v3034 = vpack.c.b16 %v3011, %v3010
        %v3035 = vpack.c.b16 %v3013, %v3012
        %v3036 = vpack.c.b16 %v3015, %v3014
        %v3037 = vpack.c.b16 %v3017, %v3016
        %v3038 = vpack.c.b16 %v3019, %v3018
        %v3039 = vpack.c.b16 %v3021, %v3020
        %v3040 = vpack.c.b16 %v3023, %v3022
        %v3041 = vpack.c.b16 %v3025, %v3024
        %v3044 = vunpack.c.l.b16 %v2992
        %v3045 = vunpack.c.l.b16 %v2993
        %v3046 = vpack.c.b16 %v3045, %v3044
        %v3048 = vshrl.u32 %v3046, 16
        %v3050 = vrot.slane %v3048, 3
        %v3051 = vshll.u32 %v3046, 16
        %v3053 = vrot.slane %v3051, 4
        %v3054 = vor.u32 %v3050, %v3053
        %v3056 = vsel %vm843, %v3026, 0
        %v3059 = vsel %vm843, %v3027, 0
        %v3062 = vsel %vm843, %v3028, 0
        %v3065 = vsel %vm843, %v3029, 0
        %v3068 = vsel %vm843, %v3030, 0
        %v3071 = vsel %vm843, %v3031, 0
        %v3074 = vsel %vm843, %v3032, 0
        %v3077 = vsel %vm843, %v3033, 0
        %v3080 = vsel %vm843, %v3034, 0
        %v3083 = vsel %vm843, %v3035, 0
        %v3086 = vsel %vm843, %v3036, 0
        %v3089 = vsel %vm843, %v3037, 0
        %v3092 = vsel %vm843, %v3038, 0
        %v3095 = vsel %vm843, %v3039, 0
        %v3098 = vsel %vm843, %v3040, 0
        %v3101 = vsel %vm843, %v3041, 0
        %v3104 = vand.u32 %v3054, %v895
        %3106 = vmatprep.subr.bf16.mxu0 0
        %3107 = vmatpush1.bf16.msra.mxu0 %v3104
        %3108 = vmatprep.subr.bf16.mxu0 0
        %3109 = vmatpush1.bf16.msra.mxu0 0
        %3110 = vmatprep.subr.bf16.mxu0 0
        %3111 = vmatpush1.bf16.msra.mxu0 0
        %3112 = vmatprep.subr.bf16.mxu0 0
        %3113 = vmatpush1.bf16.msra.mxu0 0
        %3114 = vmatprep.subr.bf16.mxu0 0
        %3115 = vmatpush1.bf16.msra.mxu0 0
        %3116 = vmatprep.subr.bf16.mxu0 0
        %3117 = vmatpush1.bf16.msra.mxu0 0
        %3118 = vmatprep.subr.bf16.mxu0 0
        %3119 = vmatpush1.bf16.msra.mxu0 0
        %3120 = vmatprep.subr.bf16.mxu0 0
        %3121 = vmatpush1.bf16.msra.mxu0 0
        %3122 = vmatprep.subr.bf16.mxu0 0
        %3123 = vmatpush1.bf16.msra.mxu0 0
        %3124 = vmatprep.subr.bf16.mxu0 0
        %3125 = vmatpush1.bf16.msra.mxu0 0
        %3126 = vmatprep.subr.bf16.mxu0 0
        %3127 = vmatpush1.bf16.msra.mxu0 0
        %3128 = vmatprep.subr.bf16.mxu0 0
        %3129 = vmatpush1.bf16.msra.mxu0 0
        %3130 = vmatprep.subr.bf16.mxu0 0
        %3131 = vmatpush1.bf16.msra.mxu0 0
        %3132 = vmatprep.subr.bf16.mxu0 0
        %3133 = vmatpush1.bf16.msra.mxu0 0
        %3134 = vmatprep.subr.bf16.mxu0 0
        %3135 = vmatpush1.bf16.msra.mxu0 0
        %3136 = vmatprep.subr.bf16.mxu0 0
        %3137 = vmatpush1.bf16.msra.mxu0 0
        %3138 = vmatprep.mubr.bf16.mxu0 0
        %3139 = vmatmul.mubr.bf16.gmra.mrb[0].mxu0 %v3056
        %v3140 = vpop.f32.mrb[0].mxu0
        %v3141 = vadd.f32 0.0, %v3140
        %v3142 = vpop.f32.mrb[0].mxu0
        %v3143 = vpop.f32.mrb[0].mxu0
        %v3144 = vadd.f32 0.0, %v3143
        %v3145 = vpop.f32.mrb[0].mxu0
        %3146 = vmatprep.mubr.bf16.mxu0 0
        %3147 = vmatmul.mubr.bf16.gmra.mrb[0].mxu0 %v3059
        %v3148 = vpop.f32.mrb[0].mxu0
        %v3149 = vadd.f32 0.0, %v3148
        %v3150 = vpop.f32.mrb[0].mxu0
        %v3151 = vpop.f32.mrb[0].mxu0
        %v3152 = vadd.f32 0.0, %v3151
        %v3153 = vpop.f32.mrb[0].mxu0
        %3154 = vmatprep.mubr.bf16.mxu0 0
        %3155 = vmatmul.mubr.bf16.gmra.mrb[0].mxu0 %v3062
        %v3156 = vpop.f32.mrb[0].mxu0
        %v3157 = vadd.f32 0.0, %v3156
        %v3158 = vpop.f32.mrb[0].mxu0
        %v3159 = vpop.f32.mrb[0].mxu0
        %v3160 = vadd.f32 0.0, %v3159
        %v3161 = vpop.f32.mrb[0].mxu0
        %3162 = vmatprep.mubr.bf16.mxu0 0
        %3163 = vmatmul.mubr.bf16.gmra.mrb[0].mxu0 %v3065
        %v3164 = vpop.f32.mrb[0].mxu0
        %v3165 = vadd.f32 0.0, %v3164
        %v3166 = vpop.f32.mrb[0].mxu0
        %v3167 = vpop.f32.mrb[0].mxu0
        %v3168 = vadd.f32 0.0, %v3167
        %v3169 = vpop.f32.mrb[0].mxu0
        %3170 = vmatprep.mubr.bf16.mxu0 0
        %3171 = vmatmul.mubr.bf16.gmra.mrb[0].mxu0 %v3068
        %v3172 = vpop.f32.mrb[0].mxu0
        %v3173 = vadd.f32 0.0, %v3172
        %v3174 = vpop.f32.mrb[0].mxu0
        %v3175 = vpop.f32.mrb[0].mxu0
        %v3176 = vadd.f32 0.0, %v3175
        %v3177 = vpop.f32.mrb[0].mxu0
        %3178 = vmatprep.mubr.bf16.mxu0 0
        %3179 = vmatmul.mubr.bf16.gmra.mrb[0].mxu0 %v3071
        %v3180 = vpop.f32.mrb[0].mxu0
        %v3181 = vadd.f32 0.0, %v3180
        %v3182 = vpop.f32.mrb[0].mxu0
        %v3183 = vpop.f32.mrb[0].mxu0
        %v3184 = vadd.f32 0.0, %v3183
        %v3185 = vpop.f32.mrb[0].mxu0
        %3186 = vmatprep.mubr.bf16.mxu0 0
        %3187 = vmatmul.mubr.bf16.gmra.mrb[0].mxu0 %v3074
        %v3188 = vpop.f32.mrb[0].mxu0
        %v3189 = vadd.f32 0.0, %v3188
        %v3190 = vpop.f32.mrb[0].mxu0
        %v3191 = vpop.f32.mrb[0].mxu0
        %v3192 = vadd.f32 0.0, %v3191
        %v3193 = vpop.f32.mrb[0].mxu0
        %3194 = vmatprep.mubr.bf16.mxu0 0
        %3195 = vmatmul.mubr.bf16.gmra.mrb[0].mxu0 %v3077
        %v3196 = vpop.f32.mrb[0].mxu0
        %v3197 = vadd.f32 0.0, %v3196
        %v3198 = vpop.f32.mrb[0].mxu0
        %v3199 = vpop.f32.mrb[0].mxu0
        %v3200 = vadd.f32 0.0, %v3199
        %v3201 = vpop.f32.mrb[0].mxu0
        %3202 = vmatprep.mubr.bf16.mxu0 0
        %3203 = vmatmul.mubr.bf16.gmra.mrb[0].mxu0 %v3080
        %v3204 = vpop.f32.mrb[0].mxu0
        %v3205 = vadd.f32 0.0, %v3204
        %v3206 = vpop.f32.mrb[0].mxu0
        %v3207 = vpop.f32.mrb[0].mxu0
        %v3208 = vadd.f32 0.0, %v3207
        %v3209 = vpop.f32.mrb[0].mxu0
        %3210 = vmatprep.mubr.bf16.mxu0 0
        %3211 = vmatmul.mubr.bf16.gmra.mrb[0].mxu0 %v3083
        %v3212 = vpop.f32.mrb[0].mxu0
        %v3213 = vadd.f32 0.0, %v3212
        %v3214 = vpop.f32.mrb[0].mxu0
        %v3215 = vpop.f32.mrb[0].mxu0
        %v3216 = vadd.f32 0.0, %v3215
        %v3217 = vpop.f32.mrb[0].mxu0
        %3218 = vmatprep.mubr.bf16.mxu0 0
        %3219 = vmatmul.mubr.bf16.gmra.mrb[0].mxu0 %v3086
        %v3220 = vpop.f32.mrb[0].mxu0
        %v3221 = vadd.f32 0.0, %v3220
        %v3222 = vpop.f32.mrb[0].mxu0
        %v3223 = vpop.f32.mrb[0].mxu0
        %v3224 = vadd.f32 0.0, %v3223
        %v3225 = vpop.f32.mrb[0].mxu0
        %3226 = vmatprep.mubr.bf16.mxu0 0
        %3227 = vmatmul.mubr.bf16.gmra.mrb[0].mxu0 %v3089
        %v3228 = vpop.f32.mrb[0].mxu0
        %v3229 = vadd.f32 0.0, %v3228
        %v3230 = vpop.f32.mrb[0].mxu0
        %v3231 = vpop.f32.mrb[0].mxu0
        %v3232 = vadd.f32 0.0, %v3231
        %v3233 = vpop.f32.mrb[0].mxu0
        %3234 = vmatprep.mubr.bf16.mxu0 0
        %3235 = vmatmul.mubr.bf16.gmra.mrb[0].mxu0 %v3092
        %v3236 = vpop.f32.mrb[0].mxu0
        %v3237 = vadd.f32 0.0, %v3236
        %v3238 = vpop.f32.mrb[0].mxu0
        %v3239 = vpop.f32.mrb[0].mxu0
        %v3240 = vadd.f32 0.0, %v3239
        %v3241 = vpop.f32.mrb[0].mxu0
        %3242 = vmatprep.mubr.bf16.mxu0 0
        %3243 = vmatmul.mubr.bf16.gmra.mrb[0].mxu0 %v3095
        %v3244 = vpop.f32.mrb[0].mxu0
        %v3245 = vadd.f32 0.0, %v3244
        %v3246 = vpop.f32.mrb[0].mxu0
        %v3247 = vpop.f32.mrb[0].mxu0
        %v3248 = vadd.f32 0.0, %v3247
        %v3249 = vpop.f32.mrb[0].mxu0
        %3250 = vmatprep.mubr.bf16.mxu0 0
        %3251 = vmatmul.mubr.bf16.gmra.mrb[0].mxu0 %v3098
        %v3252 = vpop.f32.mrb[0].mxu0
        %v3253 = vadd.f32 0.0, %v3252
        %v3254 = vpop.f32.mrb[0].mxu0
        %v3255 = vpop.f32.mrb[0].mxu0
        %v3256 = vadd.f32 0.0, %v3255
        %v3257 = vpop.f32.mrb[0].mxu0
        %3258 = vmatprep.mubr.bf16.mxu0 0
        %3259 = vmatmul.mubr.bf16.gmra.mrb[0].mxu0 %v3101
        %v3260 = vpop.f32.mrb[0].mxu0
        %v3261 = vadd.f32 0.0, %v3260
        %v3262 = vpop.f32.mrb[0].mxu0
        %v3263 = vpop.f32.mrb[0].mxu0
        %v3264 = vadd.f32 0.0, %v3263
        %v3265 = vpop.f32.mrb[0].mxu0
        %3266 = vdwg.mxu0
        %v3267 = vadd.f32 %v2808, %v3141
        %v3268 = vadd.f32 %v2809, %v3144
        %v3269 = vadd.f32 %v2810, %v3149
        %v3270 = vadd.f32 %v2811, %v3152
        %v3271 = vadd.f32 %v2812, %v3157
        %v3272 = vadd.f32 %v2813, %v3160
        %v3273 = vadd.f32 %v2814, %v3165
        %v3274 = vadd.f32 %v2815, %v3168
        %v3275 = vadd.f32 %v2816, %v3173
        %v3276 = vadd.f32 %v2817, %v3176
        %v3277 = vadd.f32 %v2818, %v3181
        %v3278 = vadd.f32 %v2819, %v3184
        %v3279 = vadd.f32 %v2820, %v3189
        %v3280 = vadd.f32 %v2821, %v3192
        %v3281 = vadd.f32 %v2822, %v3197
        %v3282 = vadd.f32 %v2823, %v3200
        %v3283 = vadd.f32 %v2824, %v3205
        %v3284 = vadd.f32 %v2825, %v3208
        %v3285 = vadd.f32 %v2826, %v3213
        %v3286 = vadd.f32 %v2827, %v3216
        %v3287 = vadd.f32 %v2828, %v3221
        %v3288 = vadd.f32 %v2829, %v3224
        %v3289 = vadd.f32 %v2830, %v3229
        %v3290 = vadd.f32 %v2831, %v3232
        %v3291 = vadd.f32 %v2832, %v3237
        %v3292 = vadd.f32 %v2833, %v3240
        %v3293 = vadd.f32 %v2834, %v3245
        %v3294 = vadd.f32 %v2835, %v3248
        %v3295 = vadd.f32 %v2836, %v3253
        %v3296 = vadd.f32 %v2837, %v3256
        %v3297 = vadd.f32 %v2838, %v3261
        %v3298 = vadd.f32 %v2839, %v3264
        %s3299 = scalar_lea.vmem [#allocation2], 40
        %v3300 = vld [vmem:[%s3299] sm:$0xf]
        %v3301 = vld [vmem:[%s3299 + $0x4] sm:$0xf]
        %v3302 = vld [vmem:[%s3299 + $0x8] sm:$0xf]
        %v3303 = vld [vmem:[%s3299 + $0xc] sm:$0xf]
        %v3304 = vld [vmem:[%s3299 + $0x14] sm:$0xf]
        %v3305 = vld [vmem:[%s3299 + $0x18] sm:$0xf]
        %v3306 = vld [vmem:[%s3299 + $0x1c] sm:$0xf]
        %v3307 = vld [vmem:[%s3299 + $0x20] sm:$0xf]
        %v3308 = vld [vmem:[%s3299 + $0x28] sm:$0xf]
        %v3309 = vld [vmem:[%s3299 + $0x2c] sm:$0xf]
        %v3310 = vld [vmem:[%s3299 + $0x30] sm:$0xf]
        %v3311 = vld [vmem:[%s3299 + $0x34] sm:$0xf]
        %v3312 = vld [vmem:[%s3299 + $0x3c] sm:$0xf]
        %v3313 = vld [vmem:[%s3299 + $0x40] sm:$0xf]
        %v3314 = vld [vmem:[%s3299 + $0x44] sm:$0xf]
        %v3315 = vld [vmem:[%s3299 + $0x48] sm:$0xf]
        %v3316 = vld [vmem:[%s3299 + $0x50] sm:$0xf]
        %v3317 = vld [vmem:[%s3299 + $0x54] sm:$0xf]
        %v3318 = vld [vmem:[%s3299 + $0x58] sm:$0xf]
        %v3319 = vld [vmem:[%s3299 + $0x5c] sm:$0xf]
        %v3320 = vld [vmem:[%s3299 + $0x64] sm:$0xf]
        %v3321 = vld [vmem:[%s3299 + $0x68] sm:$0xf]
        %v3322 = vld [vmem:[%s3299 + $0x6c] sm:$0xf]
        %v3323 = vld [vmem:[%s3299 + $0x70] sm:$0xf]
        %v3324 = vld [vmem:[%s3299 + $0x78] sm:$0xf]
        %v3325 = vld [vmem:[%s3299 + $0x7c] sm:$0xf]
        %v3326 = vld [vmem:[%s3299 + $0x80] sm:$0xf]
        %v3327 = vld [vmem:[%s3299 + $0x84] sm:$0xf]
        %v3328 = vld [vmem:[%s3299 + $0x8c] sm:$0xf]
        %v3329 = vld [vmem:[%s3299 + $0x90] sm:$0xf]
        %v3330 = vld [vmem:[%s3299 + $0x94] sm:$0xf]
        %v3331 = vld [vmem:[%s3299 + $0x98] sm:$0xf]
        %v3332 = vld [vmem:[%s2 + $0x8] sm:$0x6]
        %v3365 = vunpack.c.l.b16 %v3300
        %v3366 = vunpack.c.l.b16 %v3301
        %v3367 = vunpack.c.l.b16 %v3302
        %v3368 = vunpack.c.l.b16 %v3303
        %v3369 = vunpack.c.l.b16 %v3304
        %v3370 = vunpack.c.l.b16 %v3305
        %v3371 = vunpack.c.l.b16 %v3306
        %v3372 = vunpack.c.l.b16 %v3307
        %v3373 = vunpack.c.l.b16 %v3308
        %v3374 = vunpack.c.l.b16 %v3309
        %v3375 = vunpack.c.l.b16 %v3310
        %v3376 = vunpack.c.l.b16 %v3311
        %v3377 = vunpack.c.l.b16 %v3312
        %v3378 = vunpack.c.l.b16 %v3313
        %v3379 = vunpack.c.l.b16 %v3314
        %v3380 = vunpack.c.l.b16 %v3315
        %v3381 = vunpack.c.l.b16 %v3316
        %v3382 = vunpack.c.l.b16 %v3317
        %v3383 = vunpack.c.l.b16 %v3318
        %v3384 = vunpack.c.l.b16 %v3319
        %v3385 = vunpack.c.l.b16 %v3320
        %v3386 = vunpack.c.l.b16 %v3321
        %v3387 = vunpack.c.l.b16 %v3322
        %v3388 = vunpack.c.l.b16 %v3323
        %v3389 = vunpack.c.l.b16 %v3324
        %v3390 = vunpack.c.l.b16 %v3325
        %v3391 = vunpack.c.l.b16 %v3326
        %v3392 = vunpack.c.l.b16 %v3327
        %v3393 = vunpack.c.l.b16 %v3328
        %v3394 = vunpack.c.l.b16 %v3329
        %v3395 = vunpack.c.l.b16 %v3330
        %v3396 = vunpack.c.l.b16 %v3331
        %v3397 = vpack.c.b16 %v3366, %v3365
        %v3398 = vpack.c.b16 %v3368, %v3367
        %v3399 = vpack.c.b16 %v3370, %v3369
        %v3400 = vpack.c.b16 %v3372, %v3371
        %v3401 = vpack.c.b16 %v3374, %v3373
        %v3402 = vpack.c.b16 %v3376, %v3375
        %v3403 = vpack.c.b16 %v3378, %v3377
        %v3404 = vpack.c.b16 %v3380, %v3379
        %v3405 = vpack.c.b16 %v3382, %v3381
        %v3406 = vpack.c.b16 %v3384, %v3383
        %v3407 = vpack.c.b16 %v3386, %v3385
        %v3408 = vpack.c.b16 %v3388, %v3387
        %v3409 = vpack.c.b16 %v3390, %v3389
        %v3410 = vpack.c.b16 %v3392, %v3391
        %v3411 = vpack.c.b16 %v3394, %v3393
        %v3412 = vpack.c.b16 %v3396, %v3395
        %v3414 = vunpack.c.l.b16 %v3332
        %v3415 = vpack.c.b16 %v3414, %v3414
        %v3416 = vrot.slane %v3415, 1
        %v3418 = vsel %vm843, %v3397, 0
        %v3421 = vsel %vm843, %v3398, 0
        %v3424 = vsel %vm843, %v3399, 0
        %v3427 = vsel %vm843, %v3400, 0
        %v3430 = vsel %vm843, %v3401, 0
        %v3433 = vsel %vm843, %v3402, 0
        %v3436 = vsel %vm843, %v3403, 0
        %v3439 = vsel %vm843, %v3404, 0
        %v3442 = vsel %vm843, %v3405, 0
        %v3445 = vsel %vm843, %v3406, 0
        %v3448 = vsel %vm843, %v3407, 0
        %v3451 = vsel %vm843, %v3408, 0
        %v3454 = vsel %vm843, %v3409, 0
        %v3457 = vsel %vm843, %v3410, 0
        %v3460 = vsel %vm843, %v3411, 0
        %v3463 = vsel %vm843, %v3412, 0
        %v3466 = vand.u32 %v3416, %v895
        %3468 = vmatprep.subr.bf16.mxu0 0
        %3469 = vmatpush1.bf16.msra.mxu0 %v3466
        %3470 = vmatprep.subr.bf16.mxu0 0
        %3471 = vmatpush1.bf16.msra.mxu0 0
        %3472 = vmatprep.subr.bf16.mxu0 0
        %3473 = vmatpush1.bf16.msra.mxu0 0
        %3474 = vmatprep.subr.bf16.mxu0 0
        %3475 = vmatpush1.bf16.msra.mxu0 0
        %3476 = vmatprep.subr.bf16.mxu0 0
        %3477 = vmatpush1.bf16.msra.mxu0 0
        %3478 = vmatprep.subr.bf16.mxu0 0
        %3479 = vmatpush1.bf16.msra.mxu0 0
        %3480 = vmatprep.subr.bf16.mxu0 0
        %3481 = vmatpush1.bf16.msra.mxu0 0
        %3482 = vmatprep.subr.bf16.mxu0 0
        %3483 = vmatpush1.bf16.msra.mxu0 0
        %3484 = vmatprep.subr.bf16.mxu0 0
        %3485 = vmatpush1.bf16.msra.mxu0 0
        %3486 = vmatprep.subr.bf16.mxu0 0
        %3487 = vmatpush1.bf16.msra.mxu0 0
        %3488 = vmatprep.subr.bf16.mxu0 0
        %3489 = vmatpush1.bf16.msra.mxu0 0
        %3490 = vmatprep.subr.bf16.mxu0 0
        %3491 = vmatpush1.bf16.msra.mxu0 0
        %3492 = vmatprep.subr.bf16.mxu0 0
        %3493 = vmatpush1.bf16.msra.mxu0 0
        %3494 = vmatprep.subr.bf16.mxu0 0
        %3495 = vmatpush1.bf16.msra.mxu0 0
        %3496 = vmatprep.subr.bf16.mxu0 0
        %3497 = vmatpush1.bf16.msra.mxu0 0
        %3498 = vmatprep.subr.bf16.mxu0 0
        %3499 = vmatpush1.bf16.msra.mxu0 0
        %3500 = vmatprep.mubr.bf16.mxu0 0
        %3501 = vmatmul.mubr.bf16.gmra.mrb[0].mxu0 %v3418
        %v3502 = vpop.f32.mrb[0].mxu0
        %v3503 = vadd.f32 0.0, %v3502
        %v3504 = vpop.f32.mrb[0].mxu0
        %v3505 = vpop.f32.mrb[0].mxu0
        %v3506 = vadd.f32 0.0, %v3505
        %v3507 = vpop.f32.mrb[0].mxu0
        %3508 = vmatprep.mubr.bf16.mxu0 0
        %3509 = vmatmul.mubr.bf16.gmra.mrb[0].mxu0 %v3421
        %v3510 = vpop.f32.mrb[0].mxu0
        %v3511 = vadd.f32 0.0, %v3510
        %v3512 = vpop.f32.mrb[0].mxu0
        %v3513 = vpop.f32.mrb[0].mxu0
        %v3514 = vadd.f32 0.0, %v3513
        %v3515 = vpop.f32.mrb[0].mxu0
        %3516 = vmatprep.mubr.bf16.mxu0 0
        %3517 = vmatmul.mubr.bf16.gmra.mrb[0].mxu0 %v3424
        %v3518 = vpop.f32.mrb[0].mxu0
        %v3519 = vadd.f32 0.0, %v3518
        %v3520 = vpop.f32.mrb[0].mxu0
        %v3521 = vpop.f32.mrb[0].mxu0
        %v3522 = vadd.f32 0.0, %v3521
        %v3523 = vpop.f32.mrb[0].mxu0
        %3524 = vmatprep.mubr.bf16.mxu0 0
        %3525 = vmatmul.mubr.bf16.gmra.mrb[0].mxu0 %v3427
        %v3526 = vpop.f32.mrb[0].mxu0
        %v3527 = vadd.f32 0.0, %v3526
        %v3528 = vpop.f32.mrb[0].mxu0
        %v3529 = vpop.f32.mrb[0].mxu0
        %v3530 = vadd.f32 0.0, %v3529
        %v3531 = vpop.f32.mrb[0].mxu0
        %3532 = vmatprep.mubr.bf16.mxu0 0
        %3533 = vmatmul.mubr.bf16.gmra.mrb[0].mxu0 %v3430
        %v3534 = vpop.f32.mrb[0].mxu0
        %v3535 = vadd.f32 0.0, %v3534
        %v3536 = vpop.f32.mrb[0].mxu0
        %v3537 = vpop.f32.mrb[0].mxu0
        %v3538 = vadd.f32 0.0, %v3537
        %v3539 = vpop.f32.mrb[0].mxu0
        %3540 = vmatprep.mubr.bf16.mxu0 0
        %3541 = vmatmul.mubr.bf16.gmra.mrb[0].mxu0 %v3433
        %v3542 = vpop.f32.mrb[0].mxu0
        %v3543 = vadd.f32 0.0, %v3542
        %v3544 = vpop.f32.mrb[0].mxu0
        %v3545 = vpop.f32.mrb[0].mxu0
        %v3546 = vadd.f32 0.0, %v3545
        %v3547 = vpop.f32.mrb[0].mxu0
        %3548 = vmatprep.mubr.bf16.mxu0 0
        %3549 = vmatmul.mubr.bf16.gmra.mrb[0].mxu0 %v3436
        %v3550 = vpop.f32.mrb[0].mxu0
        %v3551 = vadd.f32 0.0, %v3550
        %v3552 = vpop.f32.mrb[0].mxu0
        %v3553 = vpop.f32.mrb[0].mxu0
        %v3554 = vadd.f32 0.0, %v3553
        %v3555 = vpop.f32.mrb[0].mxu0
        %3556 = vmatprep.mubr.bf16.mxu0 0
        %3557 = vmatmul.mubr.bf16.gmra.mrb[0].mxu0 %v3439
        %v3558 = vpop.f32.mrb[0].mxu0
        %v3559 = vadd.f32 0.0, %v3558
        %v3560 = vpop.f32.mrb[0].mxu0
        %v3561 = vpop.f32.mrb[0].mxu0
        %v3562 = vadd.f32 0.0, %v3561
        %v3563 = vpop.f32.mrb[0].mxu0
        %3564 = vmatprep.mubr.bf16.mxu0 0
        %3565 = vmatmul.mubr.bf16.gmra.mrb[0].mxu0 %v3442
        %v3566 = vpop.f32.mrb[0].mxu0
        %v3567 = vadd.f32 0.0, %v3566
        %v3568 = vpop.f32.mrb[0].mxu0
        %v3569 = vpop.f32.mrb[0].mxu0
        %v3570 = vadd.f32 0.0, %v3569
        %v3571 = vpop.f32.mrb[0].mxu0
        %3572 = vmatprep.mubr.bf16.mxu0 0
        %3573 = vmatmul.mubr.bf16.gmra.mrb[0].mxu0 %v3445
        %v3574 = vpop.f32.mrb[0].mxu0
        %v3575 = vadd.f32 0.0, %v3574
        %v3576 = vpop.f32.mrb[0].mxu0
        %v3577 = vpop.f32.mrb[0].mxu0
        %v3578 = vadd.f32 0.0, %v3577
        %v3579 = vpop.f32.mrb[0].mxu0
        %3580 = vmatprep.mubr.bf16.mxu0 0
        %3581 = vmatmul.mubr.bf16.gmra.mrb[0].mxu0 %v3448
        %v3582 = vpop.f32.mrb[0].mxu0
        %v3583 = vadd.f32 0.0, %v3582
        %v3584 = vpop.f32.mrb[0].mxu0
        %v3585 = vpop.f32.mrb[0].mxu0
        %v3586 = vadd.f32 0.0, %v3585
        %v3587 = vpop.f32.mrb[0].mxu0
        %3588 = vmatprep.mubr.bf16.mxu0 0
        %3589 = vmatmul.mubr.bf16.gmra.mrb[0].mxu0 %v3451
        %v3590 = vpop.f32.mrb[0].mxu0
        %v3591 = vadd.f32 0.0, %v3590
        %v3592 = vpop.f32.mrb[0].mxu0
        %v3593 = vpop.f32.mrb[0].mxu0
        %v3594 = vadd.f32 0.0, %v3593
        %v3595 = vpop.f32.mrb[0].mxu0
        %3596 = vmatprep.mubr.bf16.mxu0 0
        %3597 = vmatmul.mubr.bf16.gmra.mrb[0].mxu0 %v3454
        %v3598 = vpop.f32.mrb[0].mxu0
        %v3599 = vadd.f32 0.0, %v3598
        %v3600 = vpop.f32.mrb[0].mxu0
        %v3601 = vpop.f32.mrb[0].mxu0
        %v3602 = vadd.f32 0.0, %v3601
        %v3603 = vpop.f32.mrb[0].mxu0
        %3604 = vmatprep.mubr.bf16.mxu0 0
        %3605 = vmatmul.mubr.bf16.gmra.mrb[0].mxu0 %v3457
        %v3606 = vpop.f32.mrb[0].mxu0
        %v3607 = vadd.f32 0.0, %v3606
        %v3608 = vpop.f32.mrb[0].mxu0
        %v3609 = vpop.f32.mrb[0].mxu0
        %v3610 = vadd.f32 0.0, %v3609
        %v3611 = vpop.f32.mrb[0].mxu0
        %3612 = vmatprep.mubr.bf16.mxu0 0
        %3613 = vmatmul.mubr.bf16.gmra.mrb[0].mxu0 %v3460
        %v3614 = vpop.f32.mrb[0].mxu0
        %v3615 = vadd.f32 0.0, %v3614
        %v3616 = vpop.f32.mrb[0].mxu0
        %v3617 = vpop.f32.mrb[0].mxu0
        %v3618 = vadd.f32 0.0, %v3617
        %v3619 = vpop.f32.mrb[0].mxu0
        %3620 = vmatprep.mubr.bf16.mxu0 0
        %3621 = vmatmul.mubr.bf16.gmra.mrb[0].mxu0 %v3463
        %v3622 = vpop.f32.mrb[0].mxu0
        %v3623 = vadd.f32 0.0, %v3622
        %v3624 = vpop.f32.mrb[0].mxu0
        %v3625 = vpop.f32.mrb[0].mxu0
        %v3626 = vadd.f32 0.0, %v3625
        %v3627 = vpop.f32.mrb[0].mxu0
        %3628 = vdwg.mxu0
        %v3629 = vadd.f32 %v3267, %v3503
        %v3630 = vadd.f32 %v3268, %v3506
        %v3631 = vadd.f32 %v3269, %v3511
        %v3632 = vadd.f32 %v3270, %v3514
        %v3633 = vadd.f32 %v3271, %v3519
        %v3634 = vadd.f32 %v3272, %v3522
        %v3635 = vadd.f32 %v3273, %v3527
        %v3636 = vadd.f32 %v3274, %v3530
        %v3637 = vadd.f32 %v3275, %v3535
        %v3638 = vadd.f32 %v3276, %v3538
        %v3639 = vadd.f32 %v3277, %v3543
        %v3640 = vadd.f32 %v3278, %v3546
        %v3641 = vadd.f32 %v3279, %v3551
        %v3642 = vadd.f32 %v3280, %v3554
        %v3643 = vadd.f32 %v3281, %v3559
        %v3644 = vadd.f32 %v3282, %v3562
        %v3645 = vadd.f32 %v3283, %v3567
        %v3646 = vadd.f32 %v3284, %v3570
        %v3647 = vadd.f32 %v3285, %v3575
        %v3648 = vadd.f32 %v3286, %v3578
        %v3649 = vadd.f32 %v3287, %v3583
        %v3650 = vadd.f32 %v3288, %v3586
        %v3651 = vadd.f32 %v3289, %v3591
        %v3652 = vadd.f32 %v3290, %v3594
        %v3653 = vadd.f32 %v3291, %v3599
        %v3654 = vadd.f32 %v3292, %v3602
        %v3655 = vadd.f32 %v3293, %v3607
        %v3656 = vadd.f32 %v3294, %v3610
        %v3657 = vadd.f32 %v3295, %v3615
        %v3658 = vadd.f32 %v3296, %v3618
        %v3659 = vadd.f32 %v3297, %v3623
        %v3660 = vadd.f32 %v3298, %v3626
        %v3661 = vld [vmem:[%s3299] sm:$0xf]
        %v3662 = vld [vmem:[%s3299 + $0x4] sm:$0xf]
        %v3663 = vld [vmem:[%s3299 + $0x8] sm:$0xf]
        %v3664 = vld [vmem:[%s3299 + $0xc] sm:$0xf]
        %v3665 = vld [vmem:[%s3299 + $0x10] sm:$0x1]
        %v3666 = vld [vmem:[%s3299 + $0x14] sm:$0xf]
        %v3667 = vld [vmem:[%s3299 + $0x18] sm:$0xf]
        %v3668 = vld [vmem:[%s3299 + $0x1c] sm:$0xf]
        %v3669 = vld [vmem:[%s3299 + $0x20] sm:$0xf]
        %v3670 = vld [vmem:[%s3299 + $0x24] sm:$0x1]
        %v3671 = vld [vmem:[%s3299 + $0x28] sm:$0xf]
        %v3672 = vld [vmem:[%s3299 + $0x2c] sm:$0xf]
        %v3673 = vld [vmem:[%s3299 + $0x30] sm:$0xf]
        %v3674 = vld [vmem:[%s3299 + $0x34] sm:$0xf]
        %v3675 = vld [vmem:[%s3299 + $0x38] sm:$0x1]
        %v3676 = vld [vmem:[%s3299 + $0x3c] sm:$0xf]
        %v3677 = vld [vmem:[%s3299 + $0x40] sm:$0xf]
        %v3678 = vld [vmem:[%s3299 + $0x44] sm:$0xf]
        %v3679 = vld [vmem:[%s3299 + $0x48] sm:$0xf]
        %v3680 = vld [vmem:[%s3299 + $0x4c] sm:$0x1]
        %v3681 = vld [vmem:[%s3299 + $0x50] sm:$0xf]
        %v3682 = vld [vmem:[%s3299 + $0x54] sm:$0xf]
        %v3683 = vld [vmem:[%s3299 + $0x58] sm:$0xf]
        %v3684 = vld [vmem:[%s3299 + $0x5c] sm:$0xf]
        %v3685 = vld [vmem:[%s3299 + $0x60] sm:$0x1]
        %v3686 = vld [vmem:[%s3299 + $0x64] sm:$0xf]
        %v3687 = vld [vmem:[%s3299 + $0x68] sm:$0xf]
        %v3688 = vld [vmem:[%s3299 + $0x6c] sm:$0xf]
        %v3689 = vld [vmem:[%s3299 + $0x70] sm:$0xf]
        %v3690 = vld [vmem:[%s3299 + $0x74] sm:$0x1]
        %v3691 = vld [vmem:[%s3299 + $0x78] sm:$0xf]
        %v3692 = vld [vmem:[%s3299 + $0x7c] sm:$0xf]
        %v3693 = vld [vmem:[%s3299 + $0x80] sm:$0xf]
        %v3694 = vld [vmem:[%s3299 + $0x84] sm:$0xf]
        %v3695 = vld [vmem:[%s3299 + $0x88] sm:$0x1]
        %v3696 = vld [vmem:[%s3299 + $0x8c] sm:$0xf]
        %v3697 = vld [vmem:[%s3299 + $0x90] sm:$0xf]
        %v3698 = vld [vmem:[%s3299 + $0x94] sm:$0xf]
        %v3699 = vld [vmem:[%s3299 + $0x98] sm:$0xf]
        %v3700 = vld [vmem:[%s3299 + $0x9c] sm:$0x1]
        %v3702 = vshrl.u32 %v3661, 16
        %v3704 = vrot.slane %v3702, 4
        %v3705 = vshll.u32 %v3661, 16
        %v3707 = vrot.slane %v3705, 5
        %v3708 = vor.u32 %v3704, %v3707
        %v3709 = vrot.slane %v3708, 4
        %v3711 = vshll.u32 %v3662, 16
        %v3713 = vrot.slane %v3711, 5
        %v3714 = vsel %vm430, %v3709, %v3713
        %v3715 = vshrl.u32 %v3662, 16
        %v3717 = vrot.slane %v3715, 4
        %v3718 = vor.u32 %v3717, %v3713
        %v3719 = vrot.slane %v3718, 4
        %v3721 = vshll.u32 %v3663, 16
        %v3723 = vrot.slane %v3721, 5
        %v3724 = vsel %vm430, %v3719, %v3723
        %v3725 = vshrl.u32 %v3663, 16
        %v3727 = vrot.slane %v3725, 4
        %v3728 = vor.u32 %v3727, %v3723
        %v3729 = vrot.slane %v3728, 4
        %v3731 = vshll.u32 %v3664, 16
        %v3733 = vrot.slane %v3731, 5
        %v3734 = vsel %vm430, %v3729, %v3733
        %v3735 = vshrl.u32 %v3664, 16
        %v3737 = vrot.slane %v3735, 4
        %v3738 = vor.u32 %v3737, %v3733
        %v3739 = vrot.slane %v3738, 4
        %v3741 = vshll.u32 %v3665, 16
        %v3743 = vrot.slane %v3741, 5
        %v3744 = vsel %vm430, %v3739, %v3743
        %v3746 = vshrl.u32 %v3666, 16
        %v3748 = vrot.slane %v3746, 4
        %v3749 = vshll.u32 %v3666, 16
        %v3751 = vrot.slane %v3749, 5
        %v3752 = vor.u32 %v3748, %v3751
        %v3753 = vrot.slane %v3752, 4
        %v3755 = vshll.u32 %v3667, 16
        %v3757 = vrot.slane %v3755, 5
        %v3758 = vsel %vm430, %v3753, %v3757
        %v3759 = vshrl.u32 %v3667, 16
        %v3761 = vrot.slane %v3759, 4
        %v3762 = vor.u32 %v3761, %v3757
        %v3763 = vrot.slane %v3762, 4
        %v3765 = vshll.u32 %v3668, 16
        %v3767 = vrot.slane %v3765, 5
        %v3768 = vsel %vm430, %v3763, %v3767
        %v3769 = vshrl.u32 %v3668, 16
        %v3771 = vrot.slane %v3769, 4
        %v3772 = vor.u32 %v3771, %v3767
        %v3773 = vrot.slane %v3772, 4
        %v3775 = vshll.u32 %v3669, 16
        %v3777 = vrot.slane %v3775, 5
        %v3778 = vsel %vm430, %v3773, %v3777
        %v3779 = vshrl.u32 %v3669, 16
        %v3781 = vrot.slane %v3779, 4
        %v3782 = vor.u32 %v3781, %v3777
        %v3783 = vrot.slane %v3782, 4
        %v3785 = vshll.u32 %v3670, 16
        %v3787 = vrot.slane %v3785, 5
        %v3788 = vsel %vm430, %v3783, %v3787
        %v3790 = vshrl.u32 %v3671, 16
        %v3792 = vrot.slane %v3790, 4
        %v3793 = vshll.u32 %v3671, 16
        %v3795 = vrot.slane %v3793, 5
        %v3796 = vor.u32 %v3792, %v3795
        %v3797 = vrot.slane %v3796, 4
        %v3799 = vshll.u32 %v3672, 16
        %v3801 = vrot.slane %v3799, 5
        %v3802 = vsel %vm430, %v3797, %v3801
        %v3803 = vshrl.u32 %v3672, 16
        %v3805 = vrot.slane %v3803, 4
        %v3806 = vor.u32 %v3805, %v3801
        %v3807 = vrot.slane %v3806, 4
        %v3809 = vshll.u32 %v3673, 16
        %v3811 = vrot.slane %v3809, 5
        %v3812 = vsel %vm430, %v3807, %v3811
        %v3813 = vshrl.u32 %v3673, 16
        %v3815 = vrot.slane %v3813, 4
        %v3816 = vor.u32 %v3815, %v3811
        %v3817 = vrot.slane %v3816, 4
        %v3819 = vshll.u32 %v3674, 16
        %v3821 = vrot.slane %v3819, 5
        %v3822 = vsel %vm430, %v3817, %v3821
        %v3823 = vshrl.u32 %v3674, 16
        %v3825 = vrot.slane %v3823, 4
        %v3826 = vor.u32 %v3825, %v3821
        %v3827 = vrot.slane %v3826, 4
        %v3829 = vshll.u32 %v3675, 16
        %v3831 = vrot.slane %v3829, 5
        %v3832 = vsel %vm430, %v3827, %v3831
        %v3834 = vshrl.u32 %v3676, 16
        %v3836 = vrot.slane %v3834, 4
        %v3837 = vshll.u32 %v3676, 16
        %v3839 = vrot.slane %v3837, 5
        %v3840 = vor.u32 %v3836, %v3839
        %v3841 = vrot.slane %v3840, 4
        %v3843 = vshll.u32 %v3677, 16
        %v3845 = vrot.slane %v3843, 5
        %v3846 = vsel %vm430, %v3841, %v3845
        %v3847 = vshrl.u32 %v3677, 16
        %v3849 = vrot.slane %v3847, 4
        %v3850 = vor.u32 %v3849, %v3845
        %v3851 = vrot.slane %v3850, 4
        %v3853 = vshll.u32 %v3678, 16
        %v3855 = vrot.slane %v3853, 5
        %v3856 = vsel %vm430, %v3851, %v3855
        %v3857 = vshrl.u32 %v3678, 16
        %v3859 = vrot.slane %v3857, 4
        %v3860 = vor.u32 %v3859, %v3855
        %v3861 = vrot.slane %v3860, 4
        %v3863 = vshll.u32 %v3679, 16
        %v3865 = vrot.slane %v3863, 5
        %v3866 = vsel %vm430, %v3861, %v3865
        %v3867 = vshrl.u32 %v3679, 16
        %v3869 = vrot.slane %v3867, 4
        %v3870 = vor.u32 %v3869, %v3865
        %v3871 = vrot.slane %v3870, 4
        %v3873 = vshll.u32 %v3680, 16
        %v3875 = vrot.slane %v3873, 5
        %v3876 = vsel %vm430, %v3871, %v3875
        %v3878 = vshrl.u32 %v3681, 16
        %v3880 = vrot.slane %v3878, 4
        %v3881 = vshll.u32 %v3681, 16
        %v3883 = vrot.slane %v3881, 5
        %v3884 = vor.u32 %v3880, %v3883
        %v3885 = vrot.slane %v3884, 4
        %v3887 = vshll.u32 %v3682, 16
        %v3889 = vrot.slane %v3887, 5
        %v3890 = vsel %vm430, %v3885, %v3889
        %v3891 = vshrl.u32 %v3682, 16
        %v3893 = vrot.slane %v3891, 4
        %v3894 = vor.u32 %v3893, %v3889
        %v3895 = vrot.slane %v3894, 4
        %v3897 = vshll.u32 %v3683, 16
        %v3899 = vrot.slane %v3897, 5
        %v3900 = vsel %vm430, %v3895, %v3899
        %v3901 = vshrl.u32 %v3683, 16
        %v3903 = vrot.slane %v3901, 4
        %v3904 = vor.u32 %v3903, %v3899
        %v3905 = vrot.slane %v3904, 4
        %v3907 = vshll.u32 %v3684, 16
        %v3909 = vrot.slane %v3907, 5
        %v3910 = vsel %vm430, %v3905, %v3909
        %v3911 = vshrl.u32 %v3684, 16
        %v3913 = vrot.slane %v3911, 4
        %v3914 = vor.u32 %v3913, %v3909
        %v3915 = vrot.slane %v3914, 4
        %v3917 = vshll.u32 %v3685, 16
        %v3919 = vrot.slane %v3917, 5
        %v3920 = vsel %vm430, %v3915, %v3919
        %v3922 = vshrl.u32 %v3686, 16
        %v3924 = vrot.slane %v3922, 4
        %v3925 = vshll.u32 %v3686, 16
        %v3927 = vrot.slane %v3925, 5
        %v3928 = vor.u32 %v3924, %v3927
        %v3929 = vrot.slane %v3928, 4
        %v3931 = vshll.u32 %v3687, 16
        %v3933 = vrot.slane %v3931, 5
        %v3934 = vsel %vm430, %v3929, %v3933
        %v3935 = vshrl.u32 %v3687, 16
        %v3937 = vrot.slane %v3935, 4
        %v3938 = vor.u32 %v3937, %v3933
        %v3939 = vrot.slane %v3938, 4
        %v3941 = vshll.u32 %v3688, 16
        %v3943 = vrot.slane %v3941, 5
        %v3944 = vsel %vm430, %v3939, %v3943
        %v3945 = vshrl.u32 %v3688, 16
        %v3947 = vrot.slane %v3945, 4
        %v3948 = vor.u32 %v3947, %v3943
        %v3949 = vrot.slane %v3948, 4
        %v3951 = vshll.u32 %v3689, 16
        %v3953 = vrot.slane %v3951, 5
        %v3954 = vsel %vm430, %v3949, %v3953
        %v3955 = vshrl.u32 %v3689, 16
        %v3957 = vrot.slane %v3955, 4
        %v3958 = vor.u32 %v3957, %v3953
        %v3959 = vrot.slane %v3958, 4
        %v3961 = vshll.u32 %v3690, 16
        %v3963 = vrot.slane %v3961, 5
        %v3964 = vsel %vm430, %v3959, %v3963
        %v3966 = vshrl.u32 %v3691, 16
        %v3968 = vrot.slane %v3966, 4
        %v3969 = vshll.u32 %v3691, 16
        %v3971 = vrot.slane %v3969, 5
        %v3972 = vor.u32 %v3968, %v3971
        %v3973 = vrot.slane %v3972, 4
        %v3975 = vshll.u32 %v3692, 16
        %v3977 = vrot.slane %v3975, 5
        %v3978 = vsel %vm430, %v3973, %v3977
        %v3979 = vshrl.u32 %v3692, 16
        %v3981 = vrot.slane %v3979, 4
        %v3982 = vor.u32 %v3981, %v3977
        %v3983 = vrot.slane %v3982, 4
        %v3985 = vshll.u32 %v3693, 16
        %v3987 = vrot.slane %v3985, 5
        %v3988 = vsel %vm430, %v3983, %v3987
        %v3989 = vshrl.u32 %v3693, 16
        %v3991 = vrot.slane %v3989, 4
        %v3992 = vor.u32 %v3991, %v3987
        %v3993 = vrot.slane %v3992, 4
        %v3995 = vshll.u32 %v3694, 16
        %v3997 = vrot.slane %v3995, 5
        %v3998 = vsel %vm430, %v3993, %v3997
        %v3999 = vshrl.u32 %v3694, 16
        %v4001 = vrot.slane %v3999, 4
        %v4002 = vor.u32 %v4001, %v3997
        %v4003 = vrot.slane %v4002, 4
        %v4005 = vshll.u32 %v3695, 16
        %v4007 = vrot.slane %v4005, 5
        %v4008 = vsel %vm430, %v4003, %v4007
        %v4010 = vshrl.u32 %v3696, 16
        %v4012 = vrot.slane %v4010, 4
        %v4013 = vshll.u32 %v3696, 16
        %v4015 = vrot.slane %v4013, 5
        %v4016 = vor.u32 %v4012, %v4015
        %v4017 = vrot.slane %v4016, 4
        %v4019 = vshll.u32 %v3697, 16
        %v4021 = vrot.slane %v4019, 5
        %v4022 = vsel %vm430, %v4017, %v4021
        %v4023 = vshrl.u32 %v3697, 16
        %v4025 = vrot.slane %v4023, 4
        %v4026 = vor.u32 %v4025, %v4021
        %v4027 = vrot.slane %v4026, 4
        %v4029 = vshll.u32 %v3698, 16
        %v4031 = vrot.slane %v4029, 5
        %v4032 = vsel %vm430, %v4027, %v4031
        %v4033 = vshrl.u32 %v3698, 16
        %v4035 = vrot.slane %v4033, 4
        %v4036 = vor.u32 %v4035, %v4031
        %v4037 = vrot.slane %v4036, 4
        %v4039 = vshll.u32 %v3699, 16
        %v4041 = vrot.slane %v4039, 5
        %v4042 = vsel %vm430, %v4037, %v4041
        %v4043 = vshrl.u32 %v3699, 16
        %v4045 = vrot.slane %v4043, 4
        %v4046 = vor.u32 %v4045, %v4041
        %v4047 = vrot.slane %v4046, 4
        %v4049 = vshll.u32 %v3700, 16
        %v4051 = vrot.slane %v4049, 5
        %v4052 = vsel %vm430, %v4047, %v4051
        %v4053 = vld [vmem:[%s2 + $0x8] sm:$0xc]
        %v4054 = vunpack.c.l.b16 %v3714
        %v4055 = vunpack.c.l.b16 %v3724
        %v4056 = vunpack.c.l.b16 %v3734
        %v4057 = vunpack.c.l.b16 %v3744
        %v4058 = vunpack.c.l.b16 %v3758
        %v4059 = vunpack.c.l.b16 %v3768
        %v4060 = vunpack.c.l.b16 %v3778
        %v4061 = vunpack.c.l.b16 %v3788
        %v4062 = vunpack.c.l.b16 %v3802
        %v4063 = vunpack.c.l.b16 %v3812
        %v4064 = vunpack.c.l.b16 %v3822
        %v4065 = vunpack.c.l.b16 %v3832
        %v4066 = vunpack.c.l.b16 %v3846
        %v4067 = vunpack.c.l.b16 %v3856
        %v4068 = vunpack.c.l.b16 %v3866
        %v4069 = vunpack.c.l.b16 %v3876
        %v4070 = vunpack.c.l.b16 %v3890
        %v4071 = vunpack.c.l.b16 %v3900
        %v4072 = vunpack.c.l.b16 %v3910
        %v4073 = vunpack.c.l.b16 %v3920
        %v4074 = vunpack.c.l.b16 %v3934
        %v4075 = vunpack.c.l.b16 %v3944
        %v4076 = vunpack.c.l.b16 %v3954
        %v4077 = vunpack.c.l.b16 %v3964
        %v4078 = vunpack.c.l.b16 %v3978
        %v4079 = vunpack.c.l.b16 %v3988
        %v4080 = vunpack.c.l.b16 %v3998
        %v4081 = vunpack.c.l.b16 %v4008
        %v4082 = vunpack.c.l.b16 %v4022
        %v4083 = vunpack.c.l.b16 %v4032
        %v4084 = vunpack.c.l.b16 %v4042
        %v4085 = vunpack.c.l.b16 %v4052
        %v4086 = vpack.c.b16 %v4055, %v4054
        %v4087 = vpack.c.b16 %v4057, %v4056
        %v4088 = vpack.c.b16 %v4059, %v4058
        %v4089 = vpack.c.b16 %v4061, %v4060
        %v4090 = vpack.c.b16 %v4063, %v4062
        %v4091 = vpack.c.b16 %v4065, %v4064
        %v4092 = vpack.c.b16 %v4067, %v4066
        %v4093 = vpack.c.b16 %v4069, %v4068
        %v4094 = vpack.c.b16 %v4071, %v4070
        %v4095 = vpack.c.b16 %v4073, %v4072
        %v4096 = vpack.c.b16 %v4075, %v4074
        %v4097 = vpack.c.b16 %v4077, %v4076
        %v4098 = vpack.c.b16 %v4079, %v4078
        %v4099 = vpack.c.b16 %v4081, %v4080
        %v4100 = vpack.c.b16 %v4083, %v4082
        %v4101 = vpack.c.b16 %v4085, %v4084
        %v4103 = vunpack.c.l.b16 %v4053
        %v4104 = vpack.c.b16 %v4103, %v4103
        %v4106 = vshrl.u32 %v4104, 16
        %v4108 = vrot.slane %v4106, 2
        %v4109 = vshll.u32 %v4104, 16
        %v4111 = vrot.slane %v4109, 3
        %v4112 = vor.u32 %v4108, %v4111
        %v4114 = vsel %vm843, %v4086, 0
        %v4117 = vsel %vm843, %v4087, 0
        %v4120 = vsel %vm843, %v4088, 0
        %v4123 = vsel %vm843, %v4089, 0
        %v4126 = vsel %vm843, %v4090, 0
        %v4129 = vsel %vm843, %v4091, 0
        %v4132 = vsel %vm843, %v4092, 0
        %v4135 = vsel %vm843, %v4093, 0
        %v4138 = vsel %vm843, %v4094, 0
        %v4141 = vsel %vm843, %v4095, 0
        %v4144 = vsel %vm843, %v4096, 0
        %v4147 = vsel %vm843, %v4097, 0
        %v4150 = vsel %vm843, %v4098, 0
        %v4153 = vsel %vm843, %v4099, 0
        %v4156 = vsel %vm843, %v4100, 0
        %v4159 = vsel %vm843, %v4101, 0
        %v4162 = vand.u32 %v4112, %v895
        %4164 = vmatprep.subr.bf16.mxu0 0
        %4165 = vmatpush1.bf16.msra.mxu0 %v4162
        %4166 = vmatprep.subr.bf16.mxu0 0
        %4167 = vmatpush1.bf16.msra.mxu0 0
        %4168 = vmatprep.subr.bf16.mxu0 0
        %4169 = vmatpush1.bf16.msra.mxu0 0
        %4170 = vmatprep.subr.bf16.mxu0 0
        %4171 = vmatpush1.bf16.msra.mxu0 0
        %4172 = vmatprep.subr.bf16.mxu0 0
        %4173 = vmatpush1.bf16.msra.mxu0 0
        %4174 = vmatprep.subr.bf16.mxu0 0
        %4175 = vmatpush1.bf16.msra.mxu0 0
        %4176 = vmatprep.subr.bf16.mxu0 0
        %4177 = vmatpush1.bf16.msra.mxu0 0
        %4178 = vmatprep.subr.bf16.mxu0 0
        %4179 = vmatpush1.bf16.msra.mxu0 0
        %4180 = vmatprep.subr.bf16.mxu0 0
        %4181 = vmatpush1.bf16.msra.mxu0 0
        %4182 = vmatprep.subr.bf16.mxu0 0
        %4183 = vmatpush1.bf16.msra.mxu0 0
        %4184 = vmatprep.subr.bf16.mxu0 0
        %4185 = vmatpush1.bf16.msra.mxu0 0
        %4186 = vmatprep.subr.bf16.mxu0 0
        %4187 = vmatpush1.bf16.msra.mxu0 0
        %4188 = vmatprep.subr.bf16.mxu0 0
        %4189 = vmatpush1.bf16.msra.mxu0 0
        %4190 = vmatprep.subr.bf16.mxu0 0
        %4191 = vmatpush1.bf16.msra.mxu0 0
        %4192 = vmatprep.subr.bf16.mxu0 0
        %4193 = vmatpush1.bf16.msra.mxu0 0
        %4194 = vmatprep.subr.bf16.mxu0 0
        %4195 = vmatpush1.bf16.msra.mxu0 0
        %4196 = vmatprep.mubr.bf16.mxu0 0
        %4197 = vmatmul.mubr.bf16.gmra.mrb[0].mxu0 %v4114
        %v4198 = vpop.f32.mrb[0].mxu0
        %v4199 = vadd.f32 0.0, %v4198
        %v4200 = vpop.f32.mrb[0].mxu0
        %v4201 = vpop.f32.mrb[0].mxu0
        %v4202 = vadd.f32 0.0, %v4201
        %v4203 = vpop.f32.mrb[0].mxu0
        %4204 = vmatprep.mubr.bf16.mxu0 0
        %4205 = vmatmul.mubr.bf16.gmra.mrb[0].mxu0 %v4117
        %v4206 = vpop.f32.mrb[0].mxu0
        %v4207 = vadd.f32 0.0, %v4206
        %v4208 = vpop.f32.mrb[0].mxu0
        %v4209 = vpop.f32.mrb[0].mxu0
        %v4210 = vadd.f32 0.0, %v4209
        %v4211 = vpop.f32.mrb[0].mxu0
        %4212 = vmatprep.mubr.bf16.mxu0 0
        %4213 = vmatmul.mubr.bf16.gmra.mrb[0].mxu0 %v4120
        %v4214 = vpop.f32.mrb[0].mxu0
        %v4215 = vadd.f32 0.0, %v4214
        %v4216 = vpop.f32.mrb[0].mxu0
        %v4217 = vpop.f32.mrb[0].mxu0
        %v4218 = vadd.f32 0.0, %v4217
        %v4219 = vpop.f32.mrb[0].mxu0
        %4220 = vmatprep.mubr.bf16.mxu0 0
        %4221 = vmatmul.mubr.bf16.gmra.mrb[0].mxu0 %v4123
        %v4222 = vpop.f32.mrb[0].mxu0
        %v4223 = vadd.f32 0.0, %v4222
        %v4224 = vpop.f32.mrb[0].mxu0
        %v4225 = vpop.f32.mrb[0].mxu0
        %v4226 = vadd.f32 0.0, %v4225
        %v4227 = vpop.f32.mrb[0].mxu0
        %4228 = vmatprep.mubr.bf16.mxu0 0
        %4229 = vmatmul.mubr.bf16.gmra.mrb[0].mxu0 %v4126
        %v4230 = vpop.f32.mrb[0].mxu0
        %v4231 = vadd.f32 0.0, %v4230
        %v4232 = vpop.f32.mrb[0].mxu0
        %v4233 = vpop.f32.mrb[0].mxu0
        %v4234 = vadd.f32 0.0, %v4233
        %v4235 = vpop.f32.mrb[0].mxu0
        %4236 = vmatprep.mubr.bf16.mxu0 0
        %4237 = vmatmul.mubr.bf16.gmra.mrb[0].mxu0 %v4129
        %v4238 = vpop.f32.mrb[0].mxu0
        %v4239 = vadd.f32 0.0, %v4238
        %v4240 = vpop.f32.mrb[0].mxu0
        %v4241 = vpop.f32.mrb[0].mxu0
        %v4242 = vadd.f32 0.0, %v4241
        %v4243 = vpop.f32.mrb[0].mxu0
        %4244 = vmatprep.mubr.bf16.mxu0 0
        %4245 = vmatmul.mubr.bf16.gmra.mrb[0].mxu0 %v4132
        %v4246 = vpop.f32.mrb[0].mxu0
        %v4247 = vadd.f32 0.0, %v4246
        %v4248 = vpop.f32.mrb[0].mxu0
        %v4249 = vpop.f32.mrb[0].mxu0
        %v4250 = vadd.f32 0.0, %v4249
        %v4251 = vpop.f32.mrb[0].mxu0
        %4252 = vmatprep.mubr.bf16.mxu0 0
        %4253 = vmatmul.mubr.bf16.gmra.mrb[0].mxu0 %v4135
        %v4254 = vpop.f32.mrb[0].mxu0
        %v4255 = vadd.f32 0.0, %v4254
        %v4256 = vpop.f32.mrb[0].mxu0
        %v4257 = vpop.f32.mrb[0].mxu0
        %v4258 = vadd.f32 0.0, %v4257
        %v4259 = vpop.f32.mrb[0].mxu0
        %4260 = vmatprep.mubr.bf16.mxu0 0
        %4261 = vmatmul.mubr.bf16.gmra.mrb[0].mxu0 %v4138
        %v4262 = vpop.f32.mrb[0].mxu0
        %v4263 = vadd.f32 0.0, %v4262
        %v4264 = vpop.f32.mrb[0].mxu0
        %v4265 = vpop.f32.mrb[0].mxu0
        %v4266 = vadd.f32 0.0, %v4265
        %v4267 = vpop.f32.mrb[0].mxu0
        %4268 = vmatprep.mubr.bf16.mxu0 0
        %4269 = vmatmul.mubr.bf16.gmra.mrb[0].mxu0 %v4141
        %v4270 = vpop.f32.mrb[0].mxu0
        %v4271 = vadd.f32 0.0, %v4270
        %v4272 = vpop.f32.mrb[0].mxu0
        %v4273 = vpop.f32.mrb[0].mxu0
        %v4274 = vadd.f32 0.0, %v4273
        %v4275 = vpop.f32.mrb[0].mxu0
        %4276 = vmatprep.mubr.bf16.mxu0 0
        %4277 = vmatmul.mubr.bf16.gmra.mrb[0].mxu0 %v4144
        %v4278 = vpop.f32.mrb[0].mxu0
        %v4279 = vadd.f32 0.0, %v4278
        %v4280 = vpop.f32.mrb[0].mxu0
        %v4281 = vpop.f32.mrb[0].mxu0
        %v4282 = vadd.f32 0.0, %v4281
        %v4283 = vpop.f32.mrb[0].mxu0
        %4284 = vmatprep.mubr.bf16.mxu0 0
        %4285 = vmatmul.mubr.bf16.gmra.mrb[0].mxu0 %v4147
        %v4286 = vpop.f32.mrb[0].mxu0
        %v4287 = vadd.f32 0.0, %v4286
        %v4288 = vpop.f32.mrb[0].mxu0
        %v4289 = vpop.f32.mrb[0].mxu0
        %v4290 = vadd.f32 0.0, %v4289
        %v4291 = vpop.f32.mrb[0].mxu0
        %4292 = vmatprep.mubr.bf16.mxu0 0
        %4293 = vmatmul.mubr.bf16.gmra.mrb[0].mxu0 %v4150
        %v4294 = vpop.f32.mrb[0].mxu0
        %v4295 = vadd.f32 0.0, %v4294
        %v4296 = vpop.f32.mrb[0].mxu0
        %v4297 = vpop.f32.mrb[0].mxu0
        %v4298 = vadd.f32 0.0, %v4297
        %v4299 = vpop.f32.mrb[0].mxu0
        %4300 = vmatprep.mubr.bf16.mxu0 0
        %4301 = vmatmul.mubr.bf16.gmra.mrb[0].mxu0 %v4153
        %v4302 = vpop.f32.mrb[0].mxu0
        %v4303 = vadd.f32 0.0, %v4302
        %v4304 = vpop.f32.mrb[0].mxu0
        %v4305 = vpop.f32.mrb[0].mxu0
        %v4306 = vadd.f32 0.0, %v4305
        %v4307 = vpop.f32.mrb[0].mxu0
        %4308 = vmatprep.mubr.bf16.mxu0 0
        %4309 = vmatmul.mubr.bf16.gmra.mrb[0].mxu0 %v4156
        %v4310 = vpop.f32.mrb[0].mxu0
        %v4311 = vadd.f32 0.0, %v4310
        %v4312 = vpop.f32.mrb[0].mxu0
        %v4313 = vpop.f32.mrb[0].mxu0
        %v4314 = vadd.f32 0.0, %v4313
        %v4315 = vpop.f32.mrb[0].mxu0
        %4316 = vmatprep.mubr.bf16.mxu0 0
        %4317 = vmatmul.mubr.bf16.gmra.mrb[0].mxu0 %v4159
        %v4318 = vpop.f32.mrb[0].mxu0
        %v4319 = vadd.f32 0.0, %v4318
        %v4320 = vpop.f32.mrb[0].mxu0
        %v4321 = vpop.f32.mrb[0].mxu0
        %v4322 = vadd.f32 0.0, %v4321
        %v4323 = vpop.f32.mrb[0].mxu0
        %4324 = vdwg.mxu0
        %v4325 = vadd.f32 %v3629, %v4199
        %v4326 = vadd.f32 %v3630, %v4202
        %v4327 = vadd.f32 %v3631, %v4207
        %v4328 = vadd.f32 %v3632, %v4210
        %v4329 = vadd.f32 %v3633, %v4215
        %v4330 = vadd.f32 %v3634, %v4218
        %v4331 = vadd.f32 %v3635, %v4223
        %v4332 = vadd.f32 %v3636, %v4226
        %v4333 = vadd.f32 %v3637, %v4231
        %v4334 = vadd.f32 %v3638, %v4234
        %v4335 = vadd.f32 %v3639, %v4239
        %v4336 = vadd.f32 %v3640, %v4242
        %v4337 = vadd.f32 %v3641, %v4247
        %v4338 = vadd.f32 %v3642, %v4250
        %v4339 = vadd.f32 %v3643, %v4255
        %v4340 = vadd.f32 %v3644, %v4258
        %v4341 = vadd.f32 %v3645, %v4263
        %v4342 = vadd.f32 %v3646, %v4266
        %v4343 = vadd.f32 %v3647, %v4271
        %v4344 = vadd.f32 %v3648, %v4274
        %v4345 = vadd.f32 %v3649, %v4279
        %v4346 = vadd.f32 %v3650, %v4282
        %v4347 = vadd.f32 %v3651, %v4287
        %v4348 = vadd.f32 %v3652, %v4290
        %v4349 = vadd.f32 %v3653, %v4295
        %v4350 = vadd.f32 %v3654, %v4298
        %v4351 = vadd.f32 %v3655, %v4303
        %v4352 = vadd.f32 %v3656, %v4306
        %v4353 = vadd.f32 %v3657, %v4311
        %v4354 = vadd.f32 %v3658, %v4314
        %v4355 = vadd.f32 %v3659, %v4319
        %v4356 = vadd.f32 %v3660, %v4322
        %v4357 = vld [vmem:[%s3299] sm:$0xe]
        %v4358 = vld [vmem:[%s3299 + $0x14] sm:$0xe]
        %v4359 = vld [vmem:[%s3299 + $0x28] sm:$0xe]
        %v4360 = vld [vmem:[%s3299 + $0x3c] sm:$0xe]
        %v4361 = vld [vmem:[%s3299 + $0x50] sm:$0xe]
        %v4362 = vld [vmem:[%s3299 + $0x64] sm:$0xe]
        %v4363 = vld [vmem:[%s3299 + $0x78] sm:$0xe]
        %v4364 = vld [vmem:[%s3299 + $0x8c] sm:$0xe]
        %v4405 = vrot.slane %v4357, 5
        %v4406 = vrot.slane %v4405, 4
        %v4407 = vrot.slane %v3662, 5
        %v4408 = vsel %vm1378, %v4406, %v4407
        %v4409 = vrot.slane %v4407, 4
        %v4410 = vrot.slane %v3663, 5
        %v4411 = vsel %vm1378, %v4409, %v4410
        %v4412 = vrot.slane %v4410, 4
        %v4413 = vrot.slane %v3664, 5
        %v4414 = vsel %vm1378, %v4412, %v4413
        %v4415 = vrot.slane %v4413, 4
        %v4416 = vrot.slane %v3665, 5
        %v4417 = vsel %vm1378, %v4415, %v4416
        %v4418 = vrot.slane %v4358, 5
        %v4419 = vrot.slane %v4418, 4
        %v4420 = vrot.slane %v3667, 5
        %v4421 = vsel %vm1378, %v4419, %v4420
        %v4422 = vrot.slane %v4420, 4
        %v4423 = vrot.slane %v3668, 5
        %v4424 = vsel %vm1378, %v4422, %v4423
        %v4425 = vrot.slane %v4423, 4
        %v4426 = vrot.slane %v3669, 5
        %v4427 = vsel %vm1378, %v4425, %v4426
        %v4428 = vrot.slane %v4426, 4
        %v4429 = vrot.slane %v3670, 5
        %v4430 = vsel %vm1378, %v4428, %v4429
        %v4431 = vrot.slane %v4359, 5
        %v4432 = vrot.slane %v4431, 4
        %v4433 = vrot.slane %v3672, 5
        %v4434 = vsel %vm1378, %v4432, %v4433
        %v4435 = vrot.slane %v4433, 4
        %v4436 = vrot.slane %v3673, 5
        %v4437 = vsel %vm1378, %v4435, %v4436
        %v4438 = vrot.slane %v4436, 4
        %v4439 = vrot.slane %v3674, 5
        %v4440 = vsel %vm1378, %v4438, %v4439
        %v4441 = vrot.slane %v4439, 4
        %v4442 = vrot.slane %v3675, 5
        %v4443 = vsel %vm1378, %v4441, %v4442
        %v4444 = vrot.slane %v4360, 5
        %v4445 = vrot.slane %v4444, 4
        %v4446 = vrot.slane %v3677, 5
        %v4447 = vsel %vm1378, %v4445, %v4446
        %v4448 = vrot.slane %v4446, 4
        %v4449 = vrot.slane %v3678, 5
        %v4450 = vsel %vm1378, %v4448, %v4449
        %v4451 = vrot.slane %v4449, 4
        %v4452 = vrot.slane %v3679, 5
        %v4453 = vsel %vm1378, %v4451, %v4452
        %v4454 = vrot.slane %v4452, 4
        %v4455 = vrot.slane %v3680, 5
        %v4456 = vsel %vm1378, %v4454, %v4455
        %v4457 = vrot.slane %v4361, 5
        %v4458 = vrot.slane %v4457, 4
        %v4459 = vrot.slane %v3682, 5
        %v4460 = vsel %vm1378, %v4458, %v4459
        %v4461 = vrot.slane %v4459, 4
        %v4462 = vrot.slane %v3683, 5
        %v4463 = vsel %vm1378, %v4461, %v4462
        %v4464 = vrot.slane %v4462, 4
        %v4465 = vrot.slane %v3684, 5
        %v4466 = vsel %vm1378, %v4464, %v4465
        %v4467 = vrot.slane %v4465, 4
        %v4468 = vrot.slane %v3685, 5
        %v4469 = vsel %vm1378, %v4467, %v4468
        %v4470 = vrot.slane %v4362, 5
        %v4471 = vrot.slane %v4470, 4
        %v4472 = vrot.slane %v3687, 5
        %v4473 = vsel %vm1378, %v4471, %v4472
        %v4474 = vrot.slane %v4472, 4
        %v4475 = vrot.slane %v3688, 5
        %v4476 = vsel %vm1378, %v4474, %v4475
        %v4477 = vrot.slane %v4475, 4
        %v4478 = vrot.slane %v3689, 5
        %v4479 = vsel %vm1378, %v4477, %v4478
        %v4480 = vrot.slane %v4478, 4
        %v4481 = vrot.slane %v3690, 5
        %v4482 = vsel %vm1378, %v4480, %v4481
        %v4483 = vrot.slane %v4363, 5
        %v4484 = vrot.slane %v4483, 4
        %v4485 = vrot.slane %v3692, 5
        %v4486 = vsel %vm1378, %v4484, %v4485
        %v4487 = vrot.slane %v4485, 4
        %v4488 = vrot.slane %v3693, 5
        %v4489 = vsel %vm1378, %v4487, %v4488
        %v4490 = vrot.slane %v4488, 4
        %v4491 = vrot.slane %v3694, 5
        %v4492 = vsel %vm1378, %v4490, %v4491
        %v4493 = vrot.slane %v4491, 4
        %v4494 = vrot.slane %v3695, 5
        %v4495 = vsel %vm1378, %v4493, %v4494
        %v4496 = vrot.slane %v4364, 5
        %v4497 = vrot.slane %v4496, 4
        %v4498 = vrot.slane %v3697, 5
        %v4499 = vsel %vm1378, %v4497, %v4498
        %v4500 = vrot.slane %v4498, 4
        %v4501 = vrot.slane %v3698, 5
        %v4502 = vsel %vm1378, %v4500, %v4501
        %v4503 = vrot.slane %v4501, 4
        %v4504 = vrot.slane %v3699, 5
        %v4505 = vsel %vm1378, %v4503, %v4504
        %v4506 = vrot.slane %v4504, 4
        %v4507 = vrot.slane %v3700, 5
        %v4508 = vsel %vm1378, %v4506, %v4507
        %v4509 = vld [vmem:[%s2 + $0xc] sm:$0x3]
        %v4510 = vunpack.c.l.b16 %v4408
        %v4511 = vunpack.c.l.b16 %v4411
        %v4512 = vunpack.c.l.b16 %v4414
        %v4513 = vunpack.c.l.b16 %v4417
        %v4514 = vunpack.c.l.b16 %v4421
        %v4515 = vunpack.c.l.b16 %v4424
        %v4516 = vunpack.c.l.b16 %v4427
        %v4517 = vunpack.c.l.b16 %v4430
        %v4518 = vunpack.c.l.b16 %v4434
        %v4519 = vunpack.c.l.b16 %v4437
        %v4520 = vunpack.c.l.b16 %v4440
        %v4521 = vunpack.c.l.b16 %v4443
        %v4522 = vunpack.c.l.b16 %v4447
        %v4523 = vunpack.c.l.b16 %v4450
        %v4524 = vunpack.c.l.b16 %v4453
        %v4525 = vunpack.c.l.b16 %v4456
        %v4526 = vunpack.c.l.b16 %v4460
        %v4527 = vunpack.c.l.b16 %v4463
        %v4528 = vunpack.c.l.b16 %v4466
        %v4529 = vunpack.c.l.b16 %v4469
        %v4530 = vunpack.c.l.b16 %v4473
        %v4531 = vunpack.c.l.b16 %v4476
        %v4532 = vunpack.c.l.b16 %v4479
        %v4533 = vunpack.c.l.b16 %v4482
        %v4534 = vunpack.c.l.b16 %v4486
        %v4535 = vunpack.c.l.b16 %v4489
        %v4536 = vunpack.c.l.b16 %v4492
        %v4537 = vunpack.c.l.b16 %v4495
        %v4538 = vunpack.c.l.b16 %v4499
        %v4539 = vunpack.c.l.b16 %v4502
        %v4540 = vunpack.c.l.b16 %v4505
        %v4541 = vunpack.c.l.b16 %v4508
        %v4542 = vpack.c.b16 %v4511, %v4510
        %v4543 = vpack.c.b16 %v4513, %v4512
        %v4544 = vpack.c.b16 %v4515, %v4514
        %v4545 = vpack.c.b16 %v4517, %v4516
        %v4546 = vpack.c.b16 %v4519, %v4518
        %v4547 = vpack.c.b16 %v4521, %v4520
        %v4548 = vpack.c.b16 %v4523, %v4522
        %v4549 = vpack.c.b16 %v4525, %v4524
        %v4550 = vpack.c.b16 %v4527, %v4526
        %v4551 = vpack.c.b16 %v4529, %v4528
        %v4552 = vpack.c.b16 %v4531, %v4530
        %v4553 = vpack.c.b16 %v4533, %v4532
        %v4554 = vpack.c.b16 %v4535, %v4534
        %v4555 = vpack.c.b16 %v4537, %v4536
        %v4556 = vpack.c.b16 %v4539, %v4538
        %v4557 = vpack.c.b16 %v4541, %v4540
        %v4559 = vsel %vm843, %v4542, 0
        %v4562 = vsel %vm843, %v4543, 0
        %v4565 = vsel %vm843, %v4544, 0
        %v4568 = vsel %vm843, %v4545, 0
        %v4571 = vsel %vm843, %v4546, 0
        %v4574 = vsel %vm843, %v4547, 0
        %v4577 = vsel %vm843, %v4548, 0
        %v4580 = vsel %vm843, %v4549, 0
        %v4583 = vsel %vm843, %v4550, 0
        %v4586 = vsel %vm843, %v4551, 0
        %v4589 = vsel %vm843, %v4552, 0
        %v4592 = vsel %vm843, %v4553, 0
        %v4595 = vsel %vm843, %v4554, 0
        %v4598 = vsel %vm843, %v4555, 0
        %v4601 = vsel %vm843, %v4556, 0
        %v4604 = vsel %vm843, %v4557, 0
        %v4607 = vand.u32 %v4509, %v895
        %4609 = vmatprep.subr.bf16.mxu0 0
        %4610 = vmatpush1.bf16.msra.mxu0 %v4607
        %4611 = vmatprep.subr.bf16.mxu0 0
        %4612 = vmatpush1.bf16.msra.mxu0 0
        %4613 = vmatprep.subr.bf16.mxu0 0
        %4614 = vmatpush1.bf16.msra.mxu0 0
        %4615 = vmatprep.subr.bf16.mxu0 0
        %4616 = vmatpush1.bf16.msra.mxu0 0
        %4617 = vmatprep.subr.bf16.mxu0 0
        %4618 = vmatpush1.bf16.msra.mxu0 0
        %4619 = vmatprep.subr.bf16.mxu0 0
        %4620 = vmatpush1.bf16.msra.mxu0 0
        %4621 = vmatprep.subr.bf16.mxu0 0
        %4622 = vmatpush1.bf16.msra.mxu0 0
        %4623 = vmatprep.subr.bf16.mxu0 0
        %4624 = vmatpush1.bf16.msra.mxu0 0
        %4625 = vmatprep.subr.bf16.mxu0 0
        %4626 = vmatpush1.bf16.msra.mxu0 0
        %4627 = vmatprep.subr.bf16.mxu0 0
        %4628 = vmatpush1.bf16.msra.mxu0 0
        %4629 = vmatprep.subr.bf16.mxu0 0
        %4630 = vmatpush1.bf16.msra.mxu0 0
        %4631 = vmatprep.subr.bf16.mxu0 0
        %4632 = vmatpush1.bf16.msra.mxu0 0
        %4633 = vmatprep.subr.bf16.mxu0 0
        %4634 = vmatpush1.bf16.msra.mxu0 0
        %4635 = vmatprep.subr.bf16.mxu0 0
        %4636 = vmatpush1.bf16.msra.mxu0 0
        %4637 = vmatprep.subr.bf16.mxu0 0
        %4638 = vmatpush1.bf16.msra.mxu0 0
        %4639 = vmatprep.subr.bf16.mxu0 0
        %4640 = vmatpush1.bf16.msra.mxu0 0
        %4641 = vmatprep.mubr.bf16.mxu0 0
        %4642 = vmatmul.mubr.bf16.gmra.mrb[0].mxu0 %v4559
        %v4643 = vpop.f32.mrb[0].mxu0
        %v4644 = vadd.f32 0.0, %v4643
        %v4645 = vpop.f32.mrb[0].mxu0
        %v4646 = vpop.f32.mrb[0].mxu0
        %v4647 = vadd.f32 0.0, %v4646
        %v4648 = vpop.f32.mrb[0].mxu0
        %4649 = vmatprep.mubr.bf16.mxu0 0
        %4650 = vmatmul.mubr.bf16.gmra.mrb[0].mxu0 %v4562
        %v4651 = vpop.f32.mrb[0].mxu0
        %v4652 = vadd.f32 0.0, %v4651
        %v4653 = vpop.f32.mrb[0].mxu0
        %v4654 = vpop.f32.mrb[0].mxu0
        %v4655 = vadd.f32 0.0, %v4654
        %v4656 = vpop.f32.mrb[0].mxu0
        %4657 = vmatprep.mubr.bf16.mxu0 0
        %4658 = vmatmul.mubr.bf16.gmra.mrb[0].mxu0 %v4565
        %v4659 = vpop.f32.mrb[0].mxu0
        %v4660 = vadd.f32 0.0, %v4659
        %v4661 = vpop.f32.mrb[0].mxu0
        %v4662 = vpop.f32.mrb[0].mxu0
        %v4663 = vadd.f32 0.0, %v4662
        %v4664 = vpop.f32.mrb[0].mxu0
        %4665 = vmatprep.mubr.bf16.mxu0 0
        %4666 = vmatmul.mubr.bf16.gmra.mrb[0].mxu0 %v4568
        %v4667 = vpop.f32.mrb[0].mxu0
        %v4668 = vadd.f32 0.0, %v4667
        %v4669 = vpop.f32.mrb[0].mxu0
        %v4670 = vpop.f32.mrb[0].mxu0
        %v4671 = vadd.f32 0.0, %v4670
        %v4672 = vpop.f32.mrb[0].mxu0
        %4673 = vmatprep.mubr.bf16.mxu0 0
        %4674 = vmatmul.mubr.bf16.gmra.mrb[0].mxu0 %v4571
        %v4675 = vpop.f32.mrb[0].mxu0
        %v4676 = vadd.f32 0.0, %v4675
        %v4677 = vpop.f32.mrb[0].mxu0
        %v4678 = vpop.f32.mrb[0].mxu0
        %v4679 = vadd.f32 0.0, %v4678
        %v4680 = vpop.f32.mrb[0].mxu0
        %4681 = vmatprep.mubr.bf16.mxu0 0
        %4682 = vmatmul.mubr.bf16.gmra.mrb[0].mxu0 %v4574
        %v4683 = vpop.f32.mrb[0].mxu0
        %v4684 = vadd.f32 0.0, %v4683
        %v4685 = vpop.f32.mrb[0].mxu0
        %v4686 = vpop.f32.mrb[0].mxu0
        %v4687 = vadd.f32 0.0, %v4686
        %v4688 = vpop.f32.mrb[0].mxu0
        %4689 = vmatprep.mubr.bf16.mxu0 0
        %4690 = vmatmul.mubr.bf16.gmra.mrb[0].mxu0 %v4577
        %v4691 = vpop.f32.mrb[0].mxu0
        %v4692 = vadd.f32 0.0, %v4691
        %v4693 = vpop.f32.mrb[0].mxu0
        %v4694 = vpop.f32.mrb[0].mxu0
        %v4695 = vadd.f32 0.0, %v4694
        %v4696 = vpop.f32.mrb[0].mxu0
        %4697 = vmatprep.mubr.bf16.mxu0 0
        %4698 = vmatmul.mubr.bf16.gmra.mrb[0].mxu0 %v4580
        %v4699 = vpop.f32.mrb[0].mxu0
        %v4700 = vadd.f32 0.0, %v4699
        %v4701 = vpop.f32.mrb[0].mxu0
        %v4702 = vpop.f32.mrb[0].mxu0
        %v4703 = vadd.f32 0.0, %v4702
        %v4704 = vpop.f32.mrb[0].mxu0
        %4705 = vmatprep.mubr.bf16.mxu0 0
        %4706 = vmatmul.mubr.bf16.gmra.mrb[0].mxu0 %v4583
        %v4707 = vpop.f32.mrb[0].mxu0
        %v4708 = vadd.f32 0.0, %v4707
        %v4709 = vpop.f32.mrb[0].mxu0
        %v4710 = vpop.f32.mrb[0].mxu0
        %v4711 = vadd.f32 0.0, %v4710
        %v4712 = vpop.f32.mrb[0].mxu0
        %4713 = vmatprep.mubr.bf16.mxu0 0
        %4714 = vmatmul.mubr.bf16.gmra.mrb[0].mxu0 %v4586
        %v4715 = vpop.f32.mrb[0].mxu0
        %v4716 = vadd.f32 0.0, %v4715
        %v4717 = vpop.f32.mrb[0].mxu0
        %v4718 = vpop.f32.mrb[0].mxu0
        %v4719 = vadd.f32 0.0, %v4718
        %v4720 = vpop.f32.mrb[0].mxu0
        %4721 = vmatprep.mubr.bf16.mxu0 0
        %4722 = vmatmul.mubr.bf16.gmra.mrb[0].mxu0 %v4589
        %v4723 = vpop.f32.mrb[0].mxu0
        %v4724 = vadd.f32 0.0, %v4723
        %v4725 = vpop.f32.mrb[0].mxu0
        %v4726 = vpop.f32.mrb[0].mxu0
        %v4727 = vadd.f32 0.0, %v4726
        %v4728 = vpop.f32.mrb[0].mxu0
        %4729 = vmatprep.mubr.bf16.mxu0 0
        %4730 = vmatmul.mubr.bf16.gmra.mrb[0].mxu0 %v4592
        %v4731 = vpop.f32.mrb[0].mxu0
        %v4732 = vadd.f32 0.0, %v4731
        %v4733 = vpop.f32.mrb[0].mxu0
        %v4734 = vpop.f32.mrb[0].mxu0
        %v4735 = vadd.f32 0.0, %v4734
        %v4736 = vpop.f32.mrb[0].mxu0
        %4737 = vmatprep.mubr.bf16.mxu0 0
        %4738 = vmatmul.mubr.bf16.gmra.mrb[0].mxu0 %v4595
        %v4739 = vpop.f32.mrb[0].mxu0
        %v4740 = vadd.f32 0.0, %v4739
        %v4741 = vpop.f32.mrb[0].mxu0
        %v4742 = vpop.f32.mrb[0].mxu0
        %v4743 = vadd.f32 0.0, %v4742
        %v4744 = vpop.f32.mrb[0].mxu0
        %4745 = vmatprep.mubr.bf16.mxu0 0
        %4746 = vmatmul.mubr.bf16.gmra.mrb[0].mxu0 %v4598
        %v4747 = vpop.f32.mrb[0].mxu0
        %v4748 = vadd.f32 0.0, %v4747
        %v4749 = vpop.f32.mrb[0].mxu0
        %v4750 = vpop.f32.mrb[0].mxu0
        %v4751 = vadd.f32 0.0, %v4750
        %v4752 = vpop.f32.mrb[0].mxu0
        %4753 = vmatprep.mubr.bf16.mxu0 0
        %4754 = vmatmul.mubr.bf16.gmra.mrb[0].mxu0 %v4601
        %v4755 = vpop.f32.mrb[0].mxu0
        %v4756 = vadd.f32 0.0, %v4755
        %v4757 = vpop.f32.mrb[0].mxu0
        %v4758 = vpop.f32.mrb[0].mxu0
        %v4759 = vadd.f32 0.0, %v4758
        %v4760 = vpop.f32.mrb[0].mxu0
        %4761 = vmatprep.mubr.bf16.mxu0 0
        %4762 = vmatmul.mubr.bf16.gmra.mrb[0].mxu0 %v4604
        %v4763 = vpop.f32.mrb[0].mxu0
        %v4764 = vadd.f32 0.0, %v4763
        %v4765 = vpop.f32.mrb[0].mxu0
        %v4766 = vpop.f32.mrb[0].mxu0
        %v4767 = vadd.f32 0.0, %v4766
        %v4768 = vpop.f32.mrb[0].mxu0
        %4769 = vdwg.mxu0
        %v4770 = vadd.f32 %v4325, %v4644
        %v4771 = vadd.f32 %v4326, %v4647
        %v4772 = vadd.f32 %v4327, %v4652
        %v4773 = vadd.f32 %v4328, %v4655
        %v4774 = vadd.f32 %v4329, %v4660
        %v4775 = vadd.f32 %v4330, %v4663
        %v4776 = vadd.f32 %v4331, %v4668
        %v4777 = vadd.f32 %v4332, %v4671
        %v4778 = vadd.f32 %v4333, %v4676
        %v4779 = vadd.f32 %v4334, %v4679
        %v4780 = vadd.f32 %v4335, %v4684
        %v4781 = vadd.f32 %v4336, %v4687
        %v4782 = vadd.f32 %v4337, %v4692
        %v4783 = vadd.f32 %v4338, %v4695
        %v4784 = vadd.f32 %v4339, %v4700
        %v4785 = vadd.f32 %v4340, %v4703
        %v4786 = vadd.f32 %v4341, %v4708
        %v4787 = vadd.f32 %v4342, %v4711
        %v4788 = vadd.f32 %v4343, %v4716
        %v4789 = vadd.f32 %v4344, %v4719
        %v4790 = vadd.f32 %v4345, %v4724
        %v4791 = vadd.f32 %v4346, %v4727
        %v4792 = vadd.f32 %v4347, %v4732
        %v4793 = vadd.f32 %v4348, %v4735
        %v4794 = vadd.f32 %v4349, %v4740
        %v4795 = vadd.f32 %v4350, %v4743
        %v4796 = vadd.f32 %v4351, %v4748
        %v4797 = vadd.f32 %v4352, %v4751
        %v4798 = vadd.f32 %v4353, %v4756
        %v4799 = vadd.f32 %v4354, %v4759
        %v4800 = vadd.f32 %v4355, %v4764
        %v4801 = vadd.f32 %v4356, %v4767
        %v4802 = vld [vmem:[%s3] sm:$0x1]
        %v4804 = vlaneseq
        %v4805 = vshrl.u32 %v4804, 7
        %v4806 = vsub.s32 0, %v4805
        %v4807 = vrot.slane %v4802, %v4806
        %v4809 = vadd.f32 %v4770, %v4807
        %v4810 = vadd.f32 %v4771, %v4807
        %v4811 = vadd.f32 %v4772, %v4807
        %v4812 = vadd.f32 %v4773, %v4807
        %v4813 = vadd.f32 %v4774, %v4807
        %v4814 = vadd.f32 %v4775, %v4807
        %v4815 = vadd.f32 %v4776, %v4807
        %v4816 = vadd.f32 %v4777, %v4807
        %v4817 = vadd.f32 %v4778, %v4807
        %v4818 = vadd.f32 %v4779, %v4807
        %v4819 = vadd.f32 %v4780, %v4807
        %v4820 = vadd.f32 %v4781, %v4807
        %v4821 = vadd.f32 %v4782, %v4807
        %v4822 = vadd.f32 %v4783, %v4807
        %v4823 = vadd.f32 %v4784, %v4807
        %v4824 = vadd.f32 %v4785, %v4807
        %v4825 = vadd.f32 %v4786, %v4807
        %v4826 = vadd.f32 %v4787, %v4807
        %v4827 = vadd.f32 %v4788, %v4807
        %v4828 = vadd.f32 %v4789, %v4807
        %v4829 = vadd.f32 %v4790, %v4807
        %v4830 = vadd.f32 %v4791, %v4807
        %v4831 = vadd.f32 %v4792, %v4807
        %v4832 = vadd.f32 %v4793, %v4807
        %v4833 = vadd.f32 %v4794, %v4807
        %v4834 = vadd.f32 %v4795, %v4807
        %v4835 = vadd.f32 %v4796, %v4807
        %v4836 = vadd.f32 %v4797, %v4807
        %v4837 = vadd.f32 %v4798, %v4807
        %v4838 = vadd.f32 %v4799, %v4807
        %v4839 = vadd.f32 %v4800, %v4807
        %v4840 = vadd.f32 %v4801, %v4807
        %v4841 = vmax.f32 %v4809, 0.0
        %v4842 = vmax.f32 %v4810, 0.0
        %v4843 = vmax.f32 %v4811, 0.0
        %v4844 = vmax.f32 %v4812, 0.0
        %v4845 = vmax.f32 %v4813, 0.0
        %v4846 = vmax.f32 %v4814, 0.0
        %v4847 = vmax.f32 %v4815, 0.0
        %v4848 = vmax.f32 %v4816, 0.0
        %v4849 = vmax.f32 %v4817, 0.0
        %v4850 = vmax.f32 %v4818, 0.0
        %v4851 = vmax.f32 %v4819, 0.0
        %v4852 = vmax.f32 %v4820, 0.0
        %v4853 = vmax.f32 %v4821, 0.0
        %v4854 = vmax.f32 %v4822, 0.0
        %v4855 = vmax.f32 %v4823, 0.0
        %v4856 = vmax.f32 %v4824, 0.0
        %v4857 = vmax.f32 %v4825, 0.0
        %v4858 = vmax.f32 %v4826, 0.0
        %v4859 = vmax.f32 %v4827, 0.0
        %v4860 = vmax.f32 %v4828, 0.0
        %v4861 = vmax.f32 %v4829, 0.0
        %v4862 = vmax.f32 %v4830, 0.0
        %v4863 = vmax.f32 %v4831, 0.0
        %v4864 = vmax.f32 %v4832, 0.0
        %v4865 = vmax.f32 %v4833, 0.0
        %v4866 = vmax.f32 %v4834, 0.0
        %v4867 = vmax.f32 %v4835, 0.0
        %v4868 = vmax.f32 %v4836, 0.0
        %v4869 = vmax.f32 %v4837, 0.0
        %v4870 = vmax.f32 %v4838, 0.0
        %v4871 = vmax.f32 %v4839, 0.0
        %v4872 = vmax.f32 %v4840, 0.0
        %v4873 = vpack.c.bf16 %v4842, %v4841
        %v4874 = vpack.c.bf16 %v4844, %v4843
        %v4875 = vpack.c.bf16 %v4846, %v4845
        %v4876 = vpack.c.bf16 %v4848, %v4847
        %v4877 = vpack.c.bf16 %v4850, %v4849
        %v4878 = vpack.c.bf16 %v4852, %v4851
        %v4879 = vpack.c.bf16 %v4854, %v4853
        %v4880 = vpack.c.bf16 %v4856, %v4855
        %v4881 = vpack.c.bf16 %v4858, %v4857
        %v4882 = vpack.c.bf16 %v4860, %v4859
        %v4883 = vpack.c.bf16 %v4862, %v4861
        %v4884 = vpack.c.bf16 %v4864, %v4863
        %v4885 = vpack.c.bf16 %v4866, %v4865
        %v4886 = vpack.c.bf16 %v4868, %v4867
        %v4887 = vpack.c.bf16 %v4870, %v4869
        %v4888 = vpack.c.bf16 %v4872, %v4871
        %v4905 = vunpack.c.l.b16 %v4873
        %v4906 = vunpack.c.h.b16 %v4873
        %v4907 = vunpack.c.l.b16 %v4874
        %v4908 = vunpack.c.h.b16 %v4874
        %v4909 = vunpack.c.l.b16 %v4875
        %v4910 = vunpack.c.h.b16 %v4875
        %v4911 = vunpack.c.l.b16 %v4876
        %v4912 = vunpack.c.h.b16 %v4876
        %v4913 = vunpack.c.l.b16 %v4877
        %v4914 = vunpack.c.h.b16 %v4877
        %v4915 = vunpack.c.l.b16 %v4878
        %v4916 = vunpack.c.h.b16 %v4878
        %v4917 = vunpack.c.l.b16 %v4879
        %v4918 = vunpack.c.h.b16 %v4879
        %v4919 = vunpack.c.l.b16 %v4880
        %v4920 = vunpack.c.h.b16 %v4880
        %v4921 = vunpack.c.l.b16 %v4881
        %v4922 = vunpack.c.h.b16 %v4881
        %v4923 = vunpack.c.l.b16 %v4882
        %v4924 = vunpack.c.h.b16 %v4882
        %v4925 = vunpack.c.l.b16 %v4883
        %v4926 = vunpack.c.h.b16 %v4883
        %v4927 = vunpack.c.l.b16 %v4884
        %v4928 = vunpack.c.h.b16 %v4884
        %v4929 = vunpack.c.l.b16 %v4885
        %v4930 = vunpack.c.h.b16 %v4885
        %v4931 = vunpack.c.l.b16 %v4886
        %v4932 = vunpack.c.h.b16 %v4886
        %v4933 = vunpack.c.l.b16 %v4887
        %v4934 = vunpack.c.h.b16 %v4887
        %v4935 = vunpack.c.l.b16 %v4888
        %v4936 = vunpack.c.h.b16 %v4888
        %v4937 = vpack.c.b16 %v4905, %v4905
        %v4938 = vpack.c.b16 %v4906, %v4906
        %v4939 = vpack.c.b16 %v4907, %v4907
        %v4940 = vpack.c.b16 %v4908, %v4908
        %v4941 = vpack.c.b16 %v4909, %v4909
        %v4942 = vpack.c.b16 %v4910, %v4910
        %v4943 = vpack.c.b16 %v4911, %v4911
        %v4944 = vpack.c.b16 %v4912, %v4912
        %v4945 = vpack.c.b16 %v4913, %v4913
        %v4946 = vpack.c.b16 %v4914, %v4914
        %v4947 = vpack.c.b16 %v4915, %v4915
        %v4948 = vpack.c.b16 %v4916, %v4916
        %v4949 = vpack.c.b16 %v4917, %v4917
        %v4950 = vpack.c.b16 %v4918, %v4918
        %v4951 = vpack.c.b16 %v4919, %v4919
        %v4952 = vpack.c.b16 %v4920, %v4920
        %v4953 = vpack.c.b16 %v4921, %v4921
        %v4954 = vpack.c.b16 %v4922, %v4922
        %v4955 = vpack.c.b16 %v4923, %v4923
        %v4956 = vpack.c.b16 %v4924, %v4924
        %v4957 = vpack.c.b16 %v4925, %v4925
        %v4958 = vpack.c.b16 %v4926, %v4926
        %v4959 = vpack.c.b16 %v4927, %v4927
        %v4960 = vpack.c.b16 %v4928, %v4928
        %v4961 = vpack.c.b16 %v4929, %v4929
        %v4962 = vpack.c.b16 %v4930, %v4930
        %v4963 = vpack.c.b16 %v4931, %v4931
        %v4964 = vpack.c.b16 %v4932, %v4932
        %v4965 = vpack.c.b16 %v4933, %v4933
        %v4966 = vpack.c.b16 %v4934, %v4934
        %v4967 = vpack.c.b16 %v4935, %v4935
        %v4968 = vpack.c.b16 %v4936, %v4936
        %vm5001 = vcmask 519168
        %5002 = vst.msk [vmem:[%s255] sm:$0xf] %vm5001, %v4937
        %5003 = vst.msk [vmem:[%s255 + $0x4] sm:$0xf] %vm5001, %v4938
        %5004 = vst.msk [vmem:[%s255 + $0x8] sm:$0xf] %vm5001, %v4939
        %5005 = vst.msk [vmem:[%s255 + $0xc] sm:$0xf] %vm5001, %v4940
        %5006 = vst.msk [vmem:[%s255 + $0x10] sm:$0xf] %vm5001, %v4941
        %5007 = vst.msk [vmem:[%s255 + $0x14] sm:$0xf] %vm5001, %v4942
        %5008 = vst.msk [vmem:[%s255 + $0x18] sm:$0xf] %vm5001, %v4943
        %5009 = vst.msk [vmem:[%s255 + $0x1c] sm:$0xf] %vm5001, %v4944
        %5010 = vst.msk [vmem:[%s255 + $0x20] sm:$0xf] %vm5001, %v4945
        %5011 = vst.msk [vmem:[%s255 + $0x24] sm:$0xf] %vm5001, %v4946
        %5012 = vst.msk [vmem:[%s255 + $0x28] sm:$0xf] %vm5001, %v4947
        %5013 = vst.msk [vmem:[%s255 + $0x2c] sm:$0xf] %vm5001, %v4948
        %5014 = vst.msk [vmem:[%s255 + $0x30] sm:$0xf] %vm5001, %v4949
        %5015 = vst.msk [vmem:[%s255 + $0x34] sm:$0xf] %vm5001, %v4950
        %5016 = vst.msk [vmem:[%s255 + $0x38] sm:$0xf] %vm5001, %v4951
        %5017 = vst.msk [vmem:[%s255 + $0x3c] sm:$0xf] %vm5001, %v4952
        %5018 = vst.msk [vmem:[%s255 + $0x40] sm:$0xf] %vm5001, %v4953
        %5019 = vst.msk [vmem:[%s255 + $0x44] sm:$0xf] %vm5001, %v4954
        %5020 = vst.msk [vmem:[%s255 + $0x48] sm:$0xf] %vm5001, %v4955
        %5021 = vst.msk [vmem:[%s255 + $0x4c] sm:$0xf] %vm5001, %v4956
        %5022 = vst.msk [vmem:[%s255 + $0x50] sm:$0xf] %vm5001, %v4957
        %5023 = vst.msk [vmem:[%s255 + $0x54] sm:$0xf] %vm5001, %v4958
        %5024 = vst.msk [vmem:[%s255 + $0x58] sm:$0xf] %vm5001, %v4959
        %5025 = vst.msk [vmem:[%s255 + $0x5c] sm:$0xf] %vm5001, %v4960
        %5026 = vst.msk [vmem:[%s255 + $0x60] sm:$0xf] %vm5001, %v4961
        %5027 = vst.msk [vmem:[%s255 + $0x64] sm:$0xf] %vm5001, %v4962
        %5028 = vst.msk [vmem:[%s255 + $0x68] sm:$0xf] %vm5001, %v4963
        %5029 = vst.msk [vmem:[%s255 + $0x6c] sm:$0xf] %vm5001, %v4964
        %5030 = vst.msk [vmem:[%s255 + $0x70] sm:$0xf] %vm5001, %v4965
        %5031 = vst.msk [vmem:[%s255 + $0x74] sm:$0xf] %vm5001, %v4966
        %5032 = vst.msk [vmem:[%s255 + $0x78] sm:$0xf] %vm5001, %v4967
        %5033 = vst.msk [vmem:[%s255 + $0x7c] sm:$0xf] %vm5001, %v4968
        %s5034 = sand.u32 %s142, 1
        %s5035 = scalar_lea.sflag [#allocation4], %s5034
        %s5036 = sand.u32 %s142, 1
        %s5037 = smul.addr %s5036, 128
        %s5038 = scalar_lea.vmem [#allocation3], %s5037
        // Predicated region
        $region37: #{tpu_custom_call.1} parent=35 // pred_check
          %p5039 = pneg %p152
        $region38: #{tpu_custom_call.1} parent=35 // pred_check_branch
          %5041 = sbr.rel (%p5039) target = $region40
        $region39: #{tpu_custom_call.1} parent=35 // pred_region
          %s5042 = smul.u32 8, %s23
          %s5044 = ssub.s32 2048, 2048
          %5045 = vsyncadd %s5035, %s5044
          %s5046 = smul.addr %s5042, 4
          %s5047 = smul.addr %s22, 128
          %s5048 = sadd.s32 %s5046, %s5047
          %s5049 = smul.addr %s5048, 64
          %s5050 = scalar_lea.hbm %s4, %s5049
          %s5051 = sshll.u32 %s5038, 4
          %s5052 = int_to_ptr.vmem [resolvable:$true] %s5051
          %5057 = dma.vmem_to_hbm [thread:$0]  %s5052, 2048, %s5050, %s5035, 64, 64, 4
        $region40: #{tpu_custom_call.1} parent=35 // pred_fallthru
          _
      $region36: #{tpu_custom_call.1} parent=5 // pred_fallthru
        _
      %p5058 = scmp.le.s32.totalorder 2, %s13
      // Predicated region
      $region41: #{tpu_custom_call.1} parent=5 // pred_check
        %p5059 = pneg %p5058
      $region42: #{tpu_custom_call.1} parent=5 // pred_check_branch
        %5061 = sbr.rel (%p5059) target = $region44
      $region43: #{tpu_custom_call.1} parent=5 // pred_region
        %s5062 = ssub.s32 %s13, 2
        // Predicated region
        $region45: #{tpu_custom_call.1} parent=43 // pred_check
          %p5063 = pneg %p158
        $region46: #{tpu_custom_call.1} parent=43 // pred_check_branch
          %5065 = sbr.rel (%p5063) target = $region48
        $region47: #{tpu_custom_call.1} parent=43 // pred_region
          %s5066 = sand.u32 %s143, 1
          %s5067 = scalar_lea.sflag [#allocation4], %s5066
          %s5068 = sand.u32 %s143, 1
          %s5069 = smul.addr %s5068, 128
          %s5070 = scalar_lea.vmem [#allocation3], %s5069
          %5071 = dma.done %s5067, 2048
        $region48: #{tpu_custom_call.1} parent=43 // pred_fallthru
          _
      $region44: #{tpu_custom_call.1} parent=5 // pred_fallthru
        _
    $region6: #{tpu_custom_call.1} parent=1 // loop_footer
      %s17 = sadd.s32 1, %s13
    $region7: #{tpu_custom_call.1} parent=1 // loop_footer_branch
      %12 = sbr.rel target = $region3
    $region8: #{tpu_custom_call.1} parent=1 // loop_exit
      _
    %5072 = vsyncpa [#allocation4], 1
    %s5073 = scalar_lea.sflag [#allocation4], 1
    %5074 = vsyncpa %s5073, 1

</llo_original>
